<compile_context>
chip_gen: v7x
topology: tpu7x:2x2x1
jax: 0.10.0
libtpu: 0.0.40
codegen_flags: <defaults>
</compile_context>

<pallas_src>
import functools

import jax
import jax.numpy as jnp
from jax.experimental import pallas as pl
from jax.experimental.pallas import tpu as pltpu


def inference_kernel(tok_ref, emb_ref, w1_ref, b1_ref, w2_ref, b2_ref,
                     wd1_ref, bd1_ref, wd2_ref, bd2_ref, out_ref,
                     *, seq_len, ksize):
    """One grid step: encode a (2*TB)-sentence stack and run the classifier head.

    tok_ref : (2*TB*S, 1) int32  token ids, row order (sentence, batch, seq)
    emb_ref : (V, E)      bf16   embedding table
    w*_ref  : (K, Cin, Cout) bf16 conv weights (== torch weight.permute(2, 1, 0))
    b*_ref  : (1, Cout)   f32    conv biases
    wd*_ref : (in, out)   bf16   dense weights (== torch weight.T)
    bd*_ref : (1, out)    f32    dense biases
    out_ref : (TB, C)     f32    logits for this batch tile
    """
    rows = tok_ref.shape[0]
    n_sent = rows // seq_len            # 2 * TB sentences in this tile
    tb = n_sent // 2
    vocab = emb_ref.shape[0]
    hidden = w1_ref.shape[-1]
    pad = ksize // 2
    f32, bf16 = jnp.float32, jnp.bfloat16

    # ---- embedding as a one-hot MXU matmul (tiny vocab table lives in VMEM) --
    # TODO(synk): for large vocabularies keep the gather outside the kernel (or
    # use a DMA gather); the one-hot matmul only makes sense for small V.
    tok = tok_ref[...]                                              # (rows, 1) i32
    onehot = (jax.lax.broadcasted_iota(jnp.int32, (rows, vocab), 1)
              == tok).astype(bf16)                                  # (rows, V)
    x = jnp.dot(onehot, emb_ref[...], preferred_element_type=f32)   # (rows, E)
    x = x.reshape(n_sent, seq_len, -1)

    def conv(a3, w_ref, b_ref):
        # Zero-padded k-tap 1D conv as `ksize` accumulated MXU matmuls. Taps
        # come from static slices plus a 1-row zero edge: no (S+2p) padded
        # copy, no 3x-wide im2col buffer. bf16 operands, f32 accumulation;
        # bias add / relu stay f32 (v5e has no bf16 VPU).
        a3 = a3.astype(bf16)                                        # (n_sent, S, Cin)
        cin = a3.shape[-1]
        acc = jnp.zeros((rows, w_ref.shape[-1]), f32)
        for k in range(ksize):
            d = k - pad
            if d == 0:
                tap = a3
            elif d < 0:
                z = jnp.zeros((n_sent, -d, cin), bf16)
                tap = jnp.concatenate([z, a3[:, :seq_len + d, :]], axis=1)
            else:
                z = jnp.zeros((n_sent, d, cin), bf16)
                tap = jnp.concatenate([a3[:, d:, :], z], axis=1)
            acc = acc + jnp.dot(tap.reshape(rows, cin), w_ref[k],
                                preferred_element_type=f32)
        return jnp.maximum(acc + b_ref[...], 0.0)                   # (rows, Cout) f32

    h1 = conv(x, w1_ref, b1_ref).reshape(n_sent, seq_len, hidden)
    h2 = conv(h1, w2_ref, b2_ref).reshape(n_sent, seq_len, hidden)

    # ---- max over the sequence dim, then per-pair concat ---------------------
    enc_all = jnp.max(h2, axis=1)                                   # (2*TB, H)
    enc = jnp.concatenate([enc_all[:tb, :], enc_all[tb:, :]], axis=-1)  # (TB, 2H)

    # ---- head: dense1 -> relu -> (dropout == identity) -> dense2 -------------
    h = jnp.dot(enc.astype(bf16), wd1_ref[...], preferred_element_type=f32)
    h = jnp.maximum(h + bd1_ref[...], 0.0)
    # TODO(synk): nn.Dropout is a no-op at inference (and p defaults to 0.0), so it is elided.
    logits = jnp.dot(h.astype(bf16), wd2_ref[...], preferred_element_type=f32)
    out_ref[...] = (logits + bd2_ref[...]).astype(out_ref.dtype)


def inference_forward(tokens1, lengths1, tokens2, lengths2,
                      emb_w, w1, b1, w2, b2, wd1, bd1, wd2, bd2,
                      *, ksize=3, batch_tile=32):
    """tokens*: (B, S) int32; lengths* unused (matches the PyTorch forward)."""
    del lengths1, lengths2  # present in the PyTorch signature, never used in forward
    B, S = tokens1.shape
    V, E = emb_w.shape
    H = w1.shape[-1]
    L = wd1.shape[-1]
    C = wd2.shape[-1]

    # Batch tile: multiple of 8 (sublanes), large enough that 2*TB*S MXU rows
    # per step amortize the ~600-cycle per-step overhead, while B//TB >= 2 for
    # reasonable B keeps both v7x TensorCores busy.
    tb = min(batch_tile, max(8, pl.cdiv(B, 8) * 8))
    b_pad = pl.cdiv(B, tb) * tb
    n_tiles = b_pad // tb

    # Stack sentence1/sentence2 so a single encode pass covers both, laid out
    # as (tile, sentence, batch, seq) rows so each grid step reads ONE
    # contiguous (2*TB*S, 1) int32 block. The embedding gather happens
    # in-kernel, so only ~4 bytes/token of input traffic remain.
    toks = jnp.stack([tokens1, tokens2], axis=0).astype(jnp.int32)  # (2, B, S)
    if b_pad != B:
        toks = jnp.pad(toks, ((0, 0), (0, b_pad - B), (0, 0)))
    toks = (toks.reshape(2, n_tiles, tb, S)
                .transpose(1, 0, 2, 3)
                .reshape(n_tiles * 2 * tb * S, 1))

    # bf16 MXU operands (f32 accumulation in-kernel); biases stay f32.
    bf16, f32 = jnp.bfloat16, jnp.float32
    emb_bf = emb_w.astype(bf16)
    w1_bf, w2_bf = w1.astype(bf16), w2.astype(bf16)
    wd1_bf, wd2_bf = wd1.astype(bf16), wd2.astype(bf16)
    b1_row = b1.reshape(1, H).astype(f32)
    b2_row = b2.reshape(1, H).astype(f32)
    bd1_row = bd1.reshape(1, L).astype(f32)
    bd2_row = bd2.reshape(1, C).astype(f32)

    # NOTE: pipeline_mode=pl.Buffered(1) on the constant specs would give back a
    # few KB of VMEM; skipped here since the win is negligible at these sizes.
    def const_spec(shape):
        return pl.BlockSpec(shape, lambda g: (0,) * len(shape))

    kernel = functools.partial(inference_kernel, seq_len=S, ksize=ksize)

    out = pl.pallas_call(
        kernel,
        out_shape=jax.ShapeDtypeStruct((b_pad, C), f32),
        grid=(n_tiles,),
        in_specs=[
            pl.BlockSpec((2 * tb * S, 1), lambda g: (g, 0)),
            const_spec((V, E)),
            const_spec((ksize, E, H)),
            const_spec((1, H)),
            const_spec((ksize, H, H)),
            const_spec((1, H)),
            const_spec((L, L)),
            const_spec((1, L)),
            const_spec((L, C)),
            const_spec((1, C)),
        ],
        out_specs=pl.BlockSpec((tb, C), lambda g: (g, 0)),
        # Per-step VMEM (tokens + weights + (2*TB*S, H) activations) is well
        # under 1 MiB, so it fits v7x's 64 MiB physical / 32 MiB scoped VMEM
        # with huge headroom; no vmem_limit_bytes override needed.
        compiler_params=pltpu.CompilerParams(
            dimension_semantics=("parallel",)),
    )(toks, emb_bf, w1_bf, b1_row, w2_bf, b2_row,
      wd1_bf, bd1_row, wd2_bf, bd2_row)
    return out[:B]


def reference_forward(tok1, tok2, emb_w, w1, b1, w2, b2, wd1, bd1, wd2, bd2,
                      ksize=3):
    """Pure-JAX f32 reference mirroring the PyTorch InferenceModel forward."""
    def encode(tok):
        B, S = tok.shape
        pad = ksize // 2
        xp = jnp.pad(emb_w[tok], ((0, 0), (pad, pad), (0, 0)))
        h1 = sum(jnp.einsum('bse,eh->bsh', xp[:, k:k + S], w1[k])
                 for k in range(ksize)) + b1
        h1 = jnp.maximum(h1, 0.0)
        h1p = jnp.pad(h1, ((0, 0), (pad, pad), (0, 0)))
        h2 = sum(jnp.einsum('bsh,hg->bsg', h1p[:, k:k + S], w2[k])
                 for k in range(ksize)) + b2
        h2 = jnp.maximum(h2, 0.0)
        return jnp.max(h2, axis=1)

    enc = jnp.concatenate([encode(tok1), encode(tok2)], axis=-1)
    h = jnp.maximum(enc @ wd1 + bd1, 0.0)
    return h @ wd2 + bd2


if __name__ == "__main__":
    # Small deterministic config consistent with the module. B=64 exercises a
    # 2-step grid (both v7x TensorCores) with 32-batch tiles -> 2*32*8 = 512
    # MXU rows per step.
    B, S = 64, 8
    vocab_size, emb_size, hidden_size = 20, 16, 32
    kernel_size, padding_idx = 3, 0
    num_classes = 3
    linear_size = 2 * hidden_size  # encoder outputs are concatenated

    key = jax.random.PRNGKey(0)
    (k_emb, k_w1, k_b1, k_w2, k_b2,
     k_d1w, k_d1b, k_d2w, k_d2b, k_t1, k_t2) = jax.random.split(key, 11)

    # Parameters (deterministic synthetic init).
    emb_w = jax.random.normal(k_emb, (vocab_size, emb_size), jnp.float32) * 0.1
    emb_w = emb_w.at[padding_idx].set(0.0)  # padding_idx row is zero
    # Conv weights stored as (K, C_in, C_out) == torch weight.permute(2, 1, 0).
    w1 = jax.random.normal(k_w1, (kernel_size, emb_size, hidden_size),
                           jnp.float32) * 0.1
    b1 = jax.random.normal(k_b1, (hidden_size,), jnp.float32) * 0.1
    w2 = jax.random.normal(k_w2, (kernel_size, hidden_size, hidden_size),
                           jnp.float32) * 0.1
    b2 = jax.random.normal(k_b2, (hidden_size,), jnp.float32) * 0.1
    # Dense weights stored as (in, out) == torch weight.T.
    wd1 = jax.random.normal(k_d1w, (linear_size, linear_size), jnp.float32) * 0.1
    bd1 = jax.random.normal(k_d1b, (linear_size,), jnp.float32) * 0.1
    wd2 = jax.random.normal(k_d2w, (linear_size, num_classes), jnp.float32) * 0.1
    bd2 = jax.random.normal(k_d2b, (num_classes,), jnp.float32) * 0.1

    # Inputs: x = {'sentence1', 'length1', 'sentence2', 'length2'}.
    tokens1 = jax.random.randint(k_t1, (B, S), 0, vocab_size, jnp.int32)
    tokens2 = jax.random.randint(k_t2, (B, S), 0, vocab_size, jnp.int32)
    lengths1 = jnp.full((B,), S, jnp.int32)
    lengths2 = jnp.full((B,), S, jnp.int32)

    out = inference_forward(tokens1, lengths1, tokens2, lengths2,
                            emb_w, w1, b1, w2, b2, wd1, bd1, wd2, bd2,
                            ksize=kernel_size, batch_tile=32)
    out = jax.block_until_ready(out)

    ref = reference_forward(tokens1, tokens2, emb_w, w1, b1, w2, b2,
                            wd1, bd1, wd2, bd2, ksize=kernel_size)
    assert out.shape == (B, num_classes), out.shape
    # bf16 MXU operands (f32 accumulation) vs. the pure-f32 reference.
    max_err = float(jnp.max(jnp.abs(out - ref)))
    assert jnp.allclose(out, ref, atol=2e-2, rtol=2e-2), max_err

    print("KERNEL_OK")
</pallas_src>

<mosaic_0001>
module attributes {stable_mosaic.version = 11 : i64} {
  func.func @inference_kernel(%arg0: i32, %arg1: memref<512x1xi32, #tpu.memory_space<vmem>>, %arg2: memref<20x16xbf16, #tpu.memory_space<vmem>>, %arg3: memref<3x16x32xbf16, #tpu.memory_space<vmem>>, %arg4: memref<1x32xf32, #tpu.memory_space<vmem>>, %arg5: memref<3x32x32xbf16, #tpu.memory_space<vmem>>, %arg6: memref<1x32xf32, #tpu.memory_space<vmem>>, %arg7: memref<64x64xbf16, #tpu.memory_space<vmem>>, %arg8: memref<1x64xf32, #tpu.memory_space<vmem>>, %arg9: memref<64x3xbf16, #tpu.memory_space<vmem>>, %arg10: memref<1x3xf32, #tpu.memory_space<vmem>>, %arg11: memref<32x3xf32, #tpu.memory_space<vmem>>) attributes {dimension_semantics = [#tpu.dimension_semantics<parallel>], iteration_bounds = array<i64: 2>, scalar_prefetch = 0 : i64, scratch_operands = 0 : i64, tpu.core_type = #tpu.core_type<tc>, window_params = [{transform_indices = @transform_0, window_bounds = array<i64: 512, 1>}, {pipeline_mode = #tpu.pipeline_mode<synchronous>, transform_indices = @transform_1, window_bounds = array<i64: 20, 16>}, {pipeline_mode = #tpu.pipeline_mode<synchronous>, transform_indices = @transform_2, window_bounds = array<i64: 3, 16, 32>}, {pipeline_mode = #tpu.pipeline_mode<synchronous>, transform_indices = @transform_3, window_bounds = array<i64: 1, 32>}, {pipeline_mode = #tpu.pipeline_mode<synchronous>, transform_indices = @transform_4, window_bounds = array<i64: 3, 32, 32>}, {pipeline_mode = #tpu.pipeline_mode<synchronous>, transform_indices = @transform_5, window_bounds = array<i64: 1, 32>}, {pipeline_mode = #tpu.pipeline_mode<synchronous>, transform_indices = @transform_6, window_bounds = array<i64: 64, 64>}, {pipeline_mode = #tpu.pipeline_mode<synchronous>, transform_indices = @transform_7, window_bounds = array<i64: 1, 64>}, {pipeline_mode = #tpu.pipeline_mode<synchronous>, transform_indices = @transform_8, window_bounds = array<i64: 64, 3>}, {pipeline_mode = #tpu.pipeline_mode<synchronous>, transform_indices = @transform_9, window_bounds = array<i64: 1, 3>}, {transform_indices = @transform_10, window_bounds = array<i64: 32, 3>}]} {
    %c0 = arith.constant 0 : index
    %c0_0 = arith.constant 0 : index
    %0 = vector.load %arg1[%c0, %c0_0] : memref<512x1xi32, #tpu.memory_space<vmem>>, vector<512x1xi32>
    %1 = tpu.iota {dimensions = array<i32: 1>} : vector<512x20xi32>
    %2 = vector.broadcast %0 : vector<512x1xi32> to vector<512x20xi32>
    %3 = arith.cmpi eq, %1, %2 : vector<512x20xi32>
    %4 = arith.extui %3 : vector<512x20xi1> to vector<512x20xi32>
    %5 = arith.sitofp %4 : vector<512x20xi32> to vector<512x20xf32>
    %6 = arith.truncf %5 : vector<512x20xf32> to vector<512x20xbf16>
    %c0_1 = arith.constant 0 : index
    %c0_2 = arith.constant 0 : index
    %7 = vector.load %arg2[%c0_1, %c0_2] : memref<20x16xbf16, #tpu.memory_space<vmem>>, vector<20x16xbf16>
    %cst = arith.constant dense<0.000000e+00> : vector<512x16xf32>
    %8 = tpu.matmul %6, %7, %cst {dimension_numbers = #tpu.dot_dimension_numbers<[1], [0], [0], [1], [0, 0, 1, 1], [], []>} : vector<512x20xbf16>, vector<20x16xbf16>, vector<512x16xf32> -> vector<512x16xf32>
    %9 = vector.shape_cast %8 : vector<512x16xf32> to vector<64x8x16xf32>
    %10 = arith.truncf %9 : vector<64x8x16xf32> to vector<64x8x16xbf16>
    %cst_3 = arith.constant 0.000000e+00 : f32
    %11 = vector.broadcast %cst_3 : f32 to vector<512x32xf32>
    %cst_4 = arith.constant 0.000000e+00 : bf16
    %12 = vector.broadcast %cst_4 : bf16 to vector<64x1x16xbf16>
    %13 = vector.extract_strided_slice %10 {offsets = [0, 0, 0], sizes = [64, 7, 16], strides = [1, 1, 1]} : vector<64x8x16xbf16> to vector<64x7x16xbf16>
    %14 = tpu.concatenate %12, %13 in 1 : vector<64x1x16xbf16>, vector<64x7x16xbf16> -> vector<64x8x16xbf16>
    %15 = vector.shape_cast %14 : vector<64x8x16xbf16> to vector<512x16xbf16>
    %c0_5 = arith.constant 0 : index
    %c0_6 = arith.constant 0 : index
    %c0_7 = arith.constant 0 : index
    %16 = vector.load %arg3[%c0_5, %c0_6, %c0_7] : memref<3x16x32xbf16, #tpu.memory_space<vmem>>, vector<1x16x32xbf16>
    %17 = vector.shape_cast %16 : vector<1x16x32xbf16> to vector<16x32xbf16>
    %cst_8 = arith.constant dense<0.000000e+00> : vector<512x32xf32>
    %18 = tpu.matmul %15, %17, %cst_8 {dimension_numbers = #tpu.dot_dimension_numbers<[1], [0], [0], [1], [0, 0, 1, 1], [], []>} : vector<512x16xbf16>, vector<16x32xbf16>, vector<512x32xf32> -> vector<512x32xf32>
    %19 = arith.addf %11, %18 : vector<512x32xf32>
    %20 = vector.shape_cast %10 : vector<64x8x16xbf16> to vector<512x16xbf16>
    %c1 = arith.constant 1 : index
    %c0_9 = arith.constant 0 : index
    %c0_10 = arith.constant 0 : index
    %21 = vector.load %arg3[%c1, %c0_9, %c0_10] : memref<3x16x32xbf16, #tpu.memory_space<vmem>>, vector<1x16x32xbf16>
    %22 = vector.shape_cast %21 : vector<1x16x32xbf16> to vector<16x32xbf16>
    %cst_11 = arith.constant dense<0.000000e+00> : vector<512x32xf32>
    %23 = tpu.matmul %20, %22, %cst_11 {dimension_numbers = #tpu.dot_dimension_numbers<[1], [0], [0], [1], [0, 0, 1, 1], [], []>} : vector<512x16xbf16>, vector<16x32xbf16>, vector<512x32xf32> -> vector<512x32xf32>
    %24 = arith.addf %19, %23 : vector<512x32xf32>
    %cst_12 = arith.constant 0.000000e+00 : bf16
    %25 = vector.broadcast %cst_12 : bf16 to vector<64x1x16xbf16>
    %26 = vector.extract_strided_slice %10 {offsets = [0, 1, 0], sizes = [64, 7, 16], strides = [1, 1, 1]} : vector<64x8x16xbf16> to vector<64x7x16xbf16>
    %27 = tpu.concatenate %26, %25 in 1 : vector<64x7x16xbf16>, vector<64x1x16xbf16> -> vector<64x8x16xbf16>
    %28 = vector.shape_cast %27 : vector<64x8x16xbf16> to vector<512x16xbf16>
    %c2 = arith.constant 2 : index
    %c0_13 = arith.constant 0 : index
    %c0_14 = arith.constant 0 : index
    %29 = vector.load %arg3[%c2, %c0_13, %c0_14] : memref<3x16x32xbf16, #tpu.memory_space<vmem>>, vector<1x16x32xbf16>
    %30 = vector.shape_cast %29 : vector<1x16x32xbf16> to vector<16x32xbf16>
    %cst_15 = arith.constant dense<0.000000e+00> : vector<512x32xf32>
    %31 = tpu.matmul %28, %30, %cst_15 {dimension_numbers = #tpu.dot_dimension_numbers<[1], [0], [0], [1], [0, 0, 1, 1], [], []>} : vector<512x16xbf16>, vector<16x32xbf16>, vector<512x32xf32> -> vector<512x32xf32>
    %32 = arith.addf %24, %31 : vector<512x32xf32>
    %c0_16 = arith.constant 0 : index
    %c0_17 = arith.constant 0 : index
    %33 = vector.load %arg4[%c0_16, %c0_17] : memref<1x32xf32, #tpu.memory_space<vmem>>, vector<1x32xf32>
    %34 = vector.broadcast %33 : vector<1x32xf32> to vector<512x32xf32>
    %35 = arith.addf %32, %34 : vector<512x32xf32>
    %cst_18 = arith.constant 0.000000e+00 : f32
    %36 = vector.broadcast %cst_18 : f32 to vector<512x32xf32>
    %37 = arith.maximumf %35, %36 : vector<512x32xf32>
    %38 = vector.shape_cast %37 : vector<512x32xf32> to vector<64x8x32xf32>
    %39 = arith.truncf %38 : vector<64x8x32xf32> to vector<64x8x32xbf16>
    %cst_19 = arith.constant 0.000000e+00 : f32
    %40 = vector.broadcast %cst_19 : f32 to vector<512x32xf32>
    %cst_20 = arith.constant 0.000000e+00 : bf16
    %41 = vector.broadcast %cst_20 : bf16 to vector<64x1x32xbf16>
    %42 = vector.extract_strided_slice %39 {offsets = [0, 0, 0], sizes = [64, 7, 32], strides = [1, 1, 1]} : vector<64x8x32xbf16> to vector<64x7x32xbf16>
    %43 = tpu.concatenate %41, %42 in 1 : vector<64x1x32xbf16>, vector<64x7x32xbf16> -> vector<64x8x32xbf16>
    %44 = vector.shape_cast %43 : vector<64x8x32xbf16> to vector<512x32xbf16>
    %c0_21 = arith.constant 0 : index
    %c0_22 = arith.constant 0 : index
    %c0_23 = arith.constant 0 : index
    %45 = vector.load %arg5[%c0_21, %c0_22, %c0_23] : memref<3x32x32xbf16, #tpu.memory_space<vmem>>, vector<1x32x32xbf16>
    %46 = vector.shape_cast %45 : vector<1x32x32xbf16> to vector<32x32xbf16>
    %cst_24 = arith.constant dense<0.000000e+00> : vector<512x32xf32>
    %47 = tpu.matmul %44, %46, %cst_24 {dimension_numbers = #tpu.dot_dimension_numbers<[1], [0], [0], [1], [0, 0, 1, 1], [], []>} : vector<512x32xbf16>, vector<32x32xbf16>, vector<512x32xf32> -> vector<512x32xf32>
    %48 = arith.addf %40, %47 : vector<512x32xf32>
    %49 = vector.shape_cast %39 : vector<64x8x32xbf16> to vector<512x32xbf16>
    %c1_25 = arith.constant 1 : index
    %c0_26 = arith.constant 0 : index
    %c0_27 = arith.constant 0 : index
    %50 = vector.load %arg5[%c1_25, %c0_26, %c0_27] : memref<3x32x32xbf16, #tpu.memory_space<vmem>>, vector<1x32x32xbf16>
    %51 = vector.shape_cast %50 : vector<1x32x32xbf16> to vector<32x32xbf16>
    %cst_28 = arith.constant dense<0.000000e+00> : vector<512x32xf32>
    %52 = tpu.matmul %49, %51, %cst_28 {dimension_numbers = #tpu.dot_dimension_numbers<[1], [0], [0], [1], [0, 0, 1, 1], [], []>} : vector<512x32xbf16>, vector<32x32xbf16>, vector<512x32xf32> -> vector<512x32xf32>
    %53 = arith.addf %48, %52 : vector<512x32xf32>
    %cst_29 = arith.constant 0.000000e+00 : bf16
    %54 = vector.broadcast %cst_29 : bf16 to vector<64x1x32xbf16>
    %55 = vector.extract_strided_slice %39 {offsets = [0, 1, 0], sizes = [64, 7, 32], strides = [1, 1, 1]} : vector<64x8x32xbf16> to vector<64x7x32xbf16>
    %56 = tpu.concatenate %55, %54 in 1 : vector<64x7x32xbf16>, vector<64x1x32xbf16> -> vector<64x8x32xbf16>
    %57 = vector.shape_cast %56 : vector<64x8x32xbf16> to vector<512x32xbf16>
    %c2_30 = arith.constant 2 : index
    %c0_31 = arith.constant 0 : index
    %c0_32 = arith.constant 0 : index
    %58 = vector.load %arg5[%c2_30, %c0_31, %c0_32] : memref<3x32x32xbf16, #tpu.memory_space<vmem>>, vector<1x32x32xbf16>
    %59 = vector.shape_cast %58 : vector<1x32x32xbf16> to vector<32x32xbf16>
    %cst_33 = arith.constant dense<0.000000e+00> : vector<512x32xf32>
    %60 = tpu.matmul %57, %59, %cst_33 {dimension_numbers = #tpu.dot_dimension_numbers<[1], [0], [0], [1], [0, 0, 1, 1], [], []>} : vector<512x32xbf16>, vector<32x32xbf16>, vector<512x32xf32> -> vector<512x32xf32>
    %61 = arith.addf %53, %60 : vector<512x32xf32>
    %c0_34 = arith.constant 0 : index
    %c0_35 = arith.constant 0 : index
    %62 = vector.load %arg6[%c0_34, %c0_35] : memref<1x32xf32, #tpu.memory_space<vmem>>, vector<1x32xf32>
    %63 = vector.broadcast %62 : vector<1x32xf32> to vector<512x32xf32>
    %64 = arith.addf %61, %63 : vector<512x32xf32>
    %cst_36 = arith.constant 0.000000e+00 : f32
    %65 = vector.broadcast %cst_36 : f32 to vector<512x32xf32>
    %66 = arith.maximumf %64, %65 : vector<512x32xf32>
    %67 = vector.shape_cast %66 : vector<512x32xf32> to vector<64x8x32xf32>
    %cst_37 = arith.constant dense<0xFF800000> : vector<64x32xf32>
    %68 = vector.multi_reduction <maximumf>, %67, %cst_37 [1] : vector<64x8x32xf32> to vector<64x32xf32>
    %69 = vector.extract_strided_slice %68 {offsets = [0, 0], sizes = [32, 32], strides = [1, 1]} : vector<64x32xf32> to vector<32x32xf32>
    %70 = vector.extract_strided_slice %68 {offsets = [32, 0], sizes = [32, 32], strides = [1, 1]} : vector<64x32xf32> to vector<32x32xf32>
    %71 = tpu.concatenate %69, %70 in 1 : vector<32x32xf32>, vector<32x32xf32> -> vector<32x64xf32>
    %72 = arith.truncf %71 : vector<32x64xf32> to vector<32x64xbf16>
    %c0_38 = arith.constant 0 : index
    %c0_39 = arith.constant 0 : index
    %73 = vector.load %arg7[%c0_38, %c0_39] : memref<64x64xbf16, #tpu.memory_space<vmem>>, vector<64x64xbf16>
    %cst_40 = arith.constant dense<0.000000e+00> : vector<32x64xf32>
    %74 = tpu.matmul %72, %73, %cst_40 {dimension_numbers = #tpu.dot_dimension_numbers<[1], [0], [0], [1], [0, 0, 1, 1], [], []>} : vector<32x64xbf16>, vector<64x64xbf16>, vector<32x64xf32> -> vector<32x64xf32>
    %c0_41 = arith.constant 0 : index
    %c0_42 = arith.constant 0 : index
    %75 = vector.load %arg8[%c0_41, %c0_42] : memref<1x64xf32, #tpu.memory_space<vmem>>, vector<1x64xf32>
    %76 = vector.broadcast %75 : vector<1x64xf32> to vector<32x64xf32>
    %77 = arith.addf %74, %76 : vector<32x64xf32>
    %cst_43 = arith.constant 0.000000e+00 : f32
    %78 = vector.broadcast %cst_43 : f32 to vector<32x64xf32>
    %79 = arith.maximumf %77, %78 : vector<32x64xf32>
    %80 = arith.truncf %79 : vector<32x64xf32> to vector<32x64xbf16>
    %c0_44 = arith.constant 0 : index
    %c0_45 = arith.constant 0 : index
    %81 = vector.load %arg9[%c0_44, %c0_45] : memref<64x3xbf16, #tpu.memory_space<vmem>>, vector<64x3xbf16>
    %cst_46 = arith.constant dense<0.000000e+00> : vector<32x3xf32>
    %82 = tpu.matmul %80, %81, %cst_46 {dimension_numbers = #tpu.dot_dimension_numbers<[1], [0], [0], [1], [0, 0, 1, 1], [], []>} : vector<32x64xbf16>, vector<64x3xbf16>, vector<32x3xf32> -> vector<32x3xf32>
    %c0_47 = arith.constant 0 : index
    %c0_48 = arith.constant 0 : index
    %83 = vector.load %arg10[%c0_47, %c0_48] : memref<1x3xf32, #tpu.memory_space<vmem>>, vector<1x3xf32>
    %84 = vector.broadcast %83 : vector<1x3xf32> to vector<32x3xf32>
    %85 = arith.addf %82, %84 : vector<32x3xf32>
    %c0_49 = arith.constant 0 : index
    %c0_50 = arith.constant 0 : index
    %86 = vector.load %arg11[%c0_49, %c0_50] : memref<32x3xf32, #tpu.memory_space<vmem>>, vector<32x3xf32>
    tpu.vector_store %arg11[%c0_49, %c0_50], %85 {strides = array<i32>} : memref<32x3xf32, #tpu.memory_space<vmem>>, vector<32x3xf32>,
    return
  }
  func.func @transform_0(%arg0: i32) -> (i32, i32) {
    %c0_i32 = arith.constant 0 : i32
    %c0_i32_0 = arith.constant 0 : i32
    return %arg0, %c0_i32 : i32, i32
  }
  func.func @transform_1(%arg0: i32) -> (i32, i32) {
    %c0_i32 = arith.constant 0 : i32
    %c0_i32_0 = arith.constant 0 : i32
    %c0_i32_1 = arith.constant 0 : i32
    return %c0_i32, %c0_i32_0 : i32, i32
  }
  func.func @transform_2(%arg0: i32) -> (i32, i32, i32) {
    %c0_i32 = arith.constant 0 : i32
    %c0_i32_0 = arith.constant 0 : i32
    %c0_i32_1 = arith.constant 0 : i32
    %c0_i32_2 = arith.constant 0 : i32
    return %c0_i32, %c0_i32_0, %c0_i32_1 : i32, i32, i32
  }
  func.func @transform_3(%arg0: i32) -> (i32, i32) {
    %c0_i32 = arith.constant 0 : i32
    %c0_i32_0 = arith.constant 0 : i32
    %c0_i32_1 = arith.constant 0 : i32
    return %c0_i32, %c0_i32_0 : i32, i32
  }
  func.func @transform_4(%arg0: i32) -> (i32, i32, i32) {
    %c0_i32 = arith.constant 0 : i32
    %c0_i32_0 = arith.constant 0 : i32
    %c0_i32_1 = arith.constant 0 : i32
    %c0_i32_2 = arith.constant 0 : i32
    return %c0_i32, %c0_i32_0, %c0_i32_1 : i32, i32, i32
  }
  func.func @transform_5(%arg0: i32) -> (i32, i32) {
    %c0_i32 = arith.constant 0 : i32
    %c0_i32_0 = arith.constant 0 : i32
    %c0_i32_1 = arith.constant 0 : i32
    return %c0_i32, %c0_i32_0 : i32, i32
  }
  func.func @transform_6(%arg0: i32) -> (i32, i32) {
    %c0_i32 = arith.constant 0 : i32
    %c0_i32_0 = arith.constant 0 : i32
    %c0_i32_1 = arith.constant 0 : i32
    return %c0_i32, %c0_i32_0 : i32, i32
  }
  func.func @transform_7(%arg0: i32) -> (i32, i32) {
    %c0_i32 = arith.constant 0 : i32
    %c0_i32_0 = arith.constant 0 : i32
    %c0_i32_1 = arith.constant 0 : i32
    return %c0_i32, %c0_i32_0 : i32, i32
  }
  func.func @transform_8(%arg0: i32) -> (i32, i32) {
    %c0_i32 = arith.constant 0 : i32
    %c0_i32_0 = arith.constant 0 : i32
    %c0_i32_1 = arith.constant 0 : i32
    return %c0_i32, %c0_i32_0 : i32, i32
  }
  func.func @transform_9(%arg0: i32) -> (i32, i32) {
    %c0_i32 = arith.constant 0 : i32
    %c0_i32_0 = arith.constant 0 : i32
    %c0_i32_1 = arith.constant 0 : i32
    return %c0_i32, %c0_i32_0 : i32, i32
  }
  func.func @transform_10(%arg0: i32) -> (i32, i32) {
    %c0_i32 = arith.constant 0 : i32
    %c0_i32_0 = arith.constant 0 : i32
    return %arg0, %c0_i32 : i32, i32
  }
}

</mosaic_0001>

<llo_original>
// kernel: tpu_custom_call.1
$region0: #{tpu_custom_call.1}
  #allocation0 [shape = 'u32[]', space=smem, size = 0x4, offset = 0x4, fixed_abs, tag = 'smem constant byte address 0x4 - core index']
  #allocation1 [shape = 'u32[144,128]{1,0:T(1,128)}', space=vmem, size = 0x12000, scoped, tag = 'internal scratch']
  %s0 = inlined_call_operand.vmem [shape: s32[1024,1], index: 0, kind: input, shape index: {}]
  %s1 = inlined_call_operand.vmem [shape: bf16[20,16], index: 1, kind: input, shape index: {}]
  %s2 = inlined_call_operand.vmem [shape: bf16[3,16,32], index: 2, kind: input, shape index: {}]
  %s3 = inlined_call_operand.vmem [shape: f32[1,32], index: 3, kind: input, shape index: {}]
  %s4 = inlined_call_operand.vmem [shape: bf16[3,32,32], index: 4, kind: input, shape index: {}]
  %s5 = inlined_call_operand.vmem [shape: f32[1,32], index: 5, kind: input, shape index: {}]
  %s6 = inlined_call_operand.vmem [shape: bf16[64,64], index: 6, kind: input, shape index: {}]
  %s7 = inlined_call_operand.vmem [shape: f32[1,64], index: 7, kind: input, shape index: {}]
  %s8 = inlined_call_operand.vmem [shape: bf16[64,3], index: 8, kind: input, shape index: {}]
  %s9 = inlined_call_operand.vmem [shape: f32[1,3], index: 9, kind: input, shape index: {}]
  %s10 = inlined_call_operand.vmem [shape: f32[64,3], index: 10, kind: output, shape index: {}]
  %s11 = sld [smem:[#allocation0]]
  $region73: #{tpu_custom_call.1} parent=0
    _
  %s13 = ssub.s32 1, %s11
  %s14 = scalar_select 0, %s13, %s11
  loop: start=0, step=1, limit=4
  $region2: #{tpu_custom_call.1} parent=0 // loop_pre_header
    _
  $region3: #{tpu_custom_call.1} parent=0 // loop_header
    %s16 = sphi 0, %s20
    %p17 = scmp.ge.s32.totalorder %s16, 4
    %s26 = sphi 0, %s28
    %s29 = sphi 0, %s26
    %s30 = sphi 0, %s29
    %s46 = sphi 0, %s30
    %s50 = sphi 0, %s50
    %s52 = sphi 0, %s50
    %s53 = sphi 0, %s52
    %s67 = sphi 0, %s53
    %s71 = sphi 0, %s71
    %s73 = sphi 0, %s71
    %s74 = sphi 0, %s73
    %s88 = sphi 0, %s74
    %s92 = sphi 0, %s92
    %s94 = sphi 0, %s92
    %s95 = sphi 0, %s94
    %s109 = sphi 0, %s95
    %s113 = sphi 0, %s113
    %s115 = sphi 0, %s113
    %s116 = sphi 0, %s115
    %s130 = sphi 0, %s116
    %s134 = sphi 0, %s134
    %s136 = sphi 0, %s134
    %s137 = sphi 0, %s136
    %s151 = sphi 0, %s137
    %s155 = sphi 0, %s155
    %s157 = sphi 0, %s155
    %s158 = sphi 0, %s157
    %s172 = sphi 0, %s158
    %s176 = sphi 0, %s176
    %s178 = sphi 0, %s176
    %s179 = sphi 0, %s178
    %s193 = sphi 0, %s179
    %s197 = sphi 0, %s197
    %s199 = sphi 0, %s197
    %s200 = sphi 0, %s199
    %s214 = sphi 0, %s200
    %s218 = sphi 0, %s218
    %s220 = sphi 0, %s218
    %s221 = sphi 0, %s220
    %s235 = sphi 0, %s221
    %s241 = sphi 0, %s243
    %s244 = sphi 0, %s241
    %s245 = sphi 0, %s244
    %s261 = sphi 0, %s245
  $region4: #{tpu_custom_call.1} parent=0 // loop_header_branch
    %19 = sbr.rel (%p17) target = $region8
  $region5: #{tpu_custom_call.1} parent=0 // loop_body
    %s21 = ssub.s32 %s16, 1
    %s22 = ssub.s32 %s16, 2
    %s23 = sadd.s32 %s16, 1
    %s24 = ssub.s32 %s16, %s23
    %p25 = scmp.eq.s32.totalorder %s24, 0
    %s27 = sadd.s32 %s26, 1
    %s28 = scalar_select %p25, %s26, %s27
    %p31 = pneg %p25
    %p32 = scmp.eq.s32.totalorder %s16, 1
    %p33 = por %p31, %p32
    %p34 = scmp.ne.s32.totalorder %s26, %s29
    %p35 = scmp.eq.s32.totalorder %s16, 0
    %p36 = por %p34, %p35
    %p37 = scmp.ne.s32.totalorder %s26, %s29
    %p38 = scmp.eq.s32.totalorder %s21, 1
    %p39 = por %p37, %p38
    %p40 = scmp.ne.s32.totalorder %s29, %s30
    %p41 = scmp.eq.s32.totalorder %s21, 0
    %p42 = por %p40, %p41
    %p43 = scmp.ne.s32.totalorder %s29, %s30
    %p44 = scmp.eq.s32.totalorder %s22, 1
    %p45 = por %p43, %p44
    %p47 = scmp.ne.s32.totalorder %s30, %s46
    %p48 = scmp.eq.s32.totalorder %s22, 0
    %p49 = por %p47, %p48
    %s51 = sadd.s32 %s50, 1
    %p54 = scmp.eq.s32.totalorder %s16, 1
    %p55 = scmp.ne.s32.totalorder %s50, %s52
    %p56 = scmp.eq.s32.totalorder %s16, 0
    %p57 = por %p55, %p56
    %p58 = scmp.ne.s32.totalorder %s50, %s52
    %p59 = scmp.eq.s32.totalorder %s21, 1
    %p60 = por %p58, %p59
    %p61 = scmp.ne.s32.totalorder %s52, %s53
    %p62 = scmp.eq.s32.totalorder %s21, 0
    %p63 = por %p61, %p62
    %p64 = scmp.ne.s32.totalorder %s52, %s53
    %p65 = scmp.eq.s32.totalorder %s22, 1
    %p66 = por %p64, %p65
    %p68 = scmp.ne.s32.totalorder %s53, %s67
    %p69 = scmp.eq.s32.totalorder %s22, 0
    %p70 = por %p68, %p69
    %s72 = sadd.s32 %s71, 1
    %p75 = scmp.eq.s32.totalorder %s16, 1
    %p76 = scmp.ne.s32.totalorder %s71, %s73
    %p77 = scmp.eq.s32.totalorder %s16, 0
    %p78 = por %p76, %p77
    %p79 = scmp.ne.s32.totalorder %s71, %s73
    %p80 = scmp.eq.s32.totalorder %s21, 1
    %p81 = por %p79, %p80
    %p82 = scmp.ne.s32.totalorder %s73, %s74
    %p83 = scmp.eq.s32.totalorder %s21, 0
    %p84 = por %p82, %p83
    %p85 = scmp.ne.s32.totalorder %s73, %s74
    %p86 = scmp.eq.s32.totalorder %s22, 1
    %p87 = por %p85, %p86
    %p89 = scmp.ne.s32.totalorder %s74, %s88
    %p90 = scmp.eq.s32.totalorder %s22, 0
    %p91 = por %p89, %p90
    %s93 = sadd.s32 %s92, 1
    %p96 = scmp.eq.s32.totalorder %s16, 1
    %p97 = scmp.ne.s32.totalorder %s92, %s94
    %p98 = scmp.eq.s32.totalorder %s16, 0
    %p99 = por %p97, %p98
    %p100 = scmp.ne.s32.totalorder %s92, %s94
    %p101 = scmp.eq.s32.totalorder %s21, 1
    %p102 = por %p100, %p101
    %p103 = scmp.ne.s32.totalorder %s94, %s95
    %p104 = scmp.eq.s32.totalorder %s21, 0
    %p105 = por %p103, %p104
    %p106 = scmp.ne.s32.totalorder %s94, %s95
    %p107 = scmp.eq.s32.totalorder %s22, 1
    %p108 = por %p106, %p107
    %p110 = scmp.ne.s32.totalorder %s95, %s109
    %p111 = scmp.eq.s32.totalorder %s22, 0
    %p112 = por %p110, %p111
    %s114 = sadd.s32 %s113, 1
    %p117 = scmp.eq.s32.totalorder %s16, 1
    %p118 = scmp.ne.s32.totalorder %s113, %s115
    %p119 = scmp.eq.s32.totalorder %s16, 0
    %p120 = por %p118, %p119
    %p121 = scmp.ne.s32.totalorder %s113, %s115
    %p122 = scmp.eq.s32.totalorder %s21, 1
    %p123 = por %p121, %p122
    %p124 = scmp.ne.s32.totalorder %s115, %s116
    %p125 = scmp.eq.s32.totalorder %s21, 0
    %p126 = por %p124, %p125
    %p127 = scmp.ne.s32.totalorder %s115, %s116
    %p128 = scmp.eq.s32.totalorder %s22, 1
    %p129 = por %p127, %p128
    %p131 = scmp.ne.s32.totalorder %s116, %s130
    %p132 = scmp.eq.s32.totalorder %s22, 0
    %p133 = por %p131, %p132
    %s135 = sadd.s32 %s134, 1
    %p138 = scmp.eq.s32.totalorder %s16, 1
    %p139 = scmp.ne.s32.totalorder %s134, %s136
    %p140 = scmp.eq.s32.totalorder %s16, 0
    %p141 = por %p139, %p140
    %p142 = scmp.ne.s32.totalorder %s134, %s136
    %p143 = scmp.eq.s32.totalorder %s21, 1
    %p144 = por %p142, %p143
    %p145 = scmp.ne.s32.totalorder %s136, %s137
    %p146 = scmp.eq.s32.totalorder %s21, 0
    %p147 = por %p145, %p146
    %p148 = scmp.ne.s32.totalorder %s136, %s137
    %p149 = scmp.eq.s32.totalorder %s22, 1
    %p150 = por %p148, %p149
    %p152 = scmp.ne.s32.totalorder %s137, %s151
    %p153 = scmp.eq.s32.totalorder %s22, 0
    %p154 = por %p152, %p153
    %s156 = sadd.s32 %s155, 1
    %p159 = scmp.eq.s32.totalorder %s16, 1
    %p160 = scmp.ne.s32.totalorder %s155, %s157
    %p161 = scmp.eq.s32.totalorder %s16, 0
    %p162 = por %p160, %p161
    %p163 = scmp.ne.s32.totalorder %s155, %s157
    %p164 = scmp.eq.s32.totalorder %s21, 1
    %p165 = por %p163, %p164
    %p166 = scmp.ne.s32.totalorder %s157, %s158
    %p167 = scmp.eq.s32.totalorder %s21, 0
    %p168 = por %p166, %p167
    %p169 = scmp.ne.s32.totalorder %s157, %s158
    %p170 = scmp.eq.s32.totalorder %s22, 1
    %p171 = por %p169, %p170
    %p173 = scmp.ne.s32.totalorder %s158, %s172
    %p174 = scmp.eq.s32.totalorder %s22, 0
    %p175 = por %p173, %p174
    %s177 = sadd.s32 %s176, 1
    %p180 = scmp.eq.s32.totalorder %s16, 1
    %p181 = scmp.ne.s32.totalorder %s176, %s178
    %p182 = scmp.eq.s32.totalorder %s16, 0
    %p183 = por %p181, %p182
    %p184 = scmp.ne.s32.totalorder %s176, %s178
    %p185 = scmp.eq.s32.totalorder %s21, 1
    %p186 = por %p184, %p185
    %p187 = scmp.ne.s32.totalorder %s178, %s179
    %p188 = scmp.eq.s32.totalorder %s21, 0
    %p189 = por %p187, %p188
    %p190 = scmp.ne.s32.totalorder %s178, %s179
    %p191 = scmp.eq.s32.totalorder %s22, 1
    %p192 = por %p190, %p191
    %p194 = scmp.ne.s32.totalorder %s179, %s193
    %p195 = scmp.eq.s32.totalorder %s22, 0
    %p196 = por %p194, %p195
    %s198 = sadd.s32 %s197, 1
    %p201 = scmp.eq.s32.totalorder %s16, 1
    %p202 = scmp.ne.s32.totalorder %s197, %s199
    %p203 = scmp.eq.s32.totalorder %s16, 0
    %p204 = por %p202, %p203
    %p205 = scmp.ne.s32.totalorder %s197, %s199
    %p206 = scmp.eq.s32.totalorder %s21, 1
    %p207 = por %p205, %p206
    %p208 = scmp.ne.s32.totalorder %s199, %s200
    %p209 = scmp.eq.s32.totalorder %s21, 0
    %p210 = por %p208, %p209
    %p211 = scmp.ne.s32.totalorder %s199, %s200
    %p212 = scmp.eq.s32.totalorder %s22, 1
    %p213 = por %p211, %p212
    %p215 = scmp.ne.s32.totalorder %s200, %s214
    %p216 = scmp.eq.s32.totalorder %s22, 0
    %p217 = por %p215, %p216
    %s219 = sadd.s32 %s218, 1
    %p222 = scmp.eq.s32.totalorder %s16, 1
    %p223 = scmp.ne.s32.totalorder %s218, %s220
    %p224 = scmp.eq.s32.totalorder %s16, 0
    %p225 = por %p223, %p224
    %p226 = scmp.ne.s32.totalorder %s218, %s220
    %p227 = scmp.eq.s32.totalorder %s21, 1
    %p228 = por %p226, %p227
    %p229 = scmp.ne.s32.totalorder %s220, %s221
    %p230 = scmp.eq.s32.totalorder %s21, 0
    %p231 = por %p229, %p230
    %p232 = scmp.ne.s32.totalorder %s220, %s221
    %p233 = scmp.eq.s32.totalorder %s22, 1
    %p234 = por %p232, %p233
    %p236 = scmp.ne.s32.totalorder %s221, %s235
    %p237 = scmp.eq.s32.totalorder %s22, 0
    %p238 = por %p236, %p237
    %s239 = ssub.s32 %s16, %s23
    %p240 = scmp.eq.s32.totalorder %s239, 0
    %s242 = sadd.s32 %s241, 1
    %s243 = scalar_select %p240, %s241, %s242
    %p246 = pneg %p240
    %p247 = scmp.eq.s32.totalorder %s16, 1
    %p248 = por %p246, %p247
    %p249 = scmp.ne.s32.totalorder %s241, %s244
    %p250 = scmp.eq.s32.totalorder %s16, 0
    %p251 = por %p249, %p250
    %p252 = scmp.ne.s32.totalorder %s241, %s244
    %p253 = scmp.eq.s32.totalorder %s21, 1
    %p254 = por %p252, %p253
    %p255 = scmp.ne.s32.totalorder %s244, %s245
    %p256 = scmp.eq.s32.totalorder %s21, 0
    %p257 = por %p255, %p256
    %p258 = scmp.ne.s32.totalorder %s244, %s245
    %p259 = scmp.eq.s32.totalorder %s22, 1
    %p260 = por %p258, %p259
    %p262 = scmp.ne.s32.totalorder %s245, %s261
    %p263 = scmp.eq.s32.totalorder %s22, 0
    %p264 = por %p262, %p263
    %p265 = scmp.le.s32.totalorder 1, %s16
    %p266 = scmp.lt.s32.totalorder %s16, 3
    %p267 = pnand %p265, %p266
    %p268 = pneg %p267
    // Predicated region
    $region9: #{tpu_custom_call.1} parent=5 // pred_check
      _
    $region10: #{tpu_custom_call.1} parent=5 // pred_check_branch
      %270 = sbr.rel (%p267) target = $region12
    $region11: #{tpu_custom_call.1} parent=5 // pred_region
      %s271 = ssub.s32 %s16, 1
      // Predicated region
      $region13: #{tpu_custom_call.1} parent=11 // pred_check
        %p272 = pneg %p63
      $region14: #{tpu_custom_call.1} parent=11 // pred_check_branch
        %274 = sbr.rel (%p272) target = $region16
      $region15: #{tpu_custom_call.1} parent=11 // pred_region
        _
      $region16: #{tpu_custom_call.1} parent=11 // pred_fallthru
        _
      // Predicated region
      $region17: #{tpu_custom_call.1} parent=11 // pred_check
        %p275 = pneg %p84
      $region18: #{tpu_custom_call.1} parent=11 // pred_check_branch
        %277 = sbr.rel (%p275) target = $region20
      $region19: #{tpu_custom_call.1} parent=11 // pred_region
        _
      $region20: #{tpu_custom_call.1} parent=11 // pred_fallthru
        _
      // Predicated region
      $region21: #{tpu_custom_call.1} parent=11 // pred_check
        %p278 = pneg %p105
      $region22: #{tpu_custom_call.1} parent=11 // pred_check_branch
        %280 = sbr.rel (%p278) target = $region24
      $region23: #{tpu_custom_call.1} parent=11 // pred_region
        _
      $region24: #{tpu_custom_call.1} parent=11 // pred_fallthru
        _
      // Predicated region
      $region25: #{tpu_custom_call.1} parent=11 // pred_check
        %p281 = pneg %p126
      $region26: #{tpu_custom_call.1} parent=11 // pred_check_branch
        %283 = sbr.rel (%p281) target = $region28
      $region27: #{tpu_custom_call.1} parent=11 // pred_region
        _
      $region28: #{tpu_custom_call.1} parent=11 // pred_fallthru
        _
      // Predicated region
      $region29: #{tpu_custom_call.1} parent=11 // pred_check
        %p284 = pneg %p147
      $region30: #{tpu_custom_call.1} parent=11 // pred_check_branch
        %286 = sbr.rel (%p284) target = $region32
      $region31: #{tpu_custom_call.1} parent=11 // pred_region
        _
      $region32: #{tpu_custom_call.1} parent=11 // pred_fallthru
        _
      // Predicated region
      $region33: #{tpu_custom_call.1} parent=11 // pred_check
        %p287 = pneg %p168
      $region34: #{tpu_custom_call.1} parent=11 // pred_check_branch
        %289 = sbr.rel (%p287) target = $region36
      $region35: #{tpu_custom_call.1} parent=11 // pred_region
        _
      $region36: #{tpu_custom_call.1} parent=11 // pred_fallthru
        _
      // Predicated region
      $region37: #{tpu_custom_call.1} parent=11 // pred_check
        %p290 = pneg %p189
      $region38: #{tpu_custom_call.1} parent=11 // pred_check_branch
        %292 = sbr.rel (%p290) target = $region40
      $region39: #{tpu_custom_call.1} parent=11 // pred_region
        _
      $region40: #{tpu_custom_call.1} parent=11 // pred_fallthru
        _
      // Predicated region
      $region41: #{tpu_custom_call.1} parent=11 // pred_check
        %p293 = pneg %p210
      $region42: #{tpu_custom_call.1} parent=11 // pred_check_branch
        %295 = sbr.rel (%p293) target = $region44
      $region43: #{tpu_custom_call.1} parent=11 // pred_region
        _
      $region44: #{tpu_custom_call.1} parent=11 // pred_fallthru
        _
      // Predicated region
      $region45: #{tpu_custom_call.1} parent=11 // pred_check
        %p296 = pneg %p231
      $region46: #{tpu_custom_call.1} parent=11 // pred_check_branch
        %298 = sbr.rel (%p296) target = $region48
      $region47: #{tpu_custom_call.1} parent=11 // pred_region
        _
      $region48: #{tpu_custom_call.1} parent=11 // pred_fallthru
        _
    $region12: #{tpu_custom_call.1} parent=5 // pred_fallthru
      _
    %p299 = scmp.lt.s32.totalorder %s16, 2
    // Predicated region
    $region49: #{tpu_custom_call.1} parent=5 // pred_check
      %p300 = pneg %p299
    $region50: #{tpu_custom_call.1} parent=5 // pred_check_branch
      %302 = sbr.rel (%p300) target = $region52
    $region51: #{tpu_custom_call.1} parent=5 // pred_region
      // Predicated region
      $region53: #{tpu_custom_call.1} parent=51 // pred_check
        %p303 = pneg %p36
      $region54: #{tpu_custom_call.1} parent=51 // pred_check_branch
        %305 = sbr.rel (%p303) target = $region56
      $region55: #{tpu_custom_call.1} parent=51 // pred_region
        %s306 = smul.u32 64, %s16
        %p307 = scmp.lt.s32.totalorder %s306, 127
        %s308 = scalar_select %p307, %s306, 127
        %s309 = smul.addr %s308, 8
        %s310 = scalar_lea.vmem %s0, %s309
        %s311 = smul.u32 64, %s16
      $region56: #{tpu_custom_call.1} parent=51 // pred_fallthru
        _
    $region52: #{tpu_custom_call.1} parent=5 // pred_fallthru
      _
    %p312 = scmp.le.s32.totalorder 1, %s16
    %p313 = scmp.lt.s32.totalorder %s16, 3
    %p314 = pnand %p312, %p313
    %p315 = pneg %p314
    // Predicated region
    $region57: #{tpu_custom_call.1} parent=5 // pred_check
      _
    $region58: #{tpu_custom_call.1} parent=5 // pred_check_branch
      %317 = sbr.rel (%p314) target = $region60
    $region59: #{tpu_custom_call.1} parent=5 // pred_region
      %s318 = ssub.s32 %s16, 1
      %s319 = smul.u32 64, %s21
      %p320 = scmp.lt.s32.totalorder %s319, 127
      %s321 = scalar_select %p320, %s319, 127
      %s322 = smul.addr %s321, 8
      %s323 = scalar_lea.vmem %s0, %s322
      %p324 = pneg %p42
      %p325 = pneg %p39
      %p326 = pneg %p63
      %p327 = pneg %p60
      %p328 = pneg %p84
      %p329 = pneg %p81
      %p330 = pneg %p105
      %p331 = pneg %p102
      %p332 = pneg %p126
      %p333 = pneg %p123
      %p334 = pneg %p147
      %p335 = pneg %p144
      %p336 = pneg %p168
      %p337 = pneg %p165
      %p338 = pneg %p189
      %p339 = pneg %p186
      %p340 = pneg %p210
      %p341 = pneg %p207
      %p342 = pneg %p231
      %p343 = pneg %p228
      %p344 = pneg %p257
      %p345 = pneg %p254
      %s346 = smul.u32 4, %s21
      %p347 = scmp.lt.s32.totalorder %s346, 7
      %s348 = scalar_select %p347, %s346, 7
      %s349 = smul.addr %s348, 8
      %s350 = scalar_lea.vmem %s10, %s349
      %s351 = smul.u32 64, %s21
      %p352 = scmp.lt.s32.totalorder %s351, 127
      %s353 = scalar_select %p352, %s351, 127
      %s354 = smul.addr %s353, 8
      %s355 = scalar_lea.vmem %s0, %s354
      %s356 = smul.u32 64, %s21
      %s357 = smul.u32 4, %s21
      %p358 = scmp.lt.s32.totalorder %s357, 7
      %s359 = scalar_select %p358, %s357, 7
      %s360 = smul.addr %s359, 8
      %s361 = scalar_lea.vmem %s10, %s360
      %s362 = smul.u32 4, %s21
      %v364 = vld [vmem:[%s355] sm:$0xff]
      %v365 = vld [vmem:[%s355 + $0x8] sm:$0xff]
      %v366 = vld [vmem:[%s355 + $0x10] sm:$0xff]
      %v367 = vld [vmem:[%s355 + $0x18] sm:$0xff]
      %v368 = vld [vmem:[%s355 + $0x20] sm:$0xff]
      %v369 = vld [vmem:[%s355 + $0x28] sm:$0xff]
      %v370 = vld [vmem:[%s355 + $0x30] sm:$0xff]
      %v371 = vld [vmem:[%s355 + $0x38] sm:$0xff]
      %v372 = vld [vmem:[%s355 + $0x40] sm:$0xff]
      %v373 = vld [vmem:[%s355 + $0x48] sm:$0xff]
      %v374 = vld [vmem:[%s355 + $0x50] sm:$0xff]
      %v375 = vld [vmem:[%s355 + $0x58] sm:$0xff]
      %v376 = vld [vmem:[%s355 + $0x60] sm:$0xff]
      %v377 = vld [vmem:[%s355 + $0x68] sm:$0xff]
      %v378 = vld [vmem:[%s355 + $0x70] sm:$0xff]
      %v379 = vld [vmem:[%s355 + $0x78] sm:$0xff]
      %v380 = vld [vmem:[%s355 + $0x80] sm:$0xff]
      %v381 = vld [vmem:[%s355 + $0x88] sm:$0xff]
      %v382 = vld [vmem:[%s355 + $0x90] sm:$0xff]
      %v383 = vld [vmem:[%s355 + $0x98] sm:$0xff]
      %v384 = vld [vmem:[%s355 + $0xa0] sm:$0xff]
      %v385 = vld [vmem:[%s355 + $0xa8] sm:$0xff]
      %v386 = vld [vmem:[%s355 + $0xb0] sm:$0xff]
      %v387 = vld [vmem:[%s355 + $0xb8] sm:$0xff]
      %v388 = vld [vmem:[%s355 + $0xc0] sm:$0xff]
      %v389 = vld [vmem:[%s355 + $0xc8] sm:$0xff]
      %v390 = vld [vmem:[%s355 + $0xd0] sm:$0xff]
      %v391 = vld [vmem:[%s355 + $0xd8] sm:$0xff]
      %v392 = vld [vmem:[%s355 + $0xe0] sm:$0xff]
      %v393 = vld [vmem:[%s355 + $0xe8] sm:$0xff]
      %v394 = vld [vmem:[%s355 + $0xf0] sm:$0xff]
      %v395 = vld [vmem:[%s355 + $0xf8] sm:$0xff]
      %v396 = vld [vmem:[%s355 + $0x100] sm:$0xff]
      %v397 = vld [vmem:[%s355 + $0x108] sm:$0xff]
      %v398 = vld [vmem:[%s355 + $0x110] sm:$0xff]
      %v399 = vld [vmem:[%s355 + $0x118] sm:$0xff]
      %v400 = vld [vmem:[%s355 + $0x120] sm:$0xff]
      %v401 = vld [vmem:[%s355 + $0x128] sm:$0xff]
      %v402 = vld [vmem:[%s355 + $0x130] sm:$0xff]
      %v403 = vld [vmem:[%s355 + $0x138] sm:$0xff]
      %v404 = vld [vmem:[%s355 + $0x140] sm:$0xff]
      %v405 = vld [vmem:[%s355 + $0x148] sm:$0xff]
      %v406 = vld [vmem:[%s355 + $0x150] sm:$0xff]
      %v407 = vld [vmem:[%s355 + $0x158] sm:$0xff]
      %v408 = vld [vmem:[%s355 + $0x160] sm:$0xff]
      %v409 = vld [vmem:[%s355 + $0x168] sm:$0xff]
      %v410 = vld [vmem:[%s355 + $0x170] sm:$0xff]
      %v411 = vld [vmem:[%s355 + $0x178] sm:$0xff]
      %v412 = vld [vmem:[%s355 + $0x180] sm:$0xff]
      %v413 = vld [vmem:[%s355 + $0x188] sm:$0xff]
      %v414 = vld [vmem:[%s355 + $0x190] sm:$0xff]
      %v415 = vld [vmem:[%s355 + $0x198] sm:$0xff]
      %v416 = vld [vmem:[%s355 + $0x1a0] sm:$0xff]
      %v417 = vld [vmem:[%s355 + $0x1a8] sm:$0xff]
      %v418 = vld [vmem:[%s355 + $0x1b0] sm:$0xff]
      %v419 = vld [vmem:[%s355 + $0x1b8] sm:$0xff]
      %v420 = vld [vmem:[%s355 + $0x1c0] sm:$0xff]
      %v421 = vld [vmem:[%s355 + $0x1c8] sm:$0xff]
      %v422 = vld [vmem:[%s355 + $0x1d0] sm:$0xff]
      %v423 = vld [vmem:[%s355 + $0x1d8] sm:$0xff]
      %v424 = vld [vmem:[%s355 + $0x1e0] sm:$0xff]
      %v425 = vld [vmem:[%s355 + $0x1e8] sm:$0xff]
      %v426 = vld [vmem:[%s355 + $0x1f0] sm:$0xff]
      %v427 = vld [vmem:[%s355 + $0x1f8] sm:$0xff]
      %v428 = vlaneseq
      %v429 = vand.u32 %v428, 127
      %430 = vset.pattern.permute.xlu0 0
      %431 = vperm.xlu0 %430, %v364
      %v432 = vpop.permute.xlu0 %431
      %433 = vset.pattern.permute.xlu0 0
      %434 = vperm.xlu0 %433, %v365
      %v435 = vpop.permute.xlu0 %434
      %436 = vset.pattern.permute.xlu0 0
      %437 = vperm.xlu0 %436, %v366
      %v438 = vpop.permute.xlu0 %437
      %439 = vset.pattern.permute.xlu0 0
      %440 = vperm.xlu0 %439, %v367
      %v441 = vpop.permute.xlu0 %440
      %442 = vset.pattern.permute.xlu0 0
      %443 = vperm.xlu0 %442, %v368
      %v444 = vpop.permute.xlu0 %443
      %445 = vset.pattern.permute.xlu0 0
      %446 = vperm.xlu0 %445, %v369
      %v447 = vpop.permute.xlu0 %446
      %448 = vset.pattern.permute.xlu0 0
      %449 = vperm.xlu0 %448, %v370
      %v450 = vpop.permute.xlu0 %449
      %451 = vset.pattern.permute.xlu0 0
      %452 = vperm.xlu0 %451, %v371
      %v453 = vpop.permute.xlu0 %452
      %454 = vset.pattern.permute.xlu0 0
      %455 = vperm.xlu0 %454, %v372
      %v456 = vpop.permute.xlu0 %455
      %457 = vset.pattern.permute.xlu0 0
      %458 = vperm.xlu0 %457, %v373
      %v459 = vpop.permute.xlu0 %458
      %460 = vset.pattern.permute.xlu0 0
      %461 = vperm.xlu0 %460, %v374
      %v462 = vpop.permute.xlu0 %461
      %463 = vset.pattern.permute.xlu0 0
      %464 = vperm.xlu0 %463, %v375
      %v465 = vpop.permute.xlu0 %464
      %466 = vset.pattern.permute.xlu0 0
      %467 = vperm.xlu0 %466, %v376
      %v468 = vpop.permute.xlu0 %467
      %469 = vset.pattern.permute.xlu0 0
      %470 = vperm.xlu0 %469, %v377
      %v471 = vpop.permute.xlu0 %470
      %472 = vset.pattern.permute.xlu0 0
      %473 = vperm.xlu0 %472, %v378
      %v474 = vpop.permute.xlu0 %473
      %475 = vset.pattern.permute.xlu0 0
      %476 = vperm.xlu0 %475, %v379
      %v477 = vpop.permute.xlu0 %476
      %478 = vset.pattern.permute.xlu0 0
      %479 = vperm.xlu0 %478, %v380
      %v480 = vpop.permute.xlu0 %479
      %481 = vset.pattern.permute.xlu0 0
      %482 = vperm.xlu0 %481, %v381
      %v483 = vpop.permute.xlu0 %482
      %484 = vset.pattern.permute.xlu0 0
      %485 = vperm.xlu0 %484, %v382
      %v486 = vpop.permute.xlu0 %485
      %487 = vset.pattern.permute.xlu0 0
      %488 = vperm.xlu0 %487, %v383
      %v489 = vpop.permute.xlu0 %488
      %490 = vset.pattern.permute.xlu0 0
      %491 = vperm.xlu0 %490, %v384
      %v492 = vpop.permute.xlu0 %491
      %493 = vset.pattern.permute.xlu0 0
      %494 = vperm.xlu0 %493, %v385
      %v495 = vpop.permute.xlu0 %494
      %496 = vset.pattern.permute.xlu0 0
      %497 = vperm.xlu0 %496, %v386
      %v498 = vpop.permute.xlu0 %497
      %499 = vset.pattern.permute.xlu0 0
      %500 = vperm.xlu0 %499, %v387
      %v501 = vpop.permute.xlu0 %500
      %502 = vset.pattern.permute.xlu0 0
      %503 = vperm.xlu0 %502, %v388
      %v504 = vpop.permute.xlu0 %503
      %505 = vset.pattern.permute.xlu0 0
      %506 = vperm.xlu0 %505, %v389
      %v507 = vpop.permute.xlu0 %506
      %508 = vset.pattern.permute.xlu0 0
      %509 = vperm.xlu0 %508, %v390
      %v510 = vpop.permute.xlu0 %509
      %511 = vset.pattern.permute.xlu0 0
      %512 = vperm.xlu0 %511, %v391
      %v513 = vpop.permute.xlu0 %512
      %514 = vset.pattern.permute.xlu0 0
      %515 = vperm.xlu0 %514, %v392
      %v516 = vpop.permute.xlu0 %515
      %517 = vset.pattern.permute.xlu0 0
      %518 = vperm.xlu0 %517, %v393
      %v519 = vpop.permute.xlu0 %518
      %520 = vset.pattern.permute.xlu0 0
      %521 = vperm.xlu0 %520, %v394
      %v522 = vpop.permute.xlu0 %521
      %523 = vset.pattern.permute.xlu0 0
      %524 = vperm.xlu0 %523, %v395
      %v525 = vpop.permute.xlu0 %524
      %526 = vset.pattern.permute.xlu0 0
      %527 = vperm.xlu0 %526, %v396
      %v528 = vpop.permute.xlu0 %527
      %529 = vset.pattern.permute.xlu0 0
      %530 = vperm.xlu0 %529, %v397
      %v531 = vpop.permute.xlu0 %530
      %532 = vset.pattern.permute.xlu0 0
      %533 = vperm.xlu0 %532, %v398
      %v534 = vpop.permute.xlu0 %533
      %535 = vset.pattern.permute.xlu0 0
      %536 = vperm.xlu0 %535, %v399
      %v537 = vpop.permute.xlu0 %536
      %538 = vset.pattern.permute.xlu0 0
      %539 = vperm.xlu0 %538, %v400
      %v540 = vpop.permute.xlu0 %539
      %541 = vset.pattern.permute.xlu0 0
      %542 = vperm.xlu0 %541, %v401
      %v543 = vpop.permute.xlu0 %542
      %544 = vset.pattern.permute.xlu0 0
      %545 = vperm.xlu0 %544, %v402
      %v546 = vpop.permute.xlu0 %545
      %547 = vset.pattern.permute.xlu0 0
      %548 = vperm.xlu0 %547, %v403
      %v549 = vpop.permute.xlu0 %548
      %550 = vset.pattern.permute.xlu0 0
      %551 = vperm.xlu0 %550, %v404
      %v552 = vpop.permute.xlu0 %551
      %553 = vset.pattern.permute.xlu0 0
      %554 = vperm.xlu0 %553, %v405
      %v555 = vpop.permute.xlu0 %554
      %556 = vset.pattern.permute.xlu0 0
      %557 = vperm.xlu0 %556, %v406
      %v558 = vpop.permute.xlu0 %557
      %559 = vset.pattern.permute.xlu0 0
      %560 = vperm.xlu0 %559, %v407
      %v561 = vpop.permute.xlu0 %560
      %562 = vset.pattern.permute.xlu0 0
      %563 = vperm.xlu0 %562, %v408
      %v564 = vpop.permute.xlu0 %563
      %565 = vset.pattern.permute.xlu0 0
      %566 = vperm.xlu0 %565, %v409
      %v567 = vpop.permute.xlu0 %566
      %568 = vset.pattern.permute.xlu0 0
      %569 = vperm.xlu0 %568, %v410
      %v570 = vpop.permute.xlu0 %569
      %571 = vset.pattern.permute.xlu0 0
      %572 = vperm.xlu0 %571, %v411
      %v573 = vpop.permute.xlu0 %572
      %574 = vset.pattern.permute.xlu0 0
      %575 = vperm.xlu0 %574, %v412
      %v576 = vpop.permute.xlu0 %575
      %577 = vset.pattern.permute.xlu0 0
      %578 = vperm.xlu0 %577, %v413
      %v579 = vpop.permute.xlu0 %578
      %580 = vset.pattern.permute.xlu0 0
      %581 = vperm.xlu0 %580, %v414
      %v582 = vpop.permute.xlu0 %581
      %583 = vset.pattern.permute.xlu0 0
      %584 = vperm.xlu0 %583, %v415
      %v585 = vpop.permute.xlu0 %584
      %586 = vset.pattern.permute.xlu0 0
      %587 = vperm.xlu0 %586, %v416
      %v588 = vpop.permute.xlu0 %587
      %589 = vset.pattern.permute.xlu0 0
      %590 = vperm.xlu0 %589, %v417
      %v591 = vpop.permute.xlu0 %590
      %592 = vset.pattern.permute.xlu0 0
      %593 = vperm.xlu0 %592, %v418
      %v594 = vpop.permute.xlu0 %593
      %595 = vset.pattern.permute.xlu0 0
      %596 = vperm.xlu0 %595, %v419
      %v597 = vpop.permute.xlu0 %596
      %598 = vset.pattern.permute.xlu0 0
      %599 = vperm.xlu0 %598, %v420
      %v600 = vpop.permute.xlu0 %599
      %601 = vset.pattern.permute.xlu0 0
      %602 = vperm.xlu0 %601, %v421
      %v603 = vpop.permute.xlu0 %602
      %604 = vset.pattern.permute.xlu0 0
      %605 = vperm.xlu0 %604, %v422
      %v606 = vpop.permute.xlu0 %605
      %607 = vset.pattern.permute.xlu0 0
      %608 = vperm.xlu0 %607, %v423
      %v609 = vpop.permute.xlu0 %608
      %610 = vset.pattern.permute.xlu0 0
      %611 = vperm.xlu0 %610, %v424
      %v612 = vpop.permute.xlu0 %611
      %613 = vset.pattern.permute.xlu0 0
      %614 = vperm.xlu0 %613, %v425
      %v615 = vpop.permute.xlu0 %614
      %616 = vset.pattern.permute.xlu0 0
      %617 = vperm.xlu0 %616, %v426
      %v618 = vpop.permute.xlu0 %617
      %619 = vset.pattern.permute.xlu0 0
      %620 = vperm.xlu0 %619, %v427
      %v621 = vpop.permute.xlu0 %620
      %vm622 = vcmp.eq.s32.totalorder %v429, %v432
      %vm623 = vcmp.eq.s32.totalorder %v429, %v435
      %vm624 = vcmp.eq.s32.totalorder %v429, %v438
      %vm625 = vcmp.eq.s32.totalorder %v429, %v441
      %vm626 = vcmp.eq.s32.totalorder %v429, %v444
      %vm627 = vcmp.eq.s32.totalorder %v429, %v447
      %vm628 = vcmp.eq.s32.totalorder %v429, %v450
      %vm629 = vcmp.eq.s32.totalorder %v429, %v453
      %vm630 = vcmp.eq.s32.totalorder %v429, %v456
      %vm631 = vcmp.eq.s32.totalorder %v429, %v459
      %vm632 = vcmp.eq.s32.totalorder %v429, %v462
      %vm633 = vcmp.eq.s32.totalorder %v429, %v465
      %vm634 = vcmp.eq.s32.totalorder %v429, %v468
      %vm635 = vcmp.eq.s32.totalorder %v429, %v471
      %vm636 = vcmp.eq.s32.totalorder %v429, %v474
      %vm637 = vcmp.eq.s32.totalorder %v429, %v477
      %vm638 = vcmp.eq.s32.totalorder %v429, %v480
      %vm639 = vcmp.eq.s32.totalorder %v429, %v483
      %vm640 = vcmp.eq.s32.totalorder %v429, %v486
      %vm641 = vcmp.eq.s32.totalorder %v429, %v489
      %vm642 = vcmp.eq.s32.totalorder %v429, %v492
      %vm643 = vcmp.eq.s32.totalorder %v429, %v495
      %vm644 = vcmp.eq.s32.totalorder %v429, %v498
      %vm645 = vcmp.eq.s32.totalorder %v429, %v501
      %vm646 = vcmp.eq.s32.totalorder %v429, %v504
      %vm647 = vcmp.eq.s32.totalorder %v429, %v507
      %vm648 = vcmp.eq.s32.totalorder %v429, %v510
      %vm649 = vcmp.eq.s32.totalorder %v429, %v513
      %vm650 = vcmp.eq.s32.totalorder %v429, %v516
      %vm651 = vcmp.eq.s32.totalorder %v429, %v519
      %vm652 = vcmp.eq.s32.totalorder %v429, %v522
      %vm653 = vcmp.eq.s32.totalorder %v429, %v525
      %vm654 = vcmp.eq.s32.totalorder %v429, %v528
      %vm655 = vcmp.eq.s32.totalorder %v429, %v531
      %vm656 = vcmp.eq.s32.totalorder %v429, %v534
      %vm657 = vcmp.eq.s32.totalorder %v429, %v537
      %vm658 = vcmp.eq.s32.totalorder %v429, %v540
      %vm659 = vcmp.eq.s32.totalorder %v429, %v543
      %vm660 = vcmp.eq.s32.totalorder %v429, %v546
      %vm661 = vcmp.eq.s32.totalorder %v429, %v549
      %vm662 = vcmp.eq.s32.totalorder %v429, %v552
      %vm663 = vcmp.eq.s32.totalorder %v429, %v555
      %vm664 = vcmp.eq.s32.totalorder %v429, %v558
      %vm665 = vcmp.eq.s32.totalorder %v429, %v561
      %vm666 = vcmp.eq.s32.totalorder %v429, %v564
      %vm667 = vcmp.eq.s32.totalorder %v429, %v567
      %vm668 = vcmp.eq.s32.totalorder %v429, %v570
      %vm669 = vcmp.eq.s32.totalorder %v429, %v573
      %vm670 = vcmp.eq.s32.totalorder %v429, %v576
      %vm671 = vcmp.eq.s32.totalorder %v429, %v579
      %vm672 = vcmp.eq.s32.totalorder %v429, %v582
      %vm673 = vcmp.eq.s32.totalorder %v429, %v585
      %vm674 = vcmp.eq.s32.totalorder %v429, %v588
      %vm675 = vcmp.eq.s32.totalorder %v429, %v591
      %vm676 = vcmp.eq.s32.totalorder %v429, %v594
      %vm677 = vcmp.eq.s32.totalorder %v429, %v597
      %vm678 = vcmp.eq.s32.totalorder %v429, %v600
      %vm679 = vcmp.eq.s32.totalorder %v429, %v603
      %vm680 = vcmp.eq.s32.totalorder %v429, %v606
      %vm681 = vcmp.eq.s32.totalorder %v429, %v609
      %vm682 = vcmp.eq.s32.totalorder %v429, %v612
      %vm683 = vcmp.eq.s32.totalorder %v429, %v615
      %vm684 = vcmp.eq.s32.totalorder %v429, %v618
      %vm685 = vcmp.eq.s32.totalorder %v429, %v621
      %v686 = vsel %vm622, 1, 0
      %v687 = vsel %vm623, 1, 0
      %v688 = vsel %vm624, 1, 0
      %v689 = vsel %vm625, 1, 0
      %v690 = vsel %vm626, 1, 0
      %v691 = vsel %vm627, 1, 0
      %v692 = vsel %vm628, 1, 0
      %v693 = vsel %vm629, 1, 0
      %v694 = vsel %vm630, 1, 0
      %v695 = vsel %vm631, 1, 0
      %v696 = vsel %vm632, 1, 0
      %v697 = vsel %vm633, 1, 0
      %v698 = vsel %vm634, 1, 0
      %v699 = vsel %vm635, 1, 0
      %v700 = vsel %vm636, 1, 0
      %v701 = vsel %vm637, 1, 0
      %v702 = vsel %vm638, 1, 0
      %v703 = vsel %vm639, 1, 0
      %v704 = vsel %vm640, 1, 0
      %v705 = vsel %vm641, 1, 0
      %v706 = vsel %vm642, 1, 0
      %v707 = vsel %vm643, 1, 0
      %v708 = vsel %vm644, 1, 0
      %v709 = vsel %vm645, 1, 0
      %v710 = vsel %vm646, 1, 0
      %v711 = vsel %vm647, 1, 0
      %v712 = vsel %vm648, 1, 0
      %v713 = vsel %vm649, 1, 0
      %v714 = vsel %vm650, 1, 0
      %v715 = vsel %vm651, 1, 0
      %v716 = vsel %vm652, 1, 0
      %v717 = vsel %vm653, 1, 0
      %v718 = vsel %vm654, 1, 0
      %v719 = vsel %vm655, 1, 0
      %v720 = vsel %vm656, 1, 0
      %v721 = vsel %vm657, 1, 0
      %v722 = vsel %vm658, 1, 0
      %v723 = vsel %vm659, 1, 0
      %v724 = vsel %vm660, 1, 0
      %v725 = vsel %vm661, 1, 0
      %v726 = vsel %vm662, 1, 0
      %v727 = vsel %vm663, 1, 0
      %v728 = vsel %vm664, 1, 0
      %v729 = vsel %vm665, 1, 0
      %v730 = vsel %vm666, 1, 0
      %v731 = vsel %vm667, 1, 0
      %v732 = vsel %vm668, 1, 0
      %v733 = vsel %vm669, 1, 0
      %v734 = vsel %vm670, 1, 0
      %v735 = vsel %vm671, 1, 0
      %v736 = vsel %vm672, 1, 0
      %v737 = vsel %vm673, 1, 0
      %v738 = vsel %vm674, 1, 0
      %v739 = vsel %vm675, 1, 0
      %v740 = vsel %vm676, 1, 0
      %v741 = vsel %vm677, 1, 0
      %v742 = vsel %vm678, 1, 0
      %v743 = vsel %vm679, 1, 0
      %v744 = vsel %vm680, 1, 0
      %v745 = vsel %vm681, 1, 0
      %v746 = vsel %vm682, 1, 0
      %v747 = vsel %vm683, 1, 0
      %v748 = vsel %vm684, 1, 0
      %v749 = vsel %vm685, 1, 0
      %v750 = vcvt.s32.f32 %v686
      %v751 = vcvt.s32.f32 %v687
      %v752 = vcvt.s32.f32 %v688
      %v753 = vcvt.s32.f32 %v689
      %v754 = vcvt.s32.f32 %v690
      %v755 = vcvt.s32.f32 %v691
      %v756 = vcvt.s32.f32 %v692
      %v757 = vcvt.s32.f32 %v693
      %v758 = vcvt.s32.f32 %v694
      %v759 = vcvt.s32.f32 %v695
      %v760 = vcvt.s32.f32 %v696
      %v761 = vcvt.s32.f32 %v697
      %v762 = vcvt.s32.f32 %v698
      %v763 = vcvt.s32.f32 %v699
      %v764 = vcvt.s32.f32 %v700
      %v765 = vcvt.s32.f32 %v701
      %v766 = vcvt.s32.f32 %v702
      %v767 = vcvt.s32.f32 %v703
      %v768 = vcvt.s32.f32 %v704
      %v769 = vcvt.s32.f32 %v705
      %v770 = vcvt.s32.f32 %v706
      %v771 = vcvt.s32.f32 %v707
      %v772 = vcvt.s32.f32 %v708
      %v773 = vcvt.s32.f32 %v709
      %v774 = vcvt.s32.f32 %v710
      %v775 = vcvt.s32.f32 %v711
      %v776 = vcvt.s32.f32 %v712
      %v777 = vcvt.s32.f32 %v713
      %v778 = vcvt.s32.f32 %v714
      %v779 = vcvt.s32.f32 %v715
      %v780 = vcvt.s32.f32 %v716
      %v781 = vcvt.s32.f32 %v717
      %v782 = vcvt.s32.f32 %v718
      %v783 = vcvt.s32.f32 %v719
      %v784 = vcvt.s32.f32 %v720
      %v785 = vcvt.s32.f32 %v721
      %v786 = vcvt.s32.f32 %v722
      %v787 = vcvt.s32.f32 %v723
      %v788 = vcvt.s32.f32 %v724
      %v789 = vcvt.s32.f32 %v725
      %v790 = vcvt.s32.f32 %v726
      %v791 = vcvt.s32.f32 %v727
      %v792 = vcvt.s32.f32 %v728
      %v793 = vcvt.s32.f32 %v729
      %v794 = vcvt.s32.f32 %v730
      %v795 = vcvt.s32.f32 %v731
      %v796 = vcvt.s32.f32 %v732
      %v797 = vcvt.s32.f32 %v733
      %v798 = vcvt.s32.f32 %v734
      %v799 = vcvt.s32.f32 %v735
      %v800 = vcvt.s32.f32 %v736
      %v801 = vcvt.s32.f32 %v737
      %v802 = vcvt.s32.f32 %v738
      %v803 = vcvt.s32.f32 %v739
      %v804 = vcvt.s32.f32 %v740
      %v805 = vcvt.s32.f32 %v741
      %v806 = vcvt.s32.f32 %v742
      %v807 = vcvt.s32.f32 %v743
      %v808 = vcvt.s32.f32 %v744
      %v809 = vcvt.s32.f32 %v745
      %v810 = vcvt.s32.f32 %v746
      %v811 = vcvt.s32.f32 %v747
      %v812 = vcvt.s32.f32 %v748
      %v813 = vcvt.s32.f32 %v749
      %v814 = vpack.c.bf16 %v751, %v750
      %v815 = vpack.c.bf16 %v753, %v752
      %v816 = vpack.c.bf16 %v755, %v754
      %v817 = vpack.c.bf16 %v757, %v756
      %v818 = vpack.c.bf16 %v759, %v758
      %v819 = vpack.c.bf16 %v761, %v760
      %v820 = vpack.c.bf16 %v763, %v762
      %v821 = vpack.c.bf16 %v765, %v764
      %v822 = vpack.c.bf16 %v767, %v766
      %v823 = vpack.c.bf16 %v769, %v768
      %v824 = vpack.c.bf16 %v771, %v770
      %v825 = vpack.c.bf16 %v773, %v772
      %v826 = vpack.c.bf16 %v775, %v774
      %v827 = vpack.c.bf16 %v777, %v776
      %v828 = vpack.c.bf16 %v779, %v778
      %v829 = vpack.c.bf16 %v781, %v780
      %v830 = vpack.c.bf16 %v783, %v782
      %v831 = vpack.c.bf16 %v785, %v784
      %v832 = vpack.c.bf16 %v787, %v786
      %v833 = vpack.c.bf16 %v789, %v788
      %v834 = vpack.c.bf16 %v791, %v790
      %v835 = vpack.c.bf16 %v793, %v792
      %v836 = vpack.c.bf16 %v795, %v794
      %v837 = vpack.c.bf16 %v797, %v796
      %v838 = vpack.c.bf16 %v799, %v798
      %v839 = vpack.c.bf16 %v801, %v800
      %v840 = vpack.c.bf16 %v803, %v802
      %v841 = vpack.c.bf16 %v805, %v804
      %v842 = vpack.c.bf16 %v807, %v806
      %v843 = vpack.c.bf16 %v809, %v808
      %v844 = vpack.c.bf16 %v811, %v810
      %v845 = vpack.c.bf16 %v813, %v812
      %v846 = vld [vmem:[%s1] sm:$0xf]
      %v847 = vld [vmem:[%s1 + $0x4] sm:$0xf]
      %v848 = vld [vmem:[%s1 + $0x8] sm:$0x3]
      %v852 = vunpack.c.l.b16 %v846
      %v853 = vunpack.c.l.b16 %v847
      %v854 = vunpack.c.l.b16 %v848
      %v855 = vpack.c.b16 %v853, %v852
      %v856 = vpack.c.b16 %v854, %v854
      %vm858 = vcmask 162816
      %v860 = vsel %vm858, %v814, 0
      %v863 = vsel %vm858, %v815, 0
      %v866 = vsel %vm858, %v816, 0
      %v869 = vsel %vm858, %v817, 0
      %v872 = vsel %vm858, %v818, 0
      %v875 = vsel %vm858, %v819, 0
      %v878 = vsel %vm858, %v820, 0
      %v881 = vsel %vm858, %v821, 0
      %v884 = vsel %vm858, %v822, 0
      %v887 = vsel %vm858, %v823, 0
      %v890 = vsel %vm858, %v824, 0
      %v893 = vsel %vm858, %v825, 0
      %v896 = vsel %vm858, %v826, 0
      %v899 = vsel %vm858, %v827, 0
      %v902 = vsel %vm858, %v828, 0
      %v905 = vsel %vm858, %v829, 0
      %v908 = vsel %vm858, %v830, 0
      %v911 = vsel %vm858, %v831, 0
      %v914 = vsel %vm858, %v832, 0
      %v917 = vsel %vm858, %v833, 0
      %v920 = vsel %vm858, %v834, 0
      %v923 = vsel %vm858, %v835, 0
      %v926 = vsel %vm858, %v836, 0
      %v929 = vsel %vm858, %v837, 0
      %v932 = vsel %vm858, %v838, 0
      %v935 = vsel %vm858, %v839, 0
      %v938 = vsel %vm858, %v840, 0
      %v941 = vsel %vm858, %v841, 0
      %v944 = vsel %vm858, %v842, 0
      %v947 = vsel %vm858, %v843, 0
      %v950 = vsel %vm858, %v844, 0
      %v953 = vsel %vm858, %v845, 0
      %vm955 = vcmask 1041408
      %v957 = vsel %vm955, %v856, 0
      %959 = vmatprep.subr.bf16.mxu0 0
      %960 = vmatpush1.bf16.msra.mxu0 %v855
      %961 = vmatprep.subr.bf16.mxu0 0
      %962 = vmatpush1.bf16.msra.mxu0 %v957
      %963 = vmatprep.subr.bf16.mxu0 0
      %964 = vmatpush1.bf16.msra.mxu0 0
      %965 = vmatprep.subr.bf16.mxu0 0
      %966 = vmatpush1.bf16.msra.mxu0 0
      %967 = vmatprep.subr.bf16.mxu0 0
      %968 = vmatpush1.bf16.msra.mxu0 0
      %969 = vmatprep.subr.bf16.mxu0 0
      %970 = vmatpush1.bf16.msra.mxu0 0
      %971 = vmatprep.subr.bf16.mxu0 0
      %972 = vmatpush1.bf16.msra.mxu0 0
      %973 = vmatprep.subr.bf16.mxu0 0
      %974 = vmatpush1.bf16.msra.mxu0 0
      %975 = vmatprep.subr.bf16.mxu0 0
      %976 = vmatpush1.bf16.msra.mxu0 0
      %977 = vmatprep.subr.bf16.mxu0 0
      %978 = vmatpush1.bf16.msra.mxu0 0
      %979 = vmatprep.subr.bf16.mxu0 0
      %980 = vmatpush1.bf16.msra.mxu0 0
      %981 = vmatprep.subr.bf16.mxu0 0
      %982 = vmatpush1.bf16.msra.mxu0 0
      %983 = vmatprep.subr.bf16.mxu0 0
      %984 = vmatpush1.bf16.msra.mxu0 0
      %985 = vmatprep.subr.bf16.mxu0 0
      %986 = vmatpush1.bf16.msra.mxu0 0
      %987 = vmatprep.subr.bf16.mxu0 0
      %988 = vmatpush1.bf16.msra.mxu0 0
      %989 = vmatprep.subr.bf16.mxu0 0
      %990 = vmatpush1.bf16.msra.mxu0 0
      %991 = vmatprep.mubr.bf16.mxu0 0
      %992 = vmatmul.mubr.bf16.gmra.mrb[0].mxu0 %v860
      %v993 = vpop.f32.mrb[0].mxu0
      %v994 = vadd.f32 0.0, %v993
      %v995 = vpop.f32.mrb[0].mxu0
      %v996 = vpop.f32.mrb[0].mxu0
      %v997 = vadd.f32 0.0, %v996
      %v998 = vpop.f32.mrb[0].mxu0
      %999 = vmatprep.mubr.bf16.mxu0 0
      %1000 = vmatmul.mubr.bf16.gmra.mrb[0].mxu0 %v863
      %v1001 = vpop.f32.mrb[0].mxu0
      %v1002 = vadd.f32 0.0, %v1001
      %v1003 = vpop.f32.mrb[0].mxu0
      %v1004 = vpop.f32.mrb[0].mxu0
      %v1005 = vadd.f32 0.0, %v1004
      %v1006 = vpop.f32.mrb[0].mxu0
      %1007 = vmatprep.mubr.bf16.mxu0 0
      %1008 = vmatmul.mubr.bf16.gmra.mrb[0].mxu0 %v866
      %v1009 = vpop.f32.mrb[0].mxu0
      %v1010 = vadd.f32 0.0, %v1009
      %v1011 = vpop.f32.mrb[0].mxu0
      %v1012 = vpop.f32.mrb[0].mxu0
      %v1013 = vadd.f32 0.0, %v1012
      %v1014 = vpop.f32.mrb[0].mxu0
      %1015 = vmatprep.mubr.bf16.mxu0 0
      %1016 = vmatmul.mubr.bf16.gmra.mrb[0].mxu0 %v869
      %v1017 = vpop.f32.mrb[0].mxu0
      %v1018 = vadd.f32 0.0, %v1017
      %v1019 = vpop.f32.mrb[0].mxu0
      %v1020 = vpop.f32.mrb[0].mxu0
      %v1021 = vadd.f32 0.0, %v1020
      %v1022 = vpop.f32.mrb[0].mxu0
      %1023 = vmatprep.mubr.bf16.mxu0 0
      %1024 = vmatmul.mubr.bf16.gmra.mrb[0].mxu0 %v872
      %v1025 = vpop.f32.mrb[0].mxu0
      %v1026 = vadd.f32 0.0, %v1025
      %v1027 = vpop.f32.mrb[0].mxu0
      %v1028 = vpop.f32.mrb[0].mxu0
      %v1029 = vadd.f32 0.0, %v1028
      %v1030 = vpop.f32.mrb[0].mxu0
      %1031 = vmatprep.mubr.bf16.mxu0 0
      %1032 = vmatmul.mubr.bf16.gmra.mrb[0].mxu0 %v875
      %v1033 = vpop.f32.mrb[0].mxu0
      %v1034 = vadd.f32 0.0, %v1033
      %v1035 = vpop.f32.mrb[0].mxu0
      %v1036 = vpop.f32.mrb[0].mxu0
      %v1037 = vadd.f32 0.0, %v1036
      %v1038 = vpop.f32.mrb[0].mxu0
      %1039 = vmatprep.mubr.bf16.mxu0 0
      %1040 = vmatmul.mubr.bf16.gmra.mrb[0].mxu0 %v878
      %v1041 = vpop.f32.mrb[0].mxu0
      %v1042 = vadd.f32 0.0, %v1041
      %v1043 = vpop.f32.mrb[0].mxu0
      %v1044 = vpop.f32.mrb[0].mxu0
      %v1045 = vadd.f32 0.0, %v1044
      %v1046 = vpop.f32.mrb[0].mxu0
      %1047 = vmatprep.mubr.bf16.mxu0 0
      %1048 = vmatmul.mubr.bf16.gmra.mrb[0].mxu0 %v881
      %v1049 = vpop.f32.mrb[0].mxu0
      %v1050 = vadd.f32 0.0, %v1049
      %v1051 = vpop.f32.mrb[0].mxu0
      %v1052 = vpop.f32.mrb[0].mxu0
      %v1053 = vadd.f32 0.0, %v1052
      %v1054 = vpop.f32.mrb[0].mxu0
      %1055 = vmatprep.mubr.bf16.mxu0 0
      %1056 = vmatmul.mubr.bf16.gmra.mrb[0].mxu0 %v884
      %v1057 = vpop.f32.mrb[0].mxu0
      %v1058 = vadd.f32 0.0, %v1057
      %v1059 = vpop.f32.mrb[0].mxu0
      %v1060 = vpop.f32.mrb[0].mxu0
      %v1061 = vadd.f32 0.0, %v1060
      %v1062 = vpop.f32.mrb[0].mxu0
      %1063 = vmatprep.mubr.bf16.mxu0 0
      %1064 = vmatmul.mubr.bf16.gmra.mrb[0].mxu0 %v887
      %v1065 = vpop.f32.mrb[0].mxu0
      %v1066 = vadd.f32 0.0, %v1065
      %v1067 = vpop.f32.mrb[0].mxu0
      %v1068 = vpop.f32.mrb[0].mxu0
      %v1069 = vadd.f32 0.0, %v1068
      %v1070 = vpop.f32.mrb[0].mxu0
      %1071 = vmatprep.mubr.bf16.mxu0 0
      %1072 = vmatmul.mubr.bf16.gmra.mrb[0].mxu0 %v890
      %v1073 = vpop.f32.mrb[0].mxu0
      %v1074 = vadd.f32 0.0, %v1073
      %v1075 = vpop.f32.mrb[0].mxu0
      %v1076 = vpop.f32.mrb[0].mxu0
      %v1077 = vadd.f32 0.0, %v1076
      %v1078 = vpop.f32.mrb[0].mxu0
      %1079 = vmatprep.mubr.bf16.mxu0 0
      %1080 = vmatmul.mubr.bf16.gmra.mrb[0].mxu0 %v893
      %v1081 = vpop.f32.mrb[0].mxu0
      %v1082 = vadd.f32 0.0, %v1081
      %v1083 = vpop.f32.mrb[0].mxu0
      %v1084 = vpop.f32.mrb[0].mxu0
      %v1085 = vadd.f32 0.0, %v1084
      %v1086 = vpop.f32.mrb[0].mxu0
      %1087 = vmatprep.mubr.bf16.mxu0 0
      %1088 = vmatmul.mubr.bf16.gmra.mrb[0].mxu0 %v896
      %v1089 = vpop.f32.mrb[0].mxu0
      %v1090 = vadd.f32 0.0, %v1089
      %v1091 = vpop.f32.mrb[0].mxu0
      %v1092 = vpop.f32.mrb[0].mxu0
      %v1093 = vadd.f32 0.0, %v1092
      %v1094 = vpop.f32.mrb[0].mxu0
      %1095 = vmatprep.mubr.bf16.mxu0 0
      %1096 = vmatmul.mubr.bf16.gmra.mrb[0].mxu0 %v899
      %v1097 = vpop.f32.mrb[0].mxu0
      %v1098 = vadd.f32 0.0, %v1097
      %v1099 = vpop.f32.mrb[0].mxu0
      %v1100 = vpop.f32.mrb[0].mxu0
      %v1101 = vadd.f32 0.0, %v1100
      %v1102 = vpop.f32.mrb[0].mxu0
      %1103 = vmatprep.mubr.bf16.mxu0 0
      %1104 = vmatmul.mubr.bf16.gmra.mrb[0].mxu0 %v902
      %v1105 = vpop.f32.mrb[0].mxu0
      %v1106 = vadd.f32 0.0, %v1105
      %v1107 = vpop.f32.mrb[0].mxu0
      %v1108 = vpop.f32.mrb[0].mxu0
      %v1109 = vadd.f32 0.0, %v1108
      %v1110 = vpop.f32.mrb[0].mxu0
      %1111 = vmatprep.mubr.bf16.mxu0 0
      %1112 = vmatmul.mubr.bf16.gmra.mrb[0].mxu0 %v905
      %v1113 = vpop.f32.mrb[0].mxu0
      %v1114 = vadd.f32 0.0, %v1113
      %v1115 = vpop.f32.mrb[0].mxu0
      %v1116 = vpop.f32.mrb[0].mxu0
      %v1117 = vadd.f32 0.0, %v1116
      %v1118 = vpop.f32.mrb[0].mxu0
      %1119 = vmatprep.mubr.bf16.mxu0 0
      %1120 = vmatmul.mubr.bf16.gmra.mrb[0].mxu0 %v908
      %v1121 = vpop.f32.mrb[0].mxu0
      %v1122 = vadd.f32 0.0, %v1121
      %v1123 = vpop.f32.mrb[0].mxu0
      %v1124 = vpop.f32.mrb[0].mxu0
      %v1125 = vadd.f32 0.0, %v1124
      %v1126 = vpop.f32.mrb[0].mxu0
      %1127 = vmatprep.mubr.bf16.mxu0 0
      %1128 = vmatmul.mubr.bf16.gmra.mrb[0].mxu0 %v911
      %v1129 = vpop.f32.mrb[0].mxu0
      %v1130 = vadd.f32 0.0, %v1129
      %v1131 = vpop.f32.mrb[0].mxu0
      %v1132 = vpop.f32.mrb[0].mxu0
      %v1133 = vadd.f32 0.0, %v1132
      %v1134 = vpop.f32.mrb[0].mxu0
      %1135 = vmatprep.mubr.bf16.mxu0 0
      %1136 = vmatmul.mubr.bf16.gmra.mrb[0].mxu0 %v914
      %v1137 = vpop.f32.mrb[0].mxu0
      %v1138 = vadd.f32 0.0, %v1137
      %v1139 = vpop.f32.mrb[0].mxu0
      %v1140 = vpop.f32.mrb[0].mxu0
      %v1141 = vadd.f32 0.0, %v1140
      %v1142 = vpop.f32.mrb[0].mxu0
      %1143 = vmatprep.mubr.bf16.mxu0 0
      %1144 = vmatmul.mubr.bf16.gmra.mrb[0].mxu0 %v917
      %v1145 = vpop.f32.mrb[0].mxu0
      %v1146 = vadd.f32 0.0, %v1145
      %v1147 = vpop.f32.mrb[0].mxu0
      %v1148 = vpop.f32.mrb[0].mxu0
      %v1149 = vadd.f32 0.0, %v1148
      %v1150 = vpop.f32.mrb[0].mxu0
      %1151 = vmatprep.mubr.bf16.mxu0 0
      %1152 = vmatmul.mubr.bf16.gmra.mrb[0].mxu0 %v920
      %v1153 = vpop.f32.mrb[0].mxu0
      %v1154 = vadd.f32 0.0, %v1153
      %v1155 = vpop.f32.mrb[0].mxu0
      %v1156 = vpop.f32.mrb[0].mxu0
      %v1157 = vadd.f32 0.0, %v1156
      %v1158 = vpop.f32.mrb[0].mxu0
      %1159 = vmatprep.mubr.bf16.mxu0 0
      %1160 = vmatmul.mubr.bf16.gmra.mrb[0].mxu0 %v923
      %v1161 = vpop.f32.mrb[0].mxu0
      %v1162 = vadd.f32 0.0, %v1161
      %v1163 = vpop.f32.mrb[0].mxu0
      %v1164 = vpop.f32.mrb[0].mxu0
      %v1165 = vadd.f32 0.0, %v1164
      %v1166 = vpop.f32.mrb[0].mxu0
      %1167 = vmatprep.mubr.bf16.mxu0 0
      %1168 = vmatmul.mubr.bf16.gmra.mrb[0].mxu0 %v926
      %v1169 = vpop.f32.mrb[0].mxu0
      %v1170 = vadd.f32 0.0, %v1169
      %v1171 = vpop.f32.mrb[0].mxu0
      %v1172 = vpop.f32.mrb[0].mxu0
      %v1173 = vadd.f32 0.0, %v1172
      %v1174 = vpop.f32.mrb[0].mxu0
      %1175 = vmatprep.mubr.bf16.mxu0 0
      %1176 = vmatmul.mubr.bf16.gmra.mrb[0].mxu0 %v929
      %v1177 = vpop.f32.mrb[0].mxu0
      %v1178 = vadd.f32 0.0, %v1177
      %v1179 = vpop.f32.mrb[0].mxu0
      %v1180 = vpop.f32.mrb[0].mxu0
      %v1181 = vadd.f32 0.0, %v1180
      %v1182 = vpop.f32.mrb[0].mxu0
      %1183 = vmatprep.mubr.bf16.mxu0 0
      %1184 = vmatmul.mubr.bf16.gmra.mrb[0].mxu0 %v932
      %v1185 = vpop.f32.mrb[0].mxu0
      %v1186 = vadd.f32 0.0, %v1185
      %v1187 = vpop.f32.mrb[0].mxu0
      %v1188 = vpop.f32.mrb[0].mxu0
      %v1189 = vadd.f32 0.0, %v1188
      %v1190 = vpop.f32.mrb[0].mxu0
      %1191 = vmatprep.mubr.bf16.mxu0 0
      %1192 = vmatmul.mubr.bf16.gmra.mrb[0].mxu0 %v935
      %v1193 = vpop.f32.mrb[0].mxu0
      %v1194 = vadd.f32 0.0, %v1193
      %v1195 = vpop.f32.mrb[0].mxu0
      %v1196 = vpop.f32.mrb[0].mxu0
      %v1197 = vadd.f32 0.0, %v1196
      %v1198 = vpop.f32.mrb[0].mxu0
      %1199 = vmatprep.mubr.bf16.mxu0 0
      %1200 = vmatmul.mubr.bf16.gmra.mrb[0].mxu0 %v938
      %v1201 = vpop.f32.mrb[0].mxu0
      %v1202 = vadd.f32 0.0, %v1201
      %v1203 = vpop.f32.mrb[0].mxu0
      %v1204 = vpop.f32.mrb[0].mxu0
      %v1205 = vadd.f32 0.0, %v1204
      %v1206 = vpop.f32.mrb[0].mxu0
      %1207 = vmatprep.mubr.bf16.mxu0 0
      %1208 = vmatmul.mubr.bf16.gmra.mrb[0].mxu0 %v941
      %v1209 = vpop.f32.mrb[0].mxu0
      %v1210 = vadd.f32 0.0, %v1209
      %v1211 = vpop.f32.mrb[0].mxu0
      %v1212 = vpop.f32.mrb[0].mxu0
      %v1213 = vadd.f32 0.0, %v1212
      %v1214 = vpop.f32.mrb[0].mxu0
      %1215 = vmatprep.mubr.bf16.mxu0 0
      %1216 = vmatmul.mubr.bf16.gmra.mrb[0].mxu0 %v944
      %v1217 = vpop.f32.mrb[0].mxu0
      %v1218 = vadd.f32 0.0, %v1217
      %v1219 = vpop.f32.mrb[0].mxu0
      %v1220 = vpop.f32.mrb[0].mxu0
      %v1221 = vadd.f32 0.0, %v1220
      %v1222 = vpop.f32.mrb[0].mxu0
      %1223 = vmatprep.mubr.bf16.mxu0 0
      %1224 = vmatmul.mubr.bf16.gmra.mrb[0].mxu0 %v947
      %v1225 = vpop.f32.mrb[0].mxu0
      %v1226 = vadd.f32 0.0, %v1225
      %v1227 = vpop.f32.mrb[0].mxu0
      %v1228 = vpop.f32.mrb[0].mxu0
      %v1229 = vadd.f32 0.0, %v1228
      %v1230 = vpop.f32.mrb[0].mxu0
      %1231 = vmatprep.mubr.bf16.mxu0 0
      %1232 = vmatmul.mubr.bf16.gmra.mrb[0].mxu0 %v950
      %v1233 = vpop.f32.mrb[0].mxu0
      %v1234 = vadd.f32 0.0, %v1233
      %v1235 = vpop.f32.mrb[0].mxu0
      %v1236 = vpop.f32.mrb[0].mxu0
      %v1237 = vadd.f32 0.0, %v1236
      %v1238 = vpop.f32.mrb[0].mxu0
      %1239 = vmatprep.mubr.bf16.mxu0 0
      %1240 = vmatmul.mubr.bf16.gmra.mrb[0].mxu0 %v953
      %v1241 = vpop.f32.mrb[0].mxu0
      %v1242 = vadd.f32 0.0, %v1241
      %v1243 = vpop.f32.mrb[0].mxu0
      %v1244 = vpop.f32.mrb[0].mxu0
      %v1245 = vadd.f32 0.0, %v1244
      %v1246 = vpop.f32.mrb[0].mxu0
      %1247 = vdwg.mxu0
      %v1248 = vpack.c.bf16 %v994, %v994
      %v1249 = vpack.c.bf16 %v997, %v997
      %v1250 = vpack.c.bf16 %v1002, %v1002
      %v1251 = vpack.c.bf16 %v1005, %v1005
      %v1252 = vpack.c.bf16 %v1010, %v1010
      %v1253 = vpack.c.bf16 %v1013, %v1013
      %v1254 = vpack.c.bf16 %v1018, %v1018
      %v1255 = vpack.c.bf16 %v1021, %v1021
      %v1256 = vpack.c.bf16 %v1026, %v1026
      %v1257 = vpack.c.bf16 %v1029, %v1029
      %v1258 = vpack.c.bf16 %v1034, %v1034
      %v1259 = vpack.c.bf16 %v1037, %v1037
      %v1260 = vpack.c.bf16 %v1042, %v1042
      %v1261 = vpack.c.bf16 %v1045, %v1045
      %v1262 = vpack.c.bf16 %v1050, %v1050
      %v1263 = vpack.c.bf16 %v1053, %v1053
      %v1264 = vpack.c.bf16 %v1058, %v1058
      %v1265 = vpack.c.bf16 %v1061, %v1061
      %v1266 = vpack.c.bf16 %v1066, %v1066
      %v1267 = vpack.c.bf16 %v1069, %v1069
      %v1268 = vpack.c.bf16 %v1074, %v1074
      %v1269 = vpack.c.bf16 %v1077, %v1077
      %v1270 = vpack.c.bf16 %v1082, %v1082
      %v1271 = vpack.c.bf16 %v1085, %v1085
      %v1272 = vpack.c.bf16 %v1090, %v1090
      %v1273 = vpack.c.bf16 %v1093, %v1093
      %v1274 = vpack.c.bf16 %v1098, %v1098
      %v1275 = vpack.c.bf16 %v1101, %v1101
      %v1276 = vpack.c.bf16 %v1106, %v1106
      %v1277 = vpack.c.bf16 %v1109, %v1109
      %v1278 = vpack.c.bf16 %v1114, %v1114
      %v1279 = vpack.c.bf16 %v1117, %v1117
      %v1280 = vpack.c.bf16 %v1122, %v1122
      %v1281 = vpack.c.bf16 %v1125, %v1125
      %v1282 = vpack.c.bf16 %v1130, %v1130
      %v1283 = vpack.c.bf16 %v1133, %v1133
      %v1284 = vpack.c.bf16 %v1138, %v1138
      %v1285 = vpack.c.bf16 %v1141, %v1141
      %v1286 = vpack.c.bf16 %v1146, %v1146
      %v1287 = vpack.c.bf16 %v1149, %v1149
      %v1288 = vpack.c.bf16 %v1154, %v1154
      %v1289 = vpack.c.bf16 %v1157, %v1157
      %v1290 = vpack.c.bf16 %v1162, %v1162
      %v1291 = vpack.c.bf16 %v1165, %v1165
      %v1292 = vpack.c.bf16 %v1170, %v1170
      %v1293 = vpack.c.bf16 %v1173, %v1173
      %v1294 = vpack.c.bf16 %v1178, %v1178
      %v1295 = vpack.c.bf16 %v1181, %v1181
      %v1296 = vpack.c.bf16 %v1186, %v1186
      %v1297 = vpack.c.bf16 %v1189, %v1189
      %v1298 = vpack.c.bf16 %v1194, %v1194
      %v1299 = vpack.c.bf16 %v1197, %v1197
      %v1300 = vpack.c.bf16 %v1202, %v1202
      %v1301 = vpack.c.bf16 %v1205, %v1205
      %v1302 = vpack.c.bf16 %v1210, %v1210
      %v1303 = vpack.c.bf16 %v1213, %v1213
      %v1304 = vpack.c.bf16 %v1218, %v1218
      %v1305 = vpack.c.bf16 %v1221, %v1221
      %v1306 = vpack.c.bf16 %v1226, %v1226
      %v1307 = vpack.c.bf16 %v1229, %v1229
      %v1308 = vpack.c.bf16 %v1234, %v1234
      %v1309 = vpack.c.bf16 %v1237, %v1237
      %v1310 = vpack.c.bf16 %v1242, %v1242
      %v1311 = vpack.c.bf16 %v1245, %v1245
      %v1313 = vshrl.u32 %v1248, 16
      %v1315 = vrot.slane %v1313, 7
      %v1316 = vshll.u32 %v1248, 16
      %v1318 = vor.u32 %v1315, %v1316
      %v1320 = vshrl.u32 %v1249, 16
      %v1322 = vrot.slane %v1320, 7
      %v1323 = vshll.u32 %v1249, 16
      %v1325 = vor.u32 %v1322, %v1323
      %v1327 = vshrl.u32 %v1250, 16
      %v1329 = vrot.slane %v1327, 7
      %v1330 = vshll.u32 %v1250, 16
      %v1332 = vor.u32 %v1329, %v1330
      %v1334 = vshrl.u32 %v1251, 16
      %v1336 = vrot.slane %v1334, 7
      %v1337 = vshll.u32 %v1251, 16
      %v1339 = vor.u32 %v1336, %v1337
      %v1341 = vshrl.u32 %v1252, 16
      %v1343 = vrot.slane %v1341, 7
      %v1344 = vshll.u32 %v1252, 16
      %v1346 = vor.u32 %v1343, %v1344
      %v1348 = vshrl.u32 %v1253, 16
      %v1350 = vrot.slane %v1348, 7
      %v1351 = vshll.u32 %v1253, 16
      %v1353 = vor.u32 %v1350, %v1351
      %v1355 = vshrl.u32 %v1254, 16
      %v1357 = vrot.slane %v1355, 7
      %v1358 = vshll.u32 %v1254, 16
      %v1360 = vor.u32 %v1357, %v1358
      %v1362 = vshrl.u32 %v1255, 16
      %v1364 = vrot.slane %v1362, 7
      %v1365 = vshll.u32 %v1255, 16
      %v1367 = vor.u32 %v1364, %v1365
      %v1369 = vshrl.u32 %v1256, 16
      %v1371 = vrot.slane %v1369, 7
      %v1372 = vshll.u32 %v1256, 16
      %v1374 = vor.u32 %v1371, %v1372
      %v1376 = vshrl.u32 %v1257, 16
      %v1378 = vrot.slane %v1376, 7
      %v1379 = vshll.u32 %v1257, 16
      %v1381 = vor.u32 %v1378, %v1379
      %v1383 = vshrl.u32 %v1258, 16
      %v1385 = vrot.slane %v1383, 7
      %v1386 = vshll.u32 %v1258, 16
      %v1388 = vor.u32 %v1385, %v1386
      %v1390 = vshrl.u32 %v1259, 16
      %v1392 = vrot.slane %v1390, 7
      %v1393 = vshll.u32 %v1259, 16
      %v1395 = vor.u32 %v1392, %v1393
      %v1397 = vshrl.u32 %v1260, 16
      %v1399 = vrot.slane %v1397, 7
      %v1400 = vshll.u32 %v1260, 16
      %v1402 = vor.u32 %v1399, %v1400
      %v1404 = vshrl.u32 %v1261, 16
      %v1406 = vrot.slane %v1404, 7
      %v1407 = vshll.u32 %v1261, 16
      %v1409 = vor.u32 %v1406, %v1407
      %v1411 = vshrl.u32 %v1262, 16
      %v1413 = vrot.slane %v1411, 7
      %v1414 = vshll.u32 %v1262, 16
      %v1416 = vor.u32 %v1413, %v1414
      %v1418 = vshrl.u32 %v1263, 16
      %v1420 = vrot.slane %v1418, 7
      %v1421 = vshll.u32 %v1263, 16
      %v1423 = vor.u32 %v1420, %v1421
      %v1425 = vshrl.u32 %v1264, 16
      %v1427 = vrot.slane %v1425, 7
      %v1428 = vshll.u32 %v1264, 16
      %v1430 = vor.u32 %v1427, %v1428
      %v1432 = vshrl.u32 %v1265, 16
      %v1434 = vrot.slane %v1432, 7
      %v1435 = vshll.u32 %v1265, 16
      %v1437 = vor.u32 %v1434, %v1435
      %v1439 = vshrl.u32 %v1266, 16
      %v1441 = vrot.slane %v1439, 7
      %v1442 = vshll.u32 %v1266, 16
      %v1444 = vor.u32 %v1441, %v1442
      %v1446 = vshrl.u32 %v1267, 16
      %v1448 = vrot.slane %v1446, 7
      %v1449 = vshll.u32 %v1267, 16
      %v1451 = vor.u32 %v1448, %v1449
      %v1453 = vshrl.u32 %v1268, 16
      %v1455 = vrot.slane %v1453, 7
      %v1456 = vshll.u32 %v1268, 16
      %v1458 = vor.u32 %v1455, %v1456
      %v1460 = vshrl.u32 %v1269, 16
      %v1462 = vrot.slane %v1460, 7
      %v1463 = vshll.u32 %v1269, 16
      %v1465 = vor.u32 %v1462, %v1463
      %v1467 = vshrl.u32 %v1270, 16
      %v1469 = vrot.slane %v1467, 7
      %v1470 = vshll.u32 %v1270, 16
      %v1472 = vor.u32 %v1469, %v1470
      %v1474 = vshrl.u32 %v1271, 16
      %v1476 = vrot.slane %v1474, 7
      %v1477 = vshll.u32 %v1271, 16
      %v1479 = vor.u32 %v1476, %v1477
      %v1481 = vshrl.u32 %v1272, 16
      %v1483 = vrot.slane %v1481, 7
      %v1484 = vshll.u32 %v1272, 16
      %v1486 = vor.u32 %v1483, %v1484
      %v1488 = vshrl.u32 %v1273, 16
      %v1490 = vrot.slane %v1488, 7
      %v1491 = vshll.u32 %v1273, 16
      %v1493 = vor.u32 %v1490, %v1491
      %v1495 = vshrl.u32 %v1274, 16
      %v1497 = vrot.slane %v1495, 7
      %v1498 = vshll.u32 %v1274, 16
      %v1500 = vor.u32 %v1497, %v1498
      %v1502 = vshrl.u32 %v1275, 16
      %v1504 = vrot.slane %v1502, 7
      %v1505 = vshll.u32 %v1275, 16
      %v1507 = vor.u32 %v1504, %v1505
      %v1509 = vshrl.u32 %v1276, 16
      %v1511 = vrot.slane %v1509, 7
      %v1512 = vshll.u32 %v1276, 16
      %v1514 = vor.u32 %v1511, %v1512
      %v1516 = vshrl.u32 %v1277, 16
      %v1518 = vrot.slane %v1516, 7
      %v1519 = vshll.u32 %v1277, 16
      %v1521 = vor.u32 %v1518, %v1519
      %v1523 = vshrl.u32 %v1278, 16
      %v1525 = vrot.slane %v1523, 7
      %v1526 = vshll.u32 %v1278, 16
      %v1528 = vor.u32 %v1525, %v1526
      %v1530 = vshrl.u32 %v1279, 16
      %v1532 = vrot.slane %v1530, 7
      %v1533 = vshll.u32 %v1279, 16
      %v1535 = vor.u32 %v1532, %v1533
      %v1537 = vshrl.u32 %v1280, 16
      %v1539 = vrot.slane %v1537, 7
      %v1540 = vshll.u32 %v1280, 16
      %v1542 = vor.u32 %v1539, %v1540
      %v1544 = vshrl.u32 %v1281, 16
      %v1546 = vrot.slane %v1544, 7
      %v1547 = vshll.u32 %v1281, 16
      %v1549 = vor.u32 %v1546, %v1547
      %v1551 = vshrl.u32 %v1282, 16
      %v1553 = vrot.slane %v1551, 7
      %v1554 = vshll.u32 %v1282, 16
      %v1556 = vor.u32 %v1553, %v1554
      %v1558 = vshrl.u32 %v1283, 16
      %v1560 = vrot.slane %v1558, 7
      %v1561 = vshll.u32 %v1283, 16
      %v1563 = vor.u32 %v1560, %v1561
      %v1565 = vshrl.u32 %v1284, 16
      %v1567 = vrot.slane %v1565, 7
      %v1568 = vshll.u32 %v1284, 16
      %v1570 = vor.u32 %v1567, %v1568
      %v1572 = vshrl.u32 %v1285, 16
      %v1574 = vrot.slane %v1572, 7
      %v1575 = vshll.u32 %v1285, 16
      %v1577 = vor.u32 %v1574, %v1575
      %v1579 = vshrl.u32 %v1286, 16
      %v1581 = vrot.slane %v1579, 7
      %v1582 = vshll.u32 %v1286, 16
      %v1584 = vor.u32 %v1581, %v1582
      %v1586 = vshrl.u32 %v1287, 16
      %v1588 = vrot.slane %v1586, 7
      %v1589 = vshll.u32 %v1287, 16
      %v1591 = vor.u32 %v1588, %v1589
      %v1593 = vshrl.u32 %v1288, 16
      %v1595 = vrot.slane %v1593, 7
      %v1596 = vshll.u32 %v1288, 16
      %v1598 = vor.u32 %v1595, %v1596
      %v1600 = vshrl.u32 %v1289, 16
      %v1602 = vrot.slane %v1600, 7
      %v1603 = vshll.u32 %v1289, 16
      %v1605 = vor.u32 %v1602, %v1603
      %v1607 = vshrl.u32 %v1290, 16
      %v1609 = vrot.slane %v1607, 7
      %v1610 = vshll.u32 %v1290, 16
      %v1612 = vor.u32 %v1609, %v1610
      %v1614 = vshrl.u32 %v1291, 16
      %v1616 = vrot.slane %v1614, 7
      %v1617 = vshll.u32 %v1291, 16
      %v1619 = vor.u32 %v1616, %v1617
      %v1621 = vshrl.u32 %v1292, 16
      %v1623 = vrot.slane %v1621, 7
      %v1624 = vshll.u32 %v1292, 16
      %v1626 = vor.u32 %v1623, %v1624
      %v1628 = vshrl.u32 %v1293, 16
      %v1630 = vrot.slane %v1628, 7
      %v1631 = vshll.u32 %v1293, 16
      %v1633 = vor.u32 %v1630, %v1631
      %v1635 = vshrl.u32 %v1294, 16
      %v1637 = vrot.slane %v1635, 7
      %v1638 = vshll.u32 %v1294, 16
      %v1640 = vor.u32 %v1637, %v1638
      %v1642 = vshrl.u32 %v1295, 16
      %v1644 = vrot.slane %v1642, 7
      %v1645 = vshll.u32 %v1295, 16
      %v1647 = vor.u32 %v1644, %v1645
      %v1649 = vshrl.u32 %v1296, 16
      %v1651 = vrot.slane %v1649, 7
      %v1652 = vshll.u32 %v1296, 16
      %v1654 = vor.u32 %v1651, %v1652
      %v1656 = vshrl.u32 %v1297, 16
      %v1658 = vrot.slane %v1656, 7
      %v1659 = vshll.u32 %v1297, 16
      %v1661 = vor.u32 %v1658, %v1659
      %v1663 = vshrl.u32 %v1298, 16
      %v1665 = vrot.slane %v1663, 7
      %v1666 = vshll.u32 %v1298, 16
      %v1668 = vor.u32 %v1665, %v1666
      %v1670 = vshrl.u32 %v1299, 16
      %v1672 = vrot.slane %v1670, 7
      %v1673 = vshll.u32 %v1299, 16
      %v1675 = vor.u32 %v1672, %v1673
      %v1677 = vshrl.u32 %v1300, 16
      %v1679 = vrot.slane %v1677, 7
      %v1680 = vshll.u32 %v1300, 16
      %v1682 = vor.u32 %v1679, %v1680
      %v1684 = vshrl.u32 %v1301, 16
      %v1686 = vrot.slane %v1684, 7
      %v1687 = vshll.u32 %v1301, 16
      %v1689 = vor.u32 %v1686, %v1687
      %v1691 = vshrl.u32 %v1302, 16
      %v1693 = vrot.slane %v1691, 7
      %v1694 = vshll.u32 %v1302, 16
      %v1696 = vor.u32 %v1693, %v1694
      %v1698 = vshrl.u32 %v1303, 16
      %v1700 = vrot.slane %v1698, 7
      %v1701 = vshll.u32 %v1303, 16
      %v1703 = vor.u32 %v1700, %v1701
      %v1705 = vshrl.u32 %v1304, 16
      %v1707 = vrot.slane %v1705, 7
      %v1708 = vshll.u32 %v1304, 16
      %v1710 = vor.u32 %v1707, %v1708
      %v1712 = vshrl.u32 %v1305, 16
      %v1714 = vrot.slane %v1712, 7
      %v1715 = vshll.u32 %v1305, 16
      %v1717 = vor.u32 %v1714, %v1715
      %v1719 = vshrl.u32 %v1306, 16
      %v1721 = vrot.slane %v1719, 7
      %v1722 = vshll.u32 %v1306, 16
      %v1724 = vor.u32 %v1721, %v1722
      %v1726 = vshrl.u32 %v1307, 16
      %v1728 = vrot.slane %v1726, 7
      %v1729 = vshll.u32 %v1307, 16
      %v1731 = vor.u32 %v1728, %v1729
      %v1733 = vshrl.u32 %v1308, 16
      %v1735 = vrot.slane %v1733, 7
      %v1736 = vshll.u32 %v1308, 16
      %v1738 = vor.u32 %v1735, %v1736
      %v1740 = vshrl.u32 %v1309, 16
      %v1742 = vrot.slane %v1740, 7
      %v1743 = vshll.u32 %v1309, 16
      %v1745 = vor.u32 %v1742, %v1743
      %v1747 = vshrl.u32 %v1310, 16
      %v1749 = vrot.slane %v1747, 7
      %v1750 = vshll.u32 %v1310, 16
      %v1752 = vor.u32 %v1749, %v1750
      %v1754 = vshrl.u32 %v1311, 16
      %v1756 = vrot.slane %v1754, 7
      %v1757 = vshll.u32 %v1311, 16
      %v1759 = vor.u32 %v1756, %v1757
      %vm1824 = vcmask 1040384
      %vm1825 = vsmask.f32 256
      %vm1826 = vmand %vm1824, %vm1825
      %v1827 = vsel %vm1826, 0, %v1318
      %v1828 = vsel %vm1826, 0, %v1325
      %v1829 = vsel %vm1826, 0, %v1332
      %v1830 = vsel %vm1826, 0, %v1339
      %v1831 = vsel %vm1826, 0, %v1346
      %v1832 = vsel %vm1826, 0, %v1353
      %v1833 = vsel %vm1826, 0, %v1360
      %v1834 = vsel %vm1826, 0, %v1367
      %v1835 = vsel %vm1826, 0, %v1374
      %v1836 = vsel %vm1826, 0, %v1381
      %v1837 = vsel %vm1826, 0, %v1388
      %v1838 = vsel %vm1826, 0, %v1395
      %v1839 = vsel %vm1826, 0, %v1402
      %v1840 = vsel %vm1826, 0, %v1409
      %v1841 = vsel %vm1826, 0, %v1416
      %v1842 = vsel %vm1826, 0, %v1423
      %v1843 = vsel %vm1826, 0, %v1430
      %v1844 = vsel %vm1826, 0, %v1437
      %v1845 = vsel %vm1826, 0, %v1444
      %v1846 = vsel %vm1826, 0, %v1451
      %v1847 = vsel %vm1826, 0, %v1458
      %v1848 = vsel %vm1826, 0, %v1465
      %v1849 = vsel %vm1826, 0, %v1472
      %v1850 = vsel %vm1826, 0, %v1479
      %v1851 = vsel %vm1826, 0, %v1486
      %v1852 = vsel %vm1826, 0, %v1493
      %v1853 = vsel %vm1826, 0, %v1500
      %v1854 = vsel %vm1826, 0, %v1507
      %v1855 = vsel %vm1826, 0, %v1514
      %v1856 = vsel %vm1826, 0, %v1521
      %v1857 = vsel %vm1826, 0, %v1528
      %v1858 = vsel %vm1826, 0, %v1535
      %v1859 = vsel %vm1826, 0, %v1542
      %v1860 = vsel %vm1826, 0, %v1549
      %v1861 = vsel %vm1826, 0, %v1556
      %v1862 = vsel %vm1826, 0, %v1563
      %v1863 = vsel %vm1826, 0, %v1570
      %v1864 = vsel %vm1826, 0, %v1577
      %v1865 = vsel %vm1826, 0, %v1584
      %v1866 = vsel %vm1826, 0, %v1591
      %v1867 = vsel %vm1826, 0, %v1598
      %v1868 = vsel %vm1826, 0, %v1605
      %v1869 = vsel %vm1826, 0, %v1612
      %v1870 = vsel %vm1826, 0, %v1619
      %v1871 = vsel %vm1826, 0, %v1626
      %v1872 = vsel %vm1826, 0, %v1633
      %v1873 = vsel %vm1826, 0, %v1640
      %v1874 = vsel %vm1826, 0, %v1647
      %v1875 = vsel %vm1826, 0, %v1654
      %v1876 = vsel %vm1826, 0, %v1661
      %v1877 = vsel %vm1826, 0, %v1668
      %v1878 = vsel %vm1826, 0, %v1675
      %v1879 = vsel %vm1826, 0, %v1682
      %v1880 = vsel %vm1826, 0, %v1689
      %v1881 = vsel %vm1826, 0, %v1696
      %v1882 = vsel %vm1826, 0, %v1703
      %v1883 = vsel %vm1826, 0, %v1710
      %v1884 = vsel %vm1826, 0, %v1717
      %v1885 = vsel %vm1826, 0, %v1724
      %v1886 = vsel %vm1826, 0, %v1731
      %v1887 = vsel %vm1826, 0, %v1738
      %v1888 = vsel %vm1826, 0, %v1745
      %v1889 = vsel %vm1826, 0, %v1752
      %v1890 = vsel %vm1826, 0, %v1759
      %v1891 = vld [vmem:[%s2] sm:$0xf]
      %v1892 = vld [vmem:[%s2 + $0x4] sm:$0xf]
      %s1893 = scalar_lea.vmem %s2, 8
      %v1894 = vld [vmem:[%s1893] sm:$0xf]
      %v1895 = vld [vmem:[%s1893 + $0x4] sm:$0xf]
      %v1960 = vunpack.c.l.b16 %v1248
      %v1961 = vunpack.c.l.b16 %v1249
      %v1962 = vunpack.c.l.b16 %v1250
      %v1963 = vunpack.c.l.b16 %v1251
      %v1964 = vunpack.c.l.b16 %v1252
      %v1965 = vunpack.c.l.b16 %v1253
      %v1966 = vunpack.c.l.b16 %v1254
      %v1967 = vunpack.c.l.b16 %v1255
      %v1968 = vunpack.c.l.b16 %v1256
      %v1969 = vunpack.c.l.b16 %v1257
      %v1970 = vunpack.c.l.b16 %v1258
      %v1971 = vunpack.c.l.b16 %v1259
      %v1972 = vunpack.c.l.b16 %v1260
      %v1973 = vunpack.c.l.b16 %v1261
      %v1974 = vunpack.c.l.b16 %v1262
      %v1975 = vunpack.c.l.b16 %v1263
      %v1976 = vunpack.c.l.b16 %v1264
      %v1977 = vunpack.c.l.b16 %v1265
      %v1978 = vunpack.c.l.b16 %v1266
      %v1979 = vunpack.c.l.b16 %v1267
      %v1980 = vunpack.c.l.b16 %v1268
      %v1981 = vunpack.c.l.b16 %v1269
      %v1982 = vunpack.c.l.b16 %v1270
      %v1983 = vunpack.c.l.b16 %v1271
      %v1984 = vunpack.c.l.b16 %v1272
      %v1985 = vunpack.c.l.b16 %v1273
      %v1986 = vunpack.c.l.b16 %v1274
      %v1987 = vunpack.c.l.b16 %v1275
      %v1988 = vunpack.c.l.b16 %v1276
      %v1989 = vunpack.c.l.b16 %v1277
      %v1990 = vunpack.c.l.b16 %v1278
      %v1991 = vunpack.c.l.b16 %v1279
      %v1992 = vunpack.c.l.b16 %v1280
      %v1993 = vunpack.c.l.b16 %v1281
      %v1994 = vunpack.c.l.b16 %v1282
      %v1995 = vunpack.c.l.b16 %v1283
      %v1996 = vunpack.c.l.b16 %v1284
      %v1997 = vunpack.c.l.b16 %v1285
      %v1998 = vunpack.c.l.b16 %v1286
      %v1999 = vunpack.c.l.b16 %v1287
      %v2000 = vunpack.c.l.b16 %v1288
      %v2001 = vunpack.c.l.b16 %v1289
      %v2002 = vunpack.c.l.b16 %v1290
      %v2003 = vunpack.c.l.b16 %v1291
      %v2004 = vunpack.c.l.b16 %v1292
      %v2005 = vunpack.c.l.b16 %v1293
      %v2006 = vunpack.c.l.b16 %v1294
      %v2007 = vunpack.c.l.b16 %v1295
      %v2008 = vunpack.c.l.b16 %v1296
      %v2009 = vunpack.c.l.b16 %v1297
      %v2010 = vunpack.c.l.b16 %v1298
      %v2011 = vunpack.c.l.b16 %v1299
      %v2012 = vunpack.c.l.b16 %v1300
      %v2013 = vunpack.c.l.b16 %v1301
      %v2014 = vunpack.c.l.b16 %v1302
      %v2015 = vunpack.c.l.b16 %v1303
      %v2016 = vunpack.c.l.b16 %v1304
      %v2017 = vunpack.c.l.b16 %v1305
      %v2018 = vunpack.c.l.b16 %v1306
      %v2019 = vunpack.c.l.b16 %v1307
      %v2020 = vunpack.c.l.b16 %v1308
      %v2021 = vunpack.c.l.b16 %v1309
      %v2022 = vunpack.c.l.b16 %v1310
      %v2023 = vunpack.c.l.b16 %v1311
      %v2024 = vpack.c.b16 %v1961, %v1960
      %v2025 = vpack.c.b16 %v1963, %v1962
      %v2026 = vpack.c.b16 %v1965, %v1964
      %v2027 = vpack.c.b16 %v1967, %v1966
      %v2028 = vpack.c.b16 %v1969, %v1968
      %v2029 = vpack.c.b16 %v1971, %v1970
      %v2030 = vpack.c.b16 %v1973, %v1972
      %v2031 = vpack.c.b16 %v1975, %v1974
      %v2032 = vpack.c.b16 %v1977, %v1976
      %v2033 = vpack.c.b16 %v1979, %v1978
      %v2034 = vpack.c.b16 %v1981, %v1980
      %v2035 = vpack.c.b16 %v1983, %v1982
      %v2036 = vpack.c.b16 %v1985, %v1984
      %v2037 = vpack.c.b16 %v1987, %v1986
      %v2038 = vpack.c.b16 %v1989, %v1988
      %v2039 = vpack.c.b16 %v1991, %v1990
      %v2040 = vpack.c.b16 %v1993, %v1992
      %v2041 = vpack.c.b16 %v1995, %v1994
      %v2042 = vpack.c.b16 %v1997, %v1996
      %v2043 = vpack.c.b16 %v1999, %v1998
      %v2044 = vpack.c.b16 %v2001, %v2000
      %v2045 = vpack.c.b16 %v2003, %v2002
      %v2046 = vpack.c.b16 %v2005, %v2004
      %v2047 = vpack.c.b16 %v2007, %v2006
      %v2048 = vpack.c.b16 %v2009, %v2008
      %v2049 = vpack.c.b16 %v2011, %v2010
      %v2050 = vpack.c.b16 %v2013, %v2012
      %v2051 = vpack.c.b16 %v2015, %v2014
      %v2052 = vpack.c.b16 %v2017, %v2016
      %v2053 = vpack.c.b16 %v2019, %v2018
      %v2054 = vpack.c.b16 %v2021, %v2020
      %v2055 = vpack.c.b16 %v2023, %v2022
      %v2058 = vunpack.c.l.b16 %v1894
      %v2059 = vunpack.c.l.b16 %v1895
      %v2060 = vpack.c.b16 %v2059, %v2058
      %vm2062 = vcmask 130048
      %v2064 = vsel %vm2062, %v2024, 0
      %v2067 = vsel %vm2062, %v2025, 0
      %v2070 = vsel %vm2062, %v2026, 0
      %v2073 = vsel %vm2062, %v2027, 0
      %v2076 = vsel %vm2062, %v2028, 0
      %v2079 = vsel %vm2062, %v2029, 0
      %v2082 = vsel %vm2062, %v2030, 0
      %v2085 = vsel %vm2062, %v2031, 0
      %v2088 = vsel %vm2062, %v2032, 0
      %v2091 = vsel %vm2062, %v2033, 0
      %v2094 = vsel %vm2062, %v2034, 0
      %v2097 = vsel %vm2062, %v2035, 0
      %v2100 = vsel %vm2062, %v2036, 0
      %v2103 = vsel %vm2062, %v2037, 0
      %v2106 = vsel %vm2062, %v2038, 0
      %v2109 = vsel %vm2062, %v2039, 0
      %v2112 = vsel %vm2062, %v2040, 0
      %v2115 = vsel %vm2062, %v2041, 0
      %v2118 = vsel %vm2062, %v2042, 0
      %v2121 = vsel %vm2062, %v2043, 0
      %v2124 = vsel %vm2062, %v2044, 0
      %v2127 = vsel %vm2062, %v2045, 0
      %v2130 = vsel %vm2062, %v2046, 0
      %v2133 = vsel %vm2062, %v2047, 0
      %v2136 = vsel %vm2062, %v2048, 0
      %v2139 = vsel %vm2062, %v2049, 0
      %v2142 = vsel %vm2062, %v2050, 0
      %v2145 = vsel %vm2062, %v2051, 0
      %v2148 = vsel %vm2062, %v2052, 0
      %v2151 = vsel %vm2062, %v2053, 0
      %v2154 = vsel %vm2062, %v2054, 0
      %v2157 = vsel %vm2062, %v2055, 0
      %2159 = vmatprep.subr.bf16.mxu0 0
      %2160 = vmatpush1.bf16.msra.mxu0 %v2060
      %2161 = vmatprep.subr.bf16.mxu0 0
      %2162 = vmatpush1.bf16.msra.mxu0 0
      %2163 = vmatprep.subr.bf16.mxu0 0
      %2164 = vmatpush1.bf16.msra.mxu0 0
      %2165 = vmatprep.subr.bf16.mxu0 0
      %2166 = vmatpush1.bf16.msra.mxu0 0
      %2167 = vmatprep.subr.bf16.mxu0 0
      %2168 = vmatpush1.bf16.msra.mxu0 0
      %2169 = vmatprep.subr.bf16.mxu0 0
      %2170 = vmatpush1.bf16.msra.mxu0 0
      %2171 = vmatprep.subr.bf16.mxu0 0
      %2172 = vmatpush1.bf16.msra.mxu0 0
      %2173 = vmatprep.subr.bf16.mxu0 0
      %2174 = vmatpush1.bf16.msra.mxu0 0
      %2175 = vmatprep.subr.bf16.mxu0 0
      %2176 = vmatpush1.bf16.msra.mxu0 0
      %2177 = vmatprep.subr.bf16.mxu0 0
      %2178 = vmatpush1.bf16.msra.mxu0 0
      %2179 = vmatprep.subr.bf16.mxu0 0
      %2180 = vmatpush1.bf16.msra.mxu0 0
      %2181 = vmatprep.subr.bf16.mxu0 0
      %2182 = vmatpush1.bf16.msra.mxu0 0
      %2183 = vmatprep.subr.bf16.mxu0 0
      %2184 = vmatpush1.bf16.msra.mxu0 0
      %2185 = vmatprep.subr.bf16.mxu0 0
      %2186 = vmatpush1.bf16.msra.mxu0 0
      %2187 = vmatprep.subr.bf16.mxu0 0
      %2188 = vmatpush1.bf16.msra.mxu0 0
      %2189 = vmatprep.subr.bf16.mxu0 0
      %2190 = vmatpush1.bf16.msra.mxu0 0
      %2191 = vmatprep.mubr.bf16.mxu0 0
      %2192 = vmatmul.mubr.bf16.gmra.mrb[0].mxu0 %v2064
      %v2193 = vpop.f32.mrb[0].mxu0
      %v2194 = vadd.f32 0.0, %v2193
      %v2195 = vpop.f32.mrb[0].mxu0
      %v2196 = vpop.f32.mrb[0].mxu0
      %v2197 = vadd.f32 0.0, %v2196
      %v2198 = vpop.f32.mrb[0].mxu0
      %2199 = vmatprep.mubr.bf16.mxu0 0
      %2200 = vmatmul.mubr.bf16.gmra.mrb[0].mxu0 %v2067
      %v2201 = vpop.f32.mrb[0].mxu0
      %v2202 = vadd.f32 0.0, %v2201
      %v2203 = vpop.f32.mrb[0].mxu0
      %v2204 = vpop.f32.mrb[0].mxu0
      %v2205 = vadd.f32 0.0, %v2204
      %v2206 = vpop.f32.mrb[0].mxu0
      %2207 = vmatprep.mubr.bf16.mxu0 0
      %2208 = vmatmul.mubr.bf16.gmra.mrb[0].mxu0 %v2070
      %v2209 = vpop.f32.mrb[0].mxu0
      %v2210 = vadd.f32 0.0, %v2209
      %v2211 = vpop.f32.mrb[0].mxu0
      %v2212 = vpop.f32.mrb[0].mxu0
      %v2213 = vadd.f32 0.0, %v2212
      %v2214 = vpop.f32.mrb[0].mxu0
      %2215 = vmatprep.mubr.bf16.mxu0 0
      %2216 = vmatmul.mubr.bf16.gmra.mrb[0].mxu0 %v2073
      %v2217 = vpop.f32.mrb[0].mxu0
      %v2218 = vadd.f32 0.0, %v2217
      %v2219 = vpop.f32.mrb[0].mxu0
      %v2220 = vpop.f32.mrb[0].mxu0
      %v2221 = vadd.f32 0.0, %v2220
      %v2222 = vpop.f32.mrb[0].mxu0
      %2223 = vmatprep.mubr.bf16.mxu0 0
      %2224 = vmatmul.mubr.bf16.gmra.mrb[0].mxu0 %v2076
      %v2225 = vpop.f32.mrb[0].mxu0
      %v2226 = vadd.f32 0.0, %v2225
      %v2227 = vpop.f32.mrb[0].mxu0
      %v2228 = vpop.f32.mrb[0].mxu0
      %v2229 = vadd.f32 0.0, %v2228
      %v2230 = vpop.f32.mrb[0].mxu0
      %2231 = vmatprep.mubr.bf16.mxu0 0
      %2232 = vmatmul.mubr.bf16.gmra.mrb[0].mxu0 %v2079
      %v2233 = vpop.f32.mrb[0].mxu0
      %v2234 = vadd.f32 0.0, %v2233
      %v2235 = vpop.f32.mrb[0].mxu0
      %v2236 = vpop.f32.mrb[0].mxu0
      %v2237 = vadd.f32 0.0, %v2236
      %v2238 = vpop.f32.mrb[0].mxu0
      %2239 = vmatprep.mubr.bf16.mxu0 0
      %2240 = vmatmul.mubr.bf16.gmra.mrb[0].mxu0 %v2082
      %v2241 = vpop.f32.mrb[0].mxu0
      %v2242 = vadd.f32 0.0, %v2241
      %v2243 = vpop.f32.mrb[0].mxu0
      %v2244 = vpop.f32.mrb[0].mxu0
      %v2245 = vadd.f32 0.0, %v2244
      %v2246 = vpop.f32.mrb[0].mxu0
      %2247 = vmatprep.mubr.bf16.mxu0 0
      %2248 = vmatmul.mubr.bf16.gmra.mrb[0].mxu0 %v2085
      %v2249 = vpop.f32.mrb[0].mxu0
      %v2250 = vadd.f32 0.0, %v2249
      %v2251 = vpop.f32.mrb[0].mxu0
      %v2252 = vpop.f32.mrb[0].mxu0
      %v2253 = vadd.f32 0.0, %v2252
      %v2254 = vpop.f32.mrb[0].mxu0
      %2255 = vmatprep.mubr.bf16.mxu0 0
      %2256 = vmatmul.mubr.bf16.gmra.mrb[0].mxu0 %v2088
      %v2257 = vpop.f32.mrb[0].mxu0
      %v2258 = vadd.f32 0.0, %v2257
      %v2259 = vpop.f32.mrb[0].mxu0
      %v2260 = vpop.f32.mrb[0].mxu0
      %v2261 = vadd.f32 0.0, %v2260
      %v2262 = vpop.f32.mrb[0].mxu0
      %2263 = vmatprep.mubr.bf16.mxu0 0
      %2264 = vmatmul.mubr.bf16.gmra.mrb[0].mxu0 %v2091
      %v2265 = vpop.f32.mrb[0].mxu0
      %v2266 = vadd.f32 0.0, %v2265
      %v2267 = vpop.f32.mrb[0].mxu0
      %v2268 = vpop.f32.mrb[0].mxu0
      %v2269 = vadd.f32 0.0, %v2268
      %v2270 = vpop.f32.mrb[0].mxu0
      %2271 = vmatprep.mubr.bf16.mxu0 0
      %2272 = vmatmul.mubr.bf16.gmra.mrb[0].mxu0 %v2094
      %v2273 = vpop.f32.mrb[0].mxu0
      %v2274 = vadd.f32 0.0, %v2273
      %v2275 = vpop.f32.mrb[0].mxu0
      %v2276 = vpop.f32.mrb[0].mxu0
      %v2277 = vadd.f32 0.0, %v2276
      %v2278 = vpop.f32.mrb[0].mxu0
      %2279 = vmatprep.mubr.bf16.mxu0 0
      %2280 = vmatmul.mubr.bf16.gmra.mrb[0].mxu0 %v2097
      %v2281 = vpop.f32.mrb[0].mxu0
      %v2282 = vadd.f32 0.0, %v2281
      %v2283 = vpop.f32.mrb[0].mxu0
      %v2284 = vpop.f32.mrb[0].mxu0
      %v2285 = vadd.f32 0.0, %v2284
      %v2286 = vpop.f32.mrb[0].mxu0
      %2287 = vmatprep.mubr.bf16.mxu0 0
      %2288 = vmatmul.mubr.bf16.gmra.mrb[0].mxu0 %v2100
      %v2289 = vpop.f32.mrb[0].mxu0
      %v2290 = vadd.f32 0.0, %v2289
      %v2291 = vpop.f32.mrb[0].mxu0
      %v2292 = vpop.f32.mrb[0].mxu0
      %v2293 = vadd.f32 0.0, %v2292
      %v2294 = vpop.f32.mrb[0].mxu0
      %2295 = vmatprep.mubr.bf16.mxu0 0
      %2296 = vmatmul.mubr.bf16.gmra.mrb[0].mxu0 %v2103
      %v2297 = vpop.f32.mrb[0].mxu0
      %v2298 = vadd.f32 0.0, %v2297
      %v2299 = vpop.f32.mrb[0].mxu0
      %v2300 = vpop.f32.mrb[0].mxu0
      %v2301 = vadd.f32 0.0, %v2300
      %v2302 = vpop.f32.mrb[0].mxu0
      %2303 = vmatprep.mubr.bf16.mxu0 0
      %2304 = vmatmul.mubr.bf16.gmra.mrb[0].mxu0 %v2106
      %v2305 = vpop.f32.mrb[0].mxu0
      %v2306 = vadd.f32 0.0, %v2305
      %v2307 = vpop.f32.mrb[0].mxu0
      %v2308 = vpop.f32.mrb[0].mxu0
      %v2309 = vadd.f32 0.0, %v2308
      %v2310 = vpop.f32.mrb[0].mxu0
      %2311 = vmatprep.mubr.bf16.mxu0 0
      %2312 = vmatmul.mubr.bf16.gmra.mrb[0].mxu0 %v2109
      %v2313 = vpop.f32.mrb[0].mxu0
      %v2314 = vadd.f32 0.0, %v2313
      %v2315 = vpop.f32.mrb[0].mxu0
      %v2316 = vpop.f32.mrb[0].mxu0
      %v2317 = vadd.f32 0.0, %v2316
      %v2318 = vpop.f32.mrb[0].mxu0
      %2319 = vmatprep.mubr.bf16.mxu0 0
      %2320 = vmatmul.mubr.bf16.gmra.mrb[0].mxu0 %v2112
      %v2321 = vpop.f32.mrb[0].mxu0
      %v2322 = vadd.f32 0.0, %v2321
      %v2323 = vpop.f32.mrb[0].mxu0
      %v2324 = vpop.f32.mrb[0].mxu0
      %v2325 = vadd.f32 0.0, %v2324
      %v2326 = vpop.f32.mrb[0].mxu0
      %2327 = vmatprep.mubr.bf16.mxu0 0
      %2328 = vmatmul.mubr.bf16.gmra.mrb[0].mxu0 %v2115
      %v2329 = vpop.f32.mrb[0].mxu0
      %v2330 = vadd.f32 0.0, %v2329
      %v2331 = vpop.f32.mrb[0].mxu0
      %v2332 = vpop.f32.mrb[0].mxu0
      %v2333 = vadd.f32 0.0, %v2332
      %v2334 = vpop.f32.mrb[0].mxu0
      %2335 = vmatprep.mubr.bf16.mxu0 0
      %2336 = vmatmul.mubr.bf16.gmra.mrb[0].mxu0 %v2118
      %v2337 = vpop.f32.mrb[0].mxu0
      %v2338 = vadd.f32 0.0, %v2337
      %v2339 = vpop.f32.mrb[0].mxu0
      %v2340 = vpop.f32.mrb[0].mxu0
      %v2341 = vadd.f32 0.0, %v2340
      %v2342 = vpop.f32.mrb[0].mxu0
      %2343 = vmatprep.mubr.bf16.mxu0 0
      %2344 = vmatmul.mubr.bf16.gmra.mrb[0].mxu0 %v2121
      %v2345 = vpop.f32.mrb[0].mxu0
      %v2346 = vadd.f32 0.0, %v2345
      %v2347 = vpop.f32.mrb[0].mxu0
      %v2348 = vpop.f32.mrb[0].mxu0
      %v2349 = vadd.f32 0.0, %v2348
      %v2350 = vpop.f32.mrb[0].mxu0
      %2351 = vmatprep.mubr.bf16.mxu0 0
      %2352 = vmatmul.mubr.bf16.gmra.mrb[0].mxu0 %v2124
      %v2353 = vpop.f32.mrb[0].mxu0
      %v2354 = vadd.f32 0.0, %v2353
      %v2355 = vpop.f32.mrb[0].mxu0
      %v2356 = vpop.f32.mrb[0].mxu0
      %v2357 = vadd.f32 0.0, %v2356
      %v2358 = vpop.f32.mrb[0].mxu0
      %2359 = vmatprep.mubr.bf16.mxu0 0
      %2360 = vmatmul.mubr.bf16.gmra.mrb[0].mxu0 %v2127
      %v2361 = vpop.f32.mrb[0].mxu0
      %v2362 = vadd.f32 0.0, %v2361
      %v2363 = vpop.f32.mrb[0].mxu0
      %v2364 = vpop.f32.mrb[0].mxu0
      %v2365 = vadd.f32 0.0, %v2364
      %v2366 = vpop.f32.mrb[0].mxu0
      %2367 = vmatprep.mubr.bf16.mxu0 0
      %2368 = vmatmul.mubr.bf16.gmra.mrb[0].mxu0 %v2130
      %v2369 = vpop.f32.mrb[0].mxu0
      %v2370 = vadd.f32 0.0, %v2369
      %v2371 = vpop.f32.mrb[0].mxu0
      %v2372 = vpop.f32.mrb[0].mxu0
      %v2373 = vadd.f32 0.0, %v2372
      %v2374 = vpop.f32.mrb[0].mxu0
      %2375 = vmatprep.mubr.bf16.mxu0 0
      %2376 = vmatmul.mubr.bf16.gmra.mrb[0].mxu0 %v2133
      %v2377 = vpop.f32.mrb[0].mxu0
      %v2378 = vadd.f32 0.0, %v2377
      %v2379 = vpop.f32.mrb[0].mxu0
      %v2380 = vpop.f32.mrb[0].mxu0
      %v2381 = vadd.f32 0.0, %v2380
      %v2382 = vpop.f32.mrb[0].mxu0
      %2383 = vmatprep.mubr.bf16.mxu0 0
      %2384 = vmatmul.mubr.bf16.gmra.mrb[0].mxu0 %v2136
      %v2385 = vpop.f32.mrb[0].mxu0
      %v2386 = vadd.f32 0.0, %v2385
      %v2387 = vpop.f32.mrb[0].mxu0
      %v2388 = vpop.f32.mrb[0].mxu0
      %v2389 = vadd.f32 0.0, %v2388
      %v2390 = vpop.f32.mrb[0].mxu0
      %2391 = vmatprep.mubr.bf16.mxu0 0
      %2392 = vmatmul.mubr.bf16.gmra.mrb[0].mxu0 %v2139
      %v2393 = vpop.f32.mrb[0].mxu0
      %v2394 = vadd.f32 0.0, %v2393
      %v2395 = vpop.f32.mrb[0].mxu0
      %v2396 = vpop.f32.mrb[0].mxu0
      %v2397 = vadd.f32 0.0, %v2396
      %v2398 = vpop.f32.mrb[0].mxu0
      %2399 = vmatprep.mubr.bf16.mxu0 0
      %2400 = vmatmul.mubr.bf16.gmra.mrb[0].mxu0 %v2142
      %v2401 = vpop.f32.mrb[0].mxu0
      %v2402 = vadd.f32 0.0, %v2401
      %v2403 = vpop.f32.mrb[0].mxu0
      %v2404 = vpop.f32.mrb[0].mxu0
      %v2405 = vadd.f32 0.0, %v2404
      %v2406 = vpop.f32.mrb[0].mxu0
      %2407 = vmatprep.mubr.bf16.mxu0 0
      %2408 = vmatmul.mubr.bf16.gmra.mrb[0].mxu0 %v2145
      %v2409 = vpop.f32.mrb[0].mxu0
      %v2410 = vadd.f32 0.0, %v2409
      %v2411 = vpop.f32.mrb[0].mxu0
      %v2412 = vpop.f32.mrb[0].mxu0
      %v2413 = vadd.f32 0.0, %v2412
      %v2414 = vpop.f32.mrb[0].mxu0
      %2415 = vmatprep.mubr.bf16.mxu0 0
      %2416 = vmatmul.mubr.bf16.gmra.mrb[0].mxu0 %v2148
      %v2417 = vpop.f32.mrb[0].mxu0
      %v2418 = vadd.f32 0.0, %v2417
      %v2419 = vpop.f32.mrb[0].mxu0
      %v2420 = vpop.f32.mrb[0].mxu0
      %v2421 = vadd.f32 0.0, %v2420
      %v2422 = vpop.f32.mrb[0].mxu0
      %2423 = vmatprep.mubr.bf16.mxu0 0
      %2424 = vmatmul.mubr.bf16.gmra.mrb[0].mxu0 %v2151
      %v2425 = vpop.f32.mrb[0].mxu0
      %v2426 = vadd.f32 0.0, %v2425
      %v2427 = vpop.f32.mrb[0].mxu0
      %v2428 = vpop.f32.mrb[0].mxu0
      %v2429 = vadd.f32 0.0, %v2428
      %v2430 = vpop.f32.mrb[0].mxu0
      %2431 = vmatprep.mubr.bf16.mxu0 0
      %2432 = vmatmul.mubr.bf16.gmra.mrb[0].mxu0 %v2154
      %v2433 = vpop.f32.mrb[0].mxu0
      %v2434 = vadd.f32 0.0, %v2433
      %v2435 = vpop.f32.mrb[0].mxu0
      %v2436 = vpop.f32.mrb[0].mxu0
      %v2437 = vadd.f32 0.0, %v2436
      %v2438 = vpop.f32.mrb[0].mxu0
      %2439 = vmatprep.mubr.bf16.mxu0 0
      %2440 = vmatmul.mubr.bf16.gmra.mrb[0].mxu0 %v2157
      %v2441 = vpop.f32.mrb[0].mxu0
      %v2442 = vadd.f32 0.0, %v2441
      %v2443 = vpop.f32.mrb[0].mxu0
      %v2444 = vpop.f32.mrb[0].mxu0
      %v2445 = vadd.f32 0.0, %v2444
      %v2446 = vpop.f32.mrb[0].mxu0
      %2447 = vdwg.mxu0
      %v2512 = vunpack.c.l.b16 %v1827
      %v2513 = vunpack.c.l.b16 %v1828
      %v2514 = vunpack.c.l.b16 %v1829
      %v2515 = vunpack.c.l.b16 %v1830
      %v2516 = vunpack.c.l.b16 %v1831
      %v2517 = vunpack.c.l.b16 %v1832
      %v2518 = vunpack.c.l.b16 %v1833
      %v2519 = vunpack.c.l.b16 %v1834
      %v2520 = vunpack.c.l.b16 %v1835
      %v2521 = vunpack.c.l.b16 %v1836
      %v2522 = vunpack.c.l.b16 %v1837
      %v2523 = vunpack.c.l.b16 %v1838
      %v2524 = vunpack.c.l.b16 %v1839
      %v2525 = vunpack.c.l.b16 %v1840
      %v2526 = vunpack.c.l.b16 %v1841
      %v2527 = vunpack.c.l.b16 %v1842
      %v2528 = vunpack.c.l.b16 %v1843
      %v2529 = vunpack.c.l.b16 %v1844
      %v2530 = vunpack.c.l.b16 %v1845
      %v2531 = vunpack.c.l.b16 %v1846
      %v2532 = vunpack.c.l.b16 %v1847
      %v2533 = vunpack.c.l.b16 %v1848
      %v2534 = vunpack.c.l.b16 %v1849
      %v2535 = vunpack.c.l.b16 %v1850
      %v2536 = vunpack.c.l.b16 %v1851
      %v2537 = vunpack.c.l.b16 %v1852
      %v2538 = vunpack.c.l.b16 %v1853
      %v2539 = vunpack.c.l.b16 %v1854
      %v2540 = vunpack.c.l.b16 %v1855
      %v2541 = vunpack.c.l.b16 %v1856
      %v2542 = vunpack.c.l.b16 %v1857
      %v2543 = vunpack.c.l.b16 %v1858
      %v2544 = vunpack.c.l.b16 %v1859
      %v2545 = vunpack.c.l.b16 %v1860
      %v2546 = vunpack.c.l.b16 %v1861
      %v2547 = vunpack.c.l.b16 %v1862
      %v2548 = vunpack.c.l.b16 %v1863
      %v2549 = vunpack.c.l.b16 %v1864
      %v2550 = vunpack.c.l.b16 %v1865
      %v2551 = vunpack.c.l.b16 %v1866
      %v2552 = vunpack.c.l.b16 %v1867
      %v2553 = vunpack.c.l.b16 %v1868
      %v2554 = vunpack.c.l.b16 %v1869
      %v2555 = vunpack.c.l.b16 %v1870
      %v2556 = vunpack.c.l.b16 %v1871
      %v2557 = vunpack.c.l.b16 %v1872
      %v2558 = vunpack.c.l.b16 %v1873
      %v2559 = vunpack.c.l.b16 %v1874
      %v2560 = vunpack.c.l.b16 %v1875
      %v2561 = vunpack.c.l.b16 %v1876
      %v2562 = vunpack.c.l.b16 %v1877
      %v2563 = vunpack.c.l.b16 %v1878
      %v2564 = vunpack.c.l.b16 %v1879
      %v2565 = vunpack.c.l.b16 %v1880
      %v2566 = vunpack.c.l.b16 %v1881
      %v2567 = vunpack.c.l.b16 %v1882
      %v2568 = vunpack.c.l.b16 %v1883
      %v2569 = vunpack.c.l.b16 %v1884
      %v2570 = vunpack.c.l.b16 %v1885
      %v2571 = vunpack.c.l.b16 %v1886
      %v2572 = vunpack.c.l.b16 %v1887
      %v2573 = vunpack.c.l.b16 %v1888
      %v2574 = vunpack.c.l.b16 %v1889
      %v2575 = vunpack.c.l.b16 %v1890
      %v2576 = vpack.c.b16 %v2513, %v2512
      %v2577 = vpack.c.b16 %v2515, %v2514
      %v2578 = vpack.c.b16 %v2517, %v2516
      %v2579 = vpack.c.b16 %v2519, %v2518
      %v2580 = vpack.c.b16 %v2521, %v2520
      %v2581 = vpack.c.b16 %v2523, %v2522
      %v2582 = vpack.c.b16 %v2525, %v2524
      %v2583 = vpack.c.b16 %v2527, %v2526
      %v2584 = vpack.c.b16 %v2529, %v2528
      %v2585 = vpack.c.b16 %v2531, %v2530
      %v2586 = vpack.c.b16 %v2533, %v2532
      %v2587 = vpack.c.b16 %v2535, %v2534
      %v2588 = vpack.c.b16 %v2537, %v2536
      %v2589 = vpack.c.b16 %v2539, %v2538
      %v2590 = vpack.c.b16 %v2541, %v2540
      %v2591 = vpack.c.b16 %v2543, %v2542
      %v2592 = vpack.c.b16 %v2545, %v2544
      %v2593 = vpack.c.b16 %v2547, %v2546
      %v2594 = vpack.c.b16 %v2549, %v2548
      %v2595 = vpack.c.b16 %v2551, %v2550
      %v2596 = vpack.c.b16 %v2553, %v2552
      %v2597 = vpack.c.b16 %v2555, %v2554
      %v2598 = vpack.c.b16 %v2557, %v2556
      %v2599 = vpack.c.b16 %v2559, %v2558
      %v2600 = vpack.c.b16 %v2561, %v2560
      %v2601 = vpack.c.b16 %v2563, %v2562
      %v2602 = vpack.c.b16 %v2565, %v2564
      %v2603 = vpack.c.b16 %v2567, %v2566
      %v2604 = vpack.c.b16 %v2569, %v2568
      %v2605 = vpack.c.b16 %v2571, %v2570
      %v2606 = vpack.c.b16 %v2573, %v2572
      %v2607 = vpack.c.b16 %v2575, %v2574
      %v2610 = vunpack.c.l.b16 %v1891
      %v2611 = vunpack.c.l.b16 %v1892
      %v2612 = vpack.c.b16 %v2611, %v2610
      %v2615 = vsel %vm2062, %v2576, 0
      %v2618 = vsel %vm2062, %v2577, 0
      %v2621 = vsel %vm2062, %v2578, 0
      %v2624 = vsel %vm2062, %v2579, 0
      %v2627 = vsel %vm2062, %v2580, 0
      %v2630 = vsel %vm2062, %v2581, 0
      %v2633 = vsel %vm2062, %v2582, 0
      %v2636 = vsel %vm2062, %v2583, 0
      %v2639 = vsel %vm2062, %v2584, 0
      %v2642 = vsel %vm2062, %v2585, 0
      %v2645 = vsel %vm2062, %v2586, 0
      %v2648 = vsel %vm2062, %v2587, 0
      %v2651 = vsel %vm2062, %v2588, 0
      %v2654 = vsel %vm2062, %v2589, 0
      %v2657 = vsel %vm2062, %v2590, 0
      %v2660 = vsel %vm2062, %v2591, 0
      %v2663 = vsel %vm2062, %v2592, 0
      %v2666 = vsel %vm2062, %v2593, 0
      %v2669 = vsel %vm2062, %v2594, 0
      %v2672 = vsel %vm2062, %v2595, 0
      %v2675 = vsel %vm2062, %v2596, 0
      %v2678 = vsel %vm2062, %v2597, 0
      %v2681 = vsel %vm2062, %v2598, 0
      %v2684 = vsel %vm2062, %v2599, 0
      %v2687 = vsel %vm2062, %v2600, 0
      %v2690 = vsel %vm2062, %v2601, 0
      %v2693 = vsel %vm2062, %v2602, 0
      %v2696 = vsel %vm2062, %v2603, 0
      %v2699 = vsel %vm2062, %v2604, 0
      %v2702 = vsel %vm2062, %v2605, 0
      %v2705 = vsel %vm2062, %v2606, 0
      %v2708 = vsel %vm2062, %v2607, 0
      %2710 = vmatprep.subr.bf16.mxu0 0
      %2711 = vmatpush1.bf16.msra.mxu0 %v2612
      %2712 = vmatprep.subr.bf16.mxu0 0
      %2713 = vmatpush1.bf16.msra.mxu0 0
      %2714 = vmatprep.subr.bf16.mxu0 0
      %2715 = vmatpush1.bf16.msra.mxu0 0
      %2716 = vmatprep.subr.bf16.mxu0 0
      %2717 = vmatpush1.bf16.msra.mxu0 0
      %2718 = vmatprep.subr.bf16.mxu0 0
      %2719 = vmatpush1.bf16.msra.mxu0 0
      %2720 = vmatprep.subr.bf16.mxu0 0
      %2721 = vmatpush1.bf16.msra.mxu0 0
      %2722 = vmatprep.subr.bf16.mxu0 0
      %2723 = vmatpush1.bf16.msra.mxu0 0
      %2724 = vmatprep.subr.bf16.mxu0 0
      %2725 = vmatpush1.bf16.msra.mxu0 0
      %2726 = vmatprep.subr.bf16.mxu0 0
      %2727 = vmatpush1.bf16.msra.mxu0 0
      %2728 = vmatprep.subr.bf16.mxu0 0
      %2729 = vmatpush1.bf16.msra.mxu0 0
      %2730 = vmatprep.subr.bf16.mxu0 0
      %2731 = vmatpush1.bf16.msra.mxu0 0
      %2732 = vmatprep.subr.bf16.mxu0 0
      %2733 = vmatpush1.bf16.msra.mxu0 0
      %2734 = vmatprep.subr.bf16.mxu0 0
      %2735 = vmatpush1.bf16.msra.mxu0 0
      %2736 = vmatprep.subr.bf16.mxu0 0
      %2737 = vmatpush1.bf16.msra.mxu0 0
      %2738 = vmatprep.subr.bf16.mxu0 0
      %2739 = vmatpush1.bf16.msra.mxu0 0
      %2740 = vmatprep.subr.bf16.mxu0 0
      %2741 = vmatpush1.bf16.msra.mxu0 0
      %2742 = vmatprep.mubr.bf16.mxu0 0
      %2743 = vmatmul.mubr.bf16.gmra.mrb[0].mxu0 %v2615
      %v2744 = vpop.f32.mrb[0].mxu0
      %v2745 = vadd.f32 %v2194, %v2744
      %v2746 = vpop.f32.mrb[0].mxu0
      %v2747 = vpop.f32.mrb[0].mxu0
      %v2748 = vadd.f32 %v2197, %v2747
      %v2749 = vpop.f32.mrb[0].mxu0
      %2750 = vmatprep.mubr.bf16.mxu0 0
      %2751 = vmatmul.mubr.bf16.gmra.mrb[0].mxu0 %v2618
      %v2752 = vpop.f32.mrb[0].mxu0
      %v2753 = vadd.f32 %v2202, %v2752
      %v2754 = vpop.f32.mrb[0].mxu0
      %v2755 = vpop.f32.mrb[0].mxu0
      %v2756 = vadd.f32 %v2205, %v2755
      %v2757 = vpop.f32.mrb[0].mxu0
      %2758 = vmatprep.mubr.bf16.mxu0 0
      %2759 = vmatmul.mubr.bf16.gmra.mrb[0].mxu0 %v2621
      %v2760 = vpop.f32.mrb[0].mxu0
      %v2761 = vadd.f32 %v2210, %v2760
      %v2762 = vpop.f32.mrb[0].mxu0
      %v2763 = vpop.f32.mrb[0].mxu0
      %v2764 = vadd.f32 %v2213, %v2763
      %v2765 = vpop.f32.mrb[0].mxu0
      %2766 = vmatprep.mubr.bf16.mxu0 0
      %2767 = vmatmul.mubr.bf16.gmra.mrb[0].mxu0 %v2624
      %v2768 = vpop.f32.mrb[0].mxu0
      %v2769 = vadd.f32 %v2218, %v2768
      %v2770 = vpop.f32.mrb[0].mxu0
      %v2771 = vpop.f32.mrb[0].mxu0
      %v2772 = vadd.f32 %v2221, %v2771
      %v2773 = vpop.f32.mrb[0].mxu0
      %2774 = vmatprep.mubr.bf16.mxu0 0
      %2775 = vmatmul.mubr.bf16.gmra.mrb[0].mxu0 %v2627
      %v2776 = vpop.f32.mrb[0].mxu0
      %v2777 = vadd.f32 %v2226, %v2776
      %v2778 = vpop.f32.mrb[0].mxu0
      %v2779 = vpop.f32.mrb[0].mxu0
      %v2780 = vadd.f32 %v2229, %v2779
      %v2781 = vpop.f32.mrb[0].mxu0
      %2782 = vmatprep.mubr.bf16.mxu0 0
      %2783 = vmatmul.mubr.bf16.gmra.mrb[0].mxu0 %v2630
      %v2784 = vpop.f32.mrb[0].mxu0
      %v2785 = vadd.f32 %v2234, %v2784
      %v2786 = vpop.f32.mrb[0].mxu0
      %v2787 = vpop.f32.mrb[0].mxu0
      %v2788 = vadd.f32 %v2237, %v2787
      %v2789 = vpop.f32.mrb[0].mxu0
      %2790 = vmatprep.mubr.bf16.mxu0 0
      %2791 = vmatmul.mubr.bf16.gmra.mrb[0].mxu0 %v2633
      %v2792 = vpop.f32.mrb[0].mxu0
      %v2793 = vadd.f32 %v2242, %v2792
      %v2794 = vpop.f32.mrb[0].mxu0
      %v2795 = vpop.f32.mrb[0].mxu0
      %v2796 = vadd.f32 %v2245, %v2795
      %v2797 = vpop.f32.mrb[0].mxu0
      %2798 = vmatprep.mubr.bf16.mxu0 0
      %2799 = vmatmul.mubr.bf16.gmra.mrb[0].mxu0 %v2636
      %v2800 = vpop.f32.mrb[0].mxu0
      %v2801 = vadd.f32 %v2250, %v2800
      %v2802 = vpop.f32.mrb[0].mxu0
      %v2803 = vpop.f32.mrb[0].mxu0
      %v2804 = vadd.f32 %v2253, %v2803
      %v2805 = vpop.f32.mrb[0].mxu0
      %2806 = vmatprep.mubr.bf16.mxu0 0
      %2807 = vmatmul.mubr.bf16.gmra.mrb[0].mxu0 %v2639
      %v2808 = vpop.f32.mrb[0].mxu0
      %v2809 = vadd.f32 %v2258, %v2808
      %v2810 = vpop.f32.mrb[0].mxu0
      %v2811 = vpop.f32.mrb[0].mxu0
      %v2812 = vadd.f32 %v2261, %v2811
      %v2813 = vpop.f32.mrb[0].mxu0
      %2814 = vmatprep.mubr.bf16.mxu0 0
      %2815 = vmatmul.mubr.bf16.gmra.mrb[0].mxu0 %v2642
      %v2816 = vpop.f32.mrb[0].mxu0
      %v2817 = vadd.f32 %v2266, %v2816
      %v2818 = vpop.f32.mrb[0].mxu0
      %v2819 = vpop.f32.mrb[0].mxu0
      %v2820 = vadd.f32 %v2269, %v2819
      %v2821 = vpop.f32.mrb[0].mxu0
      %2822 = vmatprep.mubr.bf16.mxu0 0
      %2823 = vmatmul.mubr.bf16.gmra.mrb[0].mxu0 %v2645
      %v2824 = vpop.f32.mrb[0].mxu0
      %v2825 = vadd.f32 %v2274, %v2824
      %v2826 = vpop.f32.mrb[0].mxu0
      %v2827 = vpop.f32.mrb[0].mxu0
      %v2828 = vadd.f32 %v2277, %v2827
      %v2829 = vpop.f32.mrb[0].mxu0
      %2830 = vmatprep.mubr.bf16.mxu0 0
      %2831 = vmatmul.mubr.bf16.gmra.mrb[0].mxu0 %v2648
      %v2832 = vpop.f32.mrb[0].mxu0
      %v2833 = vadd.f32 %v2282, %v2832
      %v2834 = vpop.f32.mrb[0].mxu0
      %v2835 = vpop.f32.mrb[0].mxu0
      %v2836 = vadd.f32 %v2285, %v2835
      %v2837 = vpop.f32.mrb[0].mxu0
      %2838 = vmatprep.mubr.bf16.mxu0 0
      %2839 = vmatmul.mubr.bf16.gmra.mrb[0].mxu0 %v2651
      %v2840 = vpop.f32.mrb[0].mxu0
      %v2841 = vadd.f32 %v2290, %v2840
      %v2842 = vpop.f32.mrb[0].mxu0
      %v2843 = vpop.f32.mrb[0].mxu0
      %v2844 = vadd.f32 %v2293, %v2843
      %v2845 = vpop.f32.mrb[0].mxu0
      %2846 = vmatprep.mubr.bf16.mxu0 0
      %2847 = vmatmul.mubr.bf16.gmra.mrb[0].mxu0 %v2654
      %v2848 = vpop.f32.mrb[0].mxu0
      %v2849 = vadd.f32 %v2298, %v2848
      %v2850 = vpop.f32.mrb[0].mxu0
      %v2851 = vpop.f32.mrb[0].mxu0
      %v2852 = vadd.f32 %v2301, %v2851
      %v2853 = vpop.f32.mrb[0].mxu0
      %2854 = vmatprep.mubr.bf16.mxu0 0
      %2855 = vmatmul.mubr.bf16.gmra.mrb[0].mxu0 %v2657
      %v2856 = vpop.f32.mrb[0].mxu0
      %v2857 = vadd.f32 %v2306, %v2856
      %v2858 = vpop.f32.mrb[0].mxu0
      %v2859 = vpop.f32.mrb[0].mxu0
      %v2860 = vadd.f32 %v2309, %v2859
      %v2861 = vpop.f32.mrb[0].mxu0
      %2862 = vmatprep.mubr.bf16.mxu0 0
      %2863 = vmatmul.mubr.bf16.gmra.mrb[0].mxu0 %v2660
      %v2864 = vpop.f32.mrb[0].mxu0
      %v2865 = vadd.f32 %v2314, %v2864
      %v2866 = vpop.f32.mrb[0].mxu0
      %v2867 = vpop.f32.mrb[0].mxu0
      %v2868 = vadd.f32 %v2317, %v2867
      %v2869 = vpop.f32.mrb[0].mxu0
      %2870 = vmatprep.mubr.bf16.mxu0 0
      %2871 = vmatmul.mubr.bf16.gmra.mrb[0].mxu0 %v2663
      %v2872 = vpop.f32.mrb[0].mxu0
      %v2873 = vadd.f32 %v2322, %v2872
      %v2874 = vpop.f32.mrb[0].mxu0
      %v2875 = vpop.f32.mrb[0].mxu0
      %v2876 = vadd.f32 %v2325, %v2875
      %v2877 = vpop.f32.mrb[0].mxu0
      %2878 = vmatprep.mubr.bf16.mxu0 0
      %2879 = vmatmul.mubr.bf16.gmra.mrb[0].mxu0 %v2666
      %v2880 = vpop.f32.mrb[0].mxu0
      %v2881 = vadd.f32 %v2330, %v2880
      %v2882 = vpop.f32.mrb[0].mxu0
      %v2883 = vpop.f32.mrb[0].mxu0
      %v2884 = vadd.f32 %v2333, %v2883
      %v2885 = vpop.f32.mrb[0].mxu0
      %2886 = vmatprep.mubr.bf16.mxu0 0
      %2887 = vmatmul.mubr.bf16.gmra.mrb[0].mxu0 %v2669
      %v2888 = vpop.f32.mrb[0].mxu0
      %v2889 = vadd.f32 %v2338, %v2888
      %v2890 = vpop.f32.mrb[0].mxu0
      %v2891 = vpop.f32.mrb[0].mxu0
      %v2892 = vadd.f32 %v2341, %v2891
      %v2893 = vpop.f32.mrb[0].mxu0
      %2894 = vmatprep.mubr.bf16.mxu0 0
      %2895 = vmatmul.mubr.bf16.gmra.mrb[0].mxu0 %v2672
      %v2896 = vpop.f32.mrb[0].mxu0
      %v2897 = vadd.f32 %v2346, %v2896
      %v2898 = vpop.f32.mrb[0].mxu0
      %v2899 = vpop.f32.mrb[0].mxu0
      %v2900 = vadd.f32 %v2349, %v2899
      %v2901 = vpop.f32.mrb[0].mxu0
      %2902 = vmatprep.mubr.bf16.mxu0 0
      %2903 = vmatmul.mubr.bf16.gmra.mrb[0].mxu0 %v2675
      %v2904 = vpop.f32.mrb[0].mxu0
      %v2905 = vadd.f32 %v2354, %v2904
      %v2906 = vpop.f32.mrb[0].mxu0
      %v2907 = vpop.f32.mrb[0].mxu0
      %v2908 = vadd.f32 %v2357, %v2907
      %v2909 = vpop.f32.mrb[0].mxu0
      %2910 = vmatprep.mubr.bf16.mxu0 0
      %2911 = vmatmul.mubr.bf16.gmra.mrb[0].mxu0 %v2678
      %v2912 = vpop.f32.mrb[0].mxu0
      %v2913 = vadd.f32 %v2362, %v2912
      %v2914 = vpop.f32.mrb[0].mxu0
      %v2915 = vpop.f32.mrb[0].mxu0
      %v2916 = vadd.f32 %v2365, %v2915
      %v2917 = vpop.f32.mrb[0].mxu0
      %2918 = vmatprep.mubr.bf16.mxu0 0
      %2919 = vmatmul.mubr.bf16.gmra.mrb[0].mxu0 %v2681
      %v2920 = vpop.f32.mrb[0].mxu0
      %v2921 = vadd.f32 %v2370, %v2920
      %v2922 = vpop.f32.mrb[0].mxu0
      %v2923 = vpop.f32.mrb[0].mxu0
      %v2924 = vadd.f32 %v2373, %v2923
      %v2925 = vpop.f32.mrb[0].mxu0
      %2926 = vmatprep.mubr.bf16.mxu0 0
      %2927 = vmatmul.mubr.bf16.gmra.mrb[0].mxu0 %v2684
      %v2928 = vpop.f32.mrb[0].mxu0
      %v2929 = vadd.f32 %v2378, %v2928
      %v2930 = vpop.f32.mrb[0].mxu0
      %v2931 = vpop.f32.mrb[0].mxu0
      %v2932 = vadd.f32 %v2381, %v2931
      %v2933 = vpop.f32.mrb[0].mxu0
      %2934 = vmatprep.mubr.bf16.mxu0 0
      %2935 = vmatmul.mubr.bf16.gmra.mrb[0].mxu0 %v2687
      %v2936 = vpop.f32.mrb[0].mxu0
      %v2937 = vadd.f32 %v2386, %v2936
      %v2938 = vpop.f32.mrb[0].mxu0
      %v2939 = vpop.f32.mrb[0].mxu0
      %v2940 = vadd.f32 %v2389, %v2939
      %v2941 = vpop.f32.mrb[0].mxu0
      %2942 = vmatprep.mubr.bf16.mxu0 0
      %2943 = vmatmul.mubr.bf16.gmra.mrb[0].mxu0 %v2690
      %v2944 = vpop.f32.mrb[0].mxu0
      %v2945 = vadd.f32 %v2394, %v2944
      %v2946 = vpop.f32.mrb[0].mxu0
      %v2947 = vpop.f32.mrb[0].mxu0
      %v2948 = vadd.f32 %v2397, %v2947
      %v2949 = vpop.f32.mrb[0].mxu0
      %2950 = vmatprep.mubr.bf16.mxu0 0
      %2951 = vmatmul.mubr.bf16.gmra.mrb[0].mxu0 %v2693
      %v2952 = vpop.f32.mrb[0].mxu0
      %v2953 = vadd.f32 %v2402, %v2952
      %v2954 = vpop.f32.mrb[0].mxu0
      %v2955 = vpop.f32.mrb[0].mxu0
      %v2956 = vadd.f32 %v2405, %v2955
      %v2957 = vpop.f32.mrb[0].mxu0
      %2958 = vmatprep.mubr.bf16.mxu0 0
      %2959 = vmatmul.mubr.bf16.gmra.mrb[0].mxu0 %v2696
      %v2960 = vpop.f32.mrb[0].mxu0
      %v2961 = vadd.f32 %v2410, %v2960
      %v2962 = vpop.f32.mrb[0].mxu0
      %v2963 = vpop.f32.mrb[0].mxu0
      %v2964 = vadd.f32 %v2413, %v2963
      %v2965 = vpop.f32.mrb[0].mxu0
      %2966 = vmatprep.mubr.bf16.mxu0 0
      %2967 = vmatmul.mubr.bf16.gmra.mrb[0].mxu0 %v2699
      %v2968 = vpop.f32.mrb[0].mxu0
      %v2969 = vadd.f32 %v2418, %v2968
      %v2970 = vpop.f32.mrb[0].mxu0
      %v2971 = vpop.f32.mrb[0].mxu0
      %v2972 = vadd.f32 %v2421, %v2971
      %v2973 = vpop.f32.mrb[0].mxu0
      %2974 = vmatprep.mubr.bf16.mxu0 0
      %2975 = vmatmul.mubr.bf16.gmra.mrb[0].mxu0 %v2702
      %v2976 = vpop.f32.mrb[0].mxu0
      %v2977 = vadd.f32 %v2426, %v2976
      %v2978 = vpop.f32.mrb[0].mxu0
      %v2979 = vpop.f32.mrb[0].mxu0
      %v2980 = vadd.f32 %v2429, %v2979
      %v2981 = vpop.f32.mrb[0].mxu0
      %2982 = vmatprep.mubr.bf16.mxu0 0
      %2983 = vmatmul.mubr.bf16.gmra.mrb[0].mxu0 %v2705
      %v2984 = vpop.f32.mrb[0].mxu0
      %v2985 = vadd.f32 %v2434, %v2984
      %v2986 = vpop.f32.mrb[0].mxu0
      %v2987 = vpop.f32.mrb[0].mxu0
      %v2988 = vadd.f32 %v2437, %v2987
      %v2989 = vpop.f32.mrb[0].mxu0
      %2990 = vmatprep.mubr.bf16.mxu0 0
      %2991 = vmatmul.mubr.bf16.gmra.mrb[0].mxu0 %v2708
      %v2992 = vpop.f32.mrb[0].mxu0
      %v2993 = vadd.f32 %v2442, %v2992
      %v2994 = vpop.f32.mrb[0].mxu0
      %v2995 = vpop.f32.mrb[0].mxu0
      %v2996 = vadd.f32 %v2445, %v2995
      %v2997 = vpop.f32.mrb[0].mxu0
      %2998 = vdwg.mxu0
      %v2999 = vrot.slane %v1316, 1
      %v3000 = vor.u32 %v1313, %v2999
      %v3001 = vrot.slane %v1323, 1
      %v3002 = vor.u32 %v1320, %v3001
      %v3003 = vrot.slane %v1330, 1
      %v3004 = vor.u32 %v1327, %v3003
      %v3005 = vrot.slane %v1337, 1
      %v3006 = vor.u32 %v1334, %v3005
      %v3007 = vrot.slane %v1344, 1
      %v3008 = vor.u32 %v1341, %v3007
      %v3009 = vrot.slane %v1351, 1
      %v3010 = vor.u32 %v1348, %v3009
      %v3011 = vrot.slane %v1358, 1
      %v3012 = vor.u32 %v1355, %v3011
      %v3013 = vrot.slane %v1365, 1
      %v3014 = vor.u32 %v1362, %v3013
      %v3015 = vrot.slane %v1372, 1
      %v3016 = vor.u32 %v1369, %v3015
      %v3017 = vrot.slane %v1379, 1
      %v3018 = vor.u32 %v1376, %v3017
      %v3019 = vrot.slane %v1386, 1
      %v3020 = vor.u32 %v1383, %v3019
      %v3021 = vrot.slane %v1393, 1
      %v3022 = vor.u32 %v1390, %v3021
      %v3023 = vrot.slane %v1400, 1
      %v3024 = vor.u32 %v1397, %v3023
      %v3025 = vrot.slane %v1407, 1
      %v3026 = vor.u32 %v1404, %v3025
      %v3027 = vrot.slane %v1414, 1
      %v3028 = vor.u32 %v1411, %v3027
      %v3029 = vrot.slane %v1421, 1
      %v3030 = vor.u32 %v1418, %v3029
      %v3031 = vrot.slane %v1428, 1
      %v3032 = vor.u32 %v1425, %v3031
      %v3033 = vrot.slane %v1435, 1
      %v3034 = vor.u32 %v1432, %v3033
      %v3035 = vrot.slane %v1442, 1
      %v3036 = vor.u32 %v1439, %v3035
      %v3037 = vrot.slane %v1449, 1
      %v3038 = vor.u32 %v1446, %v3037
      %v3039 = vrot.slane %v1456, 1
      %v3040 = vor.u32 %v1453, %v3039
      %v3041 = vrot.slane %v1463, 1
      %v3042 = vor.u32 %v1460, %v3041
      %v3043 = vrot.slane %v1470, 1
      %v3044 = vor.u32 %v1467, %v3043
      %v3045 = vrot.slane %v1477, 1
      %v3046 = vor.u32 %v1474, %v3045
      %v3047 = vrot.slane %v1484, 1
      %v3048 = vor.u32 %v1481, %v3047
      %v3049 = vrot.slane %v1491, 1
      %v3050 = vor.u32 %v1488, %v3049
      %v3051 = vrot.slane %v1498, 1
      %v3052 = vor.u32 %v1495, %v3051
      %v3053 = vrot.slane %v1505, 1
      %v3054 = vor.u32 %v1502, %v3053
      %v3055 = vrot.slane %v1512, 1
      %v3056 = vor.u32 %v1509, %v3055
      %v3057 = vrot.slane %v1519, 1
      %v3058 = vor.u32 %v1516, %v3057
      %v3059 = vrot.slane %v1526, 1
      %v3060 = vor.u32 %v1523, %v3059
      %v3061 = vrot.slane %v1533, 1
      %v3062 = vor.u32 %v1530, %v3061
      %v3063 = vrot.slane %v1540, 1
      %v3064 = vor.u32 %v1537, %v3063
      %v3065 = vrot.slane %v1547, 1
      %v3066 = vor.u32 %v1544, %v3065
      %v3067 = vrot.slane %v1554, 1
      %v3068 = vor.u32 %v1551, %v3067
      %v3069 = vrot.slane %v1561, 1
      %v3070 = vor.u32 %v1558, %v3069
      %v3071 = vrot.slane %v1568, 1
      %v3072 = vor.u32 %v1565, %v3071
      %v3073 = vrot.slane %v1575, 1
      %v3074 = vor.u32 %v1572, %v3073
      %v3075 = vrot.slane %v1582, 1
      %v3076 = vor.u32 %v1579, %v3075
      %v3077 = vrot.slane %v1589, 1
      %v3078 = vor.u32 %v1586, %v3077
      %v3079 = vrot.slane %v1596, 1
      %v3080 = vor.u32 %v1593, %v3079
      %v3081 = vrot.slane %v1603, 1
      %v3082 = vor.u32 %v1600, %v3081
      %v3083 = vrot.slane %v1610, 1
      %v3084 = vor.u32 %v1607, %v3083
      %v3085 = vrot.slane %v1617, 1
      %v3086 = vor.u32 %v1614, %v3085
      %v3087 = vrot.slane %v1624, 1
      %v3088 = vor.u32 %v1621, %v3087
      %v3089 = vrot.slane %v1631, 1
      %v3090 = vor.u32 %v1628, %v3089
      %v3091 = vrot.slane %v1638, 1
      %v3092 = vor.u32 %v1635, %v3091
      %v3093 = vrot.slane %v1645, 1
      %v3094 = vor.u32 %v1642, %v3093
      %v3095 = vrot.slane %v1652, 1
      %v3096 = vor.u32 %v1649, %v3095
      %v3097 = vrot.slane %v1659, 1
      %v3098 = vor.u32 %v1656, %v3097
      %v3099 = vrot.slane %v1666, 1
      %v3100 = vor.u32 %v1663, %v3099
      %v3101 = vrot.slane %v1673, 1
      %v3102 = vor.u32 %v1670, %v3101
      %v3103 = vrot.slane %v1680, 1
      %v3104 = vor.u32 %v1677, %v3103
      %v3105 = vrot.slane %v1687, 1
      %v3106 = vor.u32 %v1684, %v3105
      %v3107 = vrot.slane %v1694, 1
      %v3108 = vor.u32 %v1691, %v3107
      %v3109 = vrot.slane %v1701, 1
      %v3110 = vor.u32 %v1698, %v3109
      %v3111 = vrot.slane %v1708, 1
      %v3112 = vor.u32 %v1705, %v3111
      %v3113 = vrot.slane %v1715, 1
      %v3114 = vor.u32 %v1712, %v3113
      %v3115 = vrot.slane %v1722, 1
      %v3116 = vor.u32 %v1719, %v3115
      %v3117 = vrot.slane %v1729, 1
      %v3118 = vor.u32 %v1726, %v3117
      %v3119 = vrot.slane %v1736, 1
      %v3120 = vor.u32 %v1733, %v3119
      %v3121 = vrot.slane %v1743, 1
      %v3122 = vor.u32 %v1740, %v3121
      %v3123 = vrot.slane %v1750, 1
      %v3124 = vor.u32 %v1747, %v3123
      %v3125 = vrot.slane %v1757, 1
      %v3126 = vor.u32 %v1754, %v3125
      %vm3191 = vcmask 1043456
      %vm3192 = vsmask.f32 3328
      %vm3193 = vmand %vm3191, %vm3192
      %v3194 = vsel %vm3193, %v3000, 0
      %v3195 = vsel %vm3193, %v3002, 0
      %v3196 = vsel %vm3193, %v3004, 0
      %v3197 = vsel %vm3193, %v3006, 0
      %v3198 = vsel %vm3193, %v3008, 0
      %v3199 = vsel %vm3193, %v3010, 0
      %v3200 = vsel %vm3193, %v3012, 0
      %v3201 = vsel %vm3193, %v3014, 0
      %v3202 = vsel %vm3193, %v3016, 0
      %v3203 = vsel %vm3193, %v3018, 0
      %v3204 = vsel %vm3193, %v3020, 0
      %v3205 = vsel %vm3193, %v3022, 0
      %v3206 = vsel %vm3193, %v3024, 0
      %v3207 = vsel %vm3193, %v3026, 0
      %v3208 = vsel %vm3193, %v3028, 0
      %v3209 = vsel %vm3193, %v3030, 0
      %v3210 = vsel %vm3193, %v3032, 0
      %v3211 = vsel %vm3193, %v3034, 0
      %v3212 = vsel %vm3193, %v3036, 0
      %v3213 = vsel %vm3193, %v3038, 0
      %v3214 = vsel %vm3193, %v3040, 0
      %v3215 = vsel %vm3193, %v3042, 0
      %v3216 = vsel %vm3193, %v3044, 0
      %v3217 = vsel %vm3193, %v3046, 0
      %v3218 = vsel %vm3193, %v3048, 0
      %v3219 = vsel %vm3193, %v3050, 0
      %v3220 = vsel %vm3193, %v3052, 0
      %v3221 = vsel %vm3193, %v3054, 0
      %v3222 = vsel %vm3193, %v3056, 0
      %v3223 = vsel %vm3193, %v3058, 0
      %v3224 = vsel %vm3193, %v3060, 0
      %v3225 = vsel %vm3193, %v3062, 0
      %v3226 = vsel %vm3193, %v3064, 0
      %v3227 = vsel %vm3193, %v3066, 0
      %v3228 = vsel %vm3193, %v3068, 0
      %v3229 = vsel %vm3193, %v3070, 0
      %v3230 = vsel %vm3193, %v3072, 0
      %v3231 = vsel %vm3193, %v3074, 0
      %v3232 = vsel %vm3193, %v3076, 0
      %v3233 = vsel %vm3193, %v3078, 0
      %v3234 = vsel %vm3193, %v3080, 0
      %v3235 = vsel %vm3193, %v3082, 0
      %v3236 = vsel %vm3193, %v3084, 0
      %v3237 = vsel %vm3193, %v3086, 0
      %v3238 = vsel %vm3193, %v3088, 0
      %v3239 = vsel %vm3193, %v3090, 0
      %v3240 = vsel %vm3193, %v3092, 0
      %v3241 = vsel %vm3193, %v3094, 0
      %v3242 = vsel %vm3193, %v3096, 0
      %v3243 = vsel %vm3193, %v3098, 0
      %v3244 = vsel %vm3193, %v3100, 0
      %v3245 = vsel %vm3193, %v3102, 0
      %v3246 = vsel %vm3193, %v3104, 0
      %v3247 = vsel %vm3193, %v3106, 0
      %v3248 = vsel %vm3193, %v3108, 0
      %v3249 = vsel %vm3193, %v3110, 0
      %v3250 = vsel %vm3193, %v3112, 0
      %v3251 = vsel %vm3193, %v3114, 0
      %v3252 = vsel %vm3193, %v3116, 0
      %v3253 = vsel %vm3193, %v3118, 0
      %v3254 = vsel %vm3193, %v3120, 0
      %v3255 = vsel %vm3193, %v3122, 0
      %v3256 = vsel %vm3193, %v3124, 0
      %v3257 = vsel %vm3193, %v3126, 0
      %s3258 = scalar_lea.vmem %s2, 16
      %v3259 = vld [vmem:[%s3258] sm:$0xf]
      %v3260 = vld [vmem:[%s3258 + $0x4] sm:$0xf]
      %v3325 = vunpack.c.l.b16 %v3194
      %v3326 = vunpack.c.l.b16 %v3195
      %v3327 = vunpack.c.l.b16 %v3196
      %v3328 = vunpack.c.l.b16 %v3197
      %v3329 = vunpack.c.l.b16 %v3198
      %v3330 = vunpack.c.l.b16 %v3199
      %v3331 = vunpack.c.l.b16 %v3200
      %v3332 = vunpack.c.l.b16 %v3201
      %v3333 = vunpack.c.l.b16 %v3202
      %v3334 = vunpack.c.l.b16 %v3203
      %v3335 = vunpack.c.l.b16 %v3204
      %v3336 = vunpack.c.l.b16 %v3205
      %v3337 = vunpack.c.l.b16 %v3206
      %v3338 = vunpack.c.l.b16 %v3207
      %v3339 = vunpack.c.l.b16 %v3208
      %v3340 = vunpack.c.l.b16 %v3209
      %v3341 = vunpack.c.l.b16 %v3210
      %v3342 = vunpack.c.l.b16 %v3211
      %v3343 = vunpack.c.l.b16 %v3212
      %v3344 = vunpack.c.l.b16 %v3213
      %v3345 = vunpack.c.l.b16 %v3214
      %v3346 = vunpack.c.l.b16 %v3215
      %v3347 = vunpack.c.l.b16 %v3216
      %v3348 = vunpack.c.l.b16 %v3217
      %v3349 = vunpack.c.l.b16 %v3218
      %v3350 = vunpack.c.l.b16 %v3219
      %v3351 = vunpack.c.l.b16 %v3220
      %v3352 = vunpack.c.l.b16 %v3221
      %v3353 = vunpack.c.l.b16 %v3222
      %v3354 = vunpack.c.l.b16 %v3223
      %v3355 = vunpack.c.l.b16 %v3224
      %v3356 = vunpack.c.l.b16 %v3225
      %v3357 = vunpack.c.l.b16 %v3226
      %v3358 = vunpack.c.l.b16 %v3227
      %v3359 = vunpack.c.l.b16 %v3228
      %v3360 = vunpack.c.l.b16 %v3229
      %v3361 = vunpack.c.l.b16 %v3230
      %v3362 = vunpack.c.l.b16 %v3231
      %v3363 = vunpack.c.l.b16 %v3232
      %v3364 = vunpack.c.l.b16 %v3233
      %v3365 = vunpack.c.l.b16 %v3234
      %v3366 = vunpack.c.l.b16 %v3235
      %v3367 = vunpack.c.l.b16 %v3236
      %v3368 = vunpack.c.l.b16 %v3237
      %v3369 = vunpack.c.l.b16 %v3238
      %v3370 = vunpack.c.l.b16 %v3239
      %v3371 = vunpack.c.l.b16 %v3240
      %v3372 = vunpack.c.l.b16 %v3241
      %v3373 = vunpack.c.l.b16 %v3242
      %v3374 = vunpack.c.l.b16 %v3243
      %v3375 = vunpack.c.l.b16 %v3244
      %v3376 = vunpack.c.l.b16 %v3245
      %v3377 = vunpack.c.l.b16 %v3246
      %v3378 = vunpack.c.l.b16 %v3247
      %v3379 = vunpack.c.l.b16 %v3248
      %v3380 = vunpack.c.l.b16 %v3249
      %v3381 = vunpack.c.l.b16 %v3250
      %v3382 = vunpack.c.l.b16 %v3251
      %v3383 = vunpack.c.l.b16 %v3252
      %v3384 = vunpack.c.l.b16 %v3253
      %v3385 = vunpack.c.l.b16 %v3254
      %v3386 = vunpack.c.l.b16 %v3255
      %v3387 = vunpack.c.l.b16 %v3256
      %v3388 = vunpack.c.l.b16 %v3257
      %v3389 = vpack.c.b16 %v3326, %v3325
      %v3390 = vpack.c.b16 %v3328, %v3327
      %v3391 = vpack.c.b16 %v3330, %v3329
      %v3392 = vpack.c.b16 %v3332, %v3331
      %v3393 = vpack.c.b16 %v3334, %v3333
      %v3394 = vpack.c.b16 %v3336, %v3335
      %v3395 = vpack.c.b16 %v3338, %v3337
      %v3396 = vpack.c.b16 %v3340, %v3339
      %v3397 = vpack.c.b16 %v3342, %v3341
      %v3398 = vpack.c.b16 %v3344, %v3343
      %v3399 = vpack.c.b16 %v3346, %v3345
      %v3400 = vpack.c.b16 %v3348, %v3347
      %v3401 = vpack.c.b16 %v3350, %v3349
      %v3402 = vpack.c.b16 %v3352, %v3351
      %v3403 = vpack.c.b16 %v3354, %v3353
      %v3404 = vpack.c.b16 %v3356, %v3355
      %v3405 = vpack.c.b16 %v3358, %v3357
      %v3406 = vpack.c.b16 %v3360, %v3359
      %v3407 = vpack.c.b16 %v3362, %v3361
      %v3408 = vpack.c.b16 %v3364, %v3363
      %v3409 = vpack.c.b16 %v3366, %v3365
      %v3410 = vpack.c.b16 %v3368, %v3367
      %v3411 = vpack.c.b16 %v3370, %v3369
      %v3412 = vpack.c.b16 %v3372, %v3371
      %v3413 = vpack.c.b16 %v3374, %v3373
      %v3414 = vpack.c.b16 %v3376, %v3375
      %v3415 = vpack.c.b16 %v3378, %v3377
      %v3416 = vpack.c.b16 %v3380, %v3379
      %v3417 = vpack.c.b16 %v3382, %v3381
      %v3418 = vpack.c.b16 %v3384, %v3383
      %v3419 = vpack.c.b16 %v3386, %v3385
      %v3420 = vpack.c.b16 %v3388, %v3387
      %v3423 = vunpack.c.l.b16 %v3259
      %v3424 = vunpack.c.l.b16 %v3260
      %v3425 = vpack.c.b16 %v3424, %v3423
      %v3428 = vsel %vm2062, %v3389, 0
      %v3431 = vsel %vm2062, %v3390, 0
      %v3434 = vsel %vm2062, %v3391, 0
      %v3437 = vsel %vm2062, %v3392, 0
      %v3440 = vsel %vm2062, %v3393, 0
      %v3443 = vsel %vm2062, %v3394, 0
      %v3446 = vsel %vm2062, %v3395, 0
      %v3449 = vsel %vm2062, %v3396, 0
      %v3452 = vsel %vm2062, %v3397, 0
      %v3455 = vsel %vm2062, %v3398, 0
      %v3458 = vsel %vm2062, %v3399, 0
      %v3461 = vsel %vm2062, %v3400, 0
      %v3464 = vsel %vm2062, %v3401, 0
      %v3467 = vsel %vm2062, %v3402, 0
      %v3470 = vsel %vm2062, %v3403, 0
      %v3473 = vsel %vm2062, %v3404, 0
      %v3476 = vsel %vm2062, %v3405, 0
      %v3479 = vsel %vm2062, %v3406, 0
      %v3482 = vsel %vm2062, %v3407, 0
      %v3485 = vsel %vm2062, %v3408, 0
      %v3488 = vsel %vm2062, %v3409, 0
      %v3491 = vsel %vm2062, %v3410, 0
      %v3494 = vsel %vm2062, %v3411, 0
      %v3497 = vsel %vm2062, %v3412, 0
      %v3500 = vsel %vm2062, %v3413, 0
      %v3503 = vsel %vm2062, %v3414, 0
      %v3506 = vsel %vm2062, %v3415, 0
      %v3509 = vsel %vm2062, %v3416, 0
      %v3512 = vsel %vm2062, %v3417, 0
      %v3515 = vsel %vm2062, %v3418, 0
      %v3518 = vsel %vm2062, %v3419, 0
      %v3521 = vsel %vm2062, %v3420, 0
      %3523 = vmatprep.subr.bf16.mxu0 0
      %3524 = vmatpush1.bf16.msra.mxu0 %v3425
      %3525 = vmatprep.subr.bf16.mxu0 0
      %3526 = vmatpush1.bf16.msra.mxu0 0
      %3527 = vmatprep.subr.bf16.mxu0 0
      %3528 = vmatpush1.bf16.msra.mxu0 0
      %3529 = vmatprep.subr.bf16.mxu0 0
      %3530 = vmatpush1.bf16.msra.mxu0 0
      %3531 = vmatprep.subr.bf16.mxu0 0
      %3532 = vmatpush1.bf16.msra.mxu0 0
      %3533 = vmatprep.subr.bf16.mxu0 0
      %3534 = vmatpush1.bf16.msra.mxu0 0
      %3535 = vmatprep.subr.bf16.mxu0 0
      %3536 = vmatpush1.bf16.msra.mxu0 0
      %3537 = vmatprep.subr.bf16.mxu0 0
      %3538 = vmatpush1.bf16.msra.mxu0 0
      %3539 = vmatprep.subr.bf16.mxu0 0
      %3540 = vmatpush1.bf16.msra.mxu0 0
      %3541 = vmatprep.subr.bf16.mxu0 0
      %3542 = vmatpush1.bf16.msra.mxu0 0
      %3543 = vmatprep.subr.bf16.mxu0 0
      %3544 = vmatpush1.bf16.msra.mxu0 0
      %3545 = vmatprep.subr.bf16.mxu0 0
      %3546 = vmatpush1.bf16.msra.mxu0 0
      %3547 = vmatprep.subr.bf16.mxu0 0
      %3548 = vmatpush1.bf16.msra.mxu0 0
      %3549 = vmatprep.subr.bf16.mxu0 0
      %3550 = vmatpush1.bf16.msra.mxu0 0
      %3551 = vmatprep.subr.bf16.mxu0 0
      %3552 = vmatpush1.bf16.msra.mxu0 0
      %3553 = vmatprep.subr.bf16.mxu0 0
      %3554 = vmatpush1.bf16.msra.mxu0 0
      %3555 = vmatprep.mubr.bf16.mxu0 0
      %3556 = vmatmul.mubr.bf16.gmra.mrb[0].mxu0 %v3428
      %v3557 = vpop.f32.mrb[0].mxu0
      %v3558 = vadd.f32 0.0, %v3557
      %v3559 = vpop.f32.mrb[0].mxu0
      %v3560 = vpop.f32.mrb[0].mxu0
      %v3561 = vadd.f32 0.0, %v3560
      %v3562 = vpop.f32.mrb[0].mxu0
      %3563 = vmatprep.mubr.bf16.mxu0 0
      %3564 = vmatmul.mubr.bf16.gmra.mrb[0].mxu0 %v3431
      %v3565 = vpop.f32.mrb[0].mxu0
      %v3566 = vadd.f32 0.0, %v3565
      %v3567 = vpop.f32.mrb[0].mxu0
      %v3568 = vpop.f32.mrb[0].mxu0
      %v3569 = vadd.f32 0.0, %v3568
      %v3570 = vpop.f32.mrb[0].mxu0
      %3571 = vmatprep.mubr.bf16.mxu0 0
      %3572 = vmatmul.mubr.bf16.gmra.mrb[0].mxu0 %v3434
      %v3573 = vpop.f32.mrb[0].mxu0
      %v3574 = vadd.f32 0.0, %v3573
      %v3575 = vpop.f32.mrb[0].mxu0
      %v3576 = vpop.f32.mrb[0].mxu0
      %v3577 = vadd.f32 0.0, %v3576
      %v3578 = vpop.f32.mrb[0].mxu0
      %3579 = vmatprep.mubr.bf16.mxu0 0
      %3580 = vmatmul.mubr.bf16.gmra.mrb[0].mxu0 %v3437
      %v3581 = vpop.f32.mrb[0].mxu0
      %v3582 = vadd.f32 0.0, %v3581
      %v3583 = vpop.f32.mrb[0].mxu0
      %v3584 = vpop.f32.mrb[0].mxu0
      %v3585 = vadd.f32 0.0, %v3584
      %v3586 = vpop.f32.mrb[0].mxu0
      %3587 = vmatprep.mubr.bf16.mxu0 0
      %3588 = vmatmul.mubr.bf16.gmra.mrb[0].mxu0 %v3440
      %v3589 = vpop.f32.mrb[0].mxu0
      %v3590 = vadd.f32 0.0, %v3589
      %v3591 = vpop.f32.mrb[0].mxu0
      %v3592 = vpop.f32.mrb[0].mxu0
      %v3593 = vadd.f32 0.0, %v3592
      %v3594 = vpop.f32.mrb[0].mxu0
      %3595 = vmatprep.mubr.bf16.mxu0 0
      %3596 = vmatmul.mubr.bf16.gmra.mrb[0].mxu0 %v3443
      %v3597 = vpop.f32.mrb[0].mxu0
      %v3598 = vadd.f32 0.0, %v3597
      %v3599 = vpop.f32.mrb[0].mxu0
      %v3600 = vpop.f32.mrb[0].mxu0
      %v3601 = vadd.f32 0.0, %v3600
      %v3602 = vpop.f32.mrb[0].mxu0
      %3603 = vmatprep.mubr.bf16.mxu0 0
      %3604 = vmatmul.mubr.bf16.gmra.mrb[0].mxu0 %v3446
      %v3605 = vpop.f32.mrb[0].mxu0
      %v3606 = vadd.f32 0.0, %v3605
      %v3607 = vpop.f32.mrb[0].mxu0
      %v3608 = vpop.f32.mrb[0].mxu0
      %v3609 = vadd.f32 0.0, %v3608
      %v3610 = vpop.f32.mrb[0].mxu0
      %3611 = vmatprep.mubr.bf16.mxu0 0
      %3612 = vmatmul.mubr.bf16.gmra.mrb[0].mxu0 %v3449
      %v3613 = vpop.f32.mrb[0].mxu0
      %v3614 = vadd.f32 0.0, %v3613
      %v3615 = vpop.f32.mrb[0].mxu0
      %v3616 = vpop.f32.mrb[0].mxu0
      %v3617 = vadd.f32 0.0, %v3616
      %v3618 = vpop.f32.mrb[0].mxu0
      %3619 = vmatprep.mubr.bf16.mxu0 0
      %3620 = vmatmul.mubr.bf16.gmra.mrb[0].mxu0 %v3452
      %v3621 = vpop.f32.mrb[0].mxu0
      %v3622 = vadd.f32 0.0, %v3621
      %v3623 = vpop.f32.mrb[0].mxu0
      %v3624 = vpop.f32.mrb[0].mxu0
      %v3625 = vadd.f32 0.0, %v3624
      %v3626 = vpop.f32.mrb[0].mxu0
      %3627 = vmatprep.mubr.bf16.mxu0 0
      %3628 = vmatmul.mubr.bf16.gmra.mrb[0].mxu0 %v3455
      %v3629 = vpop.f32.mrb[0].mxu0
      %v3630 = vadd.f32 0.0, %v3629
      %v3631 = vpop.f32.mrb[0].mxu0
      %v3632 = vpop.f32.mrb[0].mxu0
      %v3633 = vadd.f32 0.0, %v3632
      %v3634 = vpop.f32.mrb[0].mxu0
      %3635 = vmatprep.mubr.bf16.mxu0 0
      %3636 = vmatmul.mubr.bf16.gmra.mrb[0].mxu0 %v3458
      %v3637 = vpop.f32.mrb[0].mxu0
      %v3638 = vadd.f32 0.0, %v3637
      %v3639 = vpop.f32.mrb[0].mxu0
      %v3640 = vpop.f32.mrb[0].mxu0
      %v3641 = vadd.f32 0.0, %v3640
      %v3642 = vpop.f32.mrb[0].mxu0
      %3643 = vmatprep.mubr.bf16.mxu0 0
      %3644 = vmatmul.mubr.bf16.gmra.mrb[0].mxu0 %v3461
      %v3645 = vpop.f32.mrb[0].mxu0
      %v3646 = vadd.f32 0.0, %v3645
      %v3647 = vpop.f32.mrb[0].mxu0
      %v3648 = vpop.f32.mrb[0].mxu0
      %v3649 = vadd.f32 0.0, %v3648
      %v3650 = vpop.f32.mrb[0].mxu0
      %3651 = vmatprep.mubr.bf16.mxu0 0
      %3652 = vmatmul.mubr.bf16.gmra.mrb[0].mxu0 %v3464
      %v3653 = vpop.f32.mrb[0].mxu0
      %v3654 = vadd.f32 0.0, %v3653
      %v3655 = vpop.f32.mrb[0].mxu0
      %v3656 = vpop.f32.mrb[0].mxu0
      %v3657 = vadd.f32 0.0, %v3656
      %v3658 = vpop.f32.mrb[0].mxu0
      %3659 = vmatprep.mubr.bf16.mxu0 0
      %3660 = vmatmul.mubr.bf16.gmra.mrb[0].mxu0 %v3467
      %v3661 = vpop.f32.mrb[0].mxu0
      %v3662 = vadd.f32 0.0, %v3661
      %v3663 = vpop.f32.mrb[0].mxu0
      %v3664 = vpop.f32.mrb[0].mxu0
      %v3665 = vadd.f32 0.0, %v3664
      %v3666 = vpop.f32.mrb[0].mxu0
      %3667 = vmatprep.mubr.bf16.mxu0 0
      %3668 = vmatmul.mubr.bf16.gmra.mrb[0].mxu0 %v3470
      %v3669 = vpop.f32.mrb[0].mxu0
      %v3670 = vadd.f32 0.0, %v3669
      %v3671 = vpop.f32.mrb[0].mxu0
      %v3672 = vpop.f32.mrb[0].mxu0
      %v3673 = vadd.f32 0.0, %v3672
      %v3674 = vpop.f32.mrb[0].mxu0
      %3675 = vmatprep.mubr.bf16.mxu0 0
      %3676 = vmatmul.mubr.bf16.gmra.mrb[0].mxu0 %v3473
      %v3677 = vpop.f32.mrb[0].mxu0
      %v3678 = vadd.f32 0.0, %v3677
      %v3679 = vpop.f32.mrb[0].mxu0
      %v3680 = vpop.f32.mrb[0].mxu0
      %v3681 = vadd.f32 0.0, %v3680
      %v3682 = vpop.f32.mrb[0].mxu0
      %3683 = vmatprep.mubr.bf16.mxu0 0
      %3684 = vmatmul.mubr.bf16.gmra.mrb[0].mxu0 %v3476
      %v3685 = vpop.f32.mrb[0].mxu0
      %v3686 = vadd.f32 0.0, %v3685
      %v3687 = vpop.f32.mrb[0].mxu0
      %v3688 = vpop.f32.mrb[0].mxu0
      %v3689 = vadd.f32 0.0, %v3688
      %v3690 = vpop.f32.mrb[0].mxu0
      %3691 = vmatprep.mubr.bf16.mxu0 0
      %3692 = vmatmul.mubr.bf16.gmra.mrb[0].mxu0 %v3479
      %v3693 = vpop.f32.mrb[0].mxu0
      %v3694 = vadd.f32 0.0, %v3693
      %v3695 = vpop.f32.mrb[0].mxu0
      %v3696 = vpop.f32.mrb[0].mxu0
      %v3697 = vadd.f32 0.0, %v3696
      %v3698 = vpop.f32.mrb[0].mxu0
      %3699 = vmatprep.mubr.bf16.mxu0 0
      %3700 = vmatmul.mubr.bf16.gmra.mrb[0].mxu0 %v3482
      %v3701 = vpop.f32.mrb[0].mxu0
      %v3702 = vadd.f32 0.0, %v3701
      %v3703 = vpop.f32.mrb[0].mxu0
      %v3704 = vpop.f32.mrb[0].mxu0
      %v3705 = vadd.f32 0.0, %v3704
      %v3706 = vpop.f32.mrb[0].mxu0
      %3707 = vmatprep.mubr.bf16.mxu0 0
      %3708 = vmatmul.mubr.bf16.gmra.mrb[0].mxu0 %v3485
      %v3709 = vpop.f32.mrb[0].mxu0
      %v3710 = vadd.f32 0.0, %v3709
      %v3711 = vpop.f32.mrb[0].mxu0
      %v3712 = vpop.f32.mrb[0].mxu0
      %v3713 = vadd.f32 0.0, %v3712
      %v3714 = vpop.f32.mrb[0].mxu0
      %3715 = vmatprep.mubr.bf16.mxu0 0
      %3716 = vmatmul.mubr.bf16.gmra.mrb[0].mxu0 %v3488
      %v3717 = vpop.f32.mrb[0].mxu0
      %v3718 = vadd.f32 0.0, %v3717
      %v3719 = vpop.f32.mrb[0].mxu0
      %v3720 = vpop.f32.mrb[0].mxu0
      %v3721 = vadd.f32 0.0, %v3720
      %v3722 = vpop.f32.mrb[0].mxu0
      %3723 = vmatprep.mubr.bf16.mxu0 0
      %3724 = vmatmul.mubr.bf16.gmra.mrb[0].mxu0 %v3491
      %v3725 = vpop.f32.mrb[0].mxu0
      %v3726 = vadd.f32 0.0, %v3725
      %v3727 = vpop.f32.mrb[0].mxu0
      %v3728 = vpop.f32.mrb[0].mxu0
      %v3729 = vadd.f32 0.0, %v3728
      %v3730 = vpop.f32.mrb[0].mxu0
      %3731 = vmatprep.mubr.bf16.mxu0 0
      %3732 = vmatmul.mubr.bf16.gmra.mrb[0].mxu0 %v3494
      %v3733 = vpop.f32.mrb[0].mxu0
      %v3734 = vadd.f32 0.0, %v3733
      %v3735 = vpop.f32.mrb[0].mxu0
      %v3736 = vpop.f32.mrb[0].mxu0
      %v3737 = vadd.f32 0.0, %v3736
      %v3738 = vpop.f32.mrb[0].mxu0
      %3739 = vmatprep.mubr.bf16.mxu0 0
      %3740 = vmatmul.mubr.bf16.gmra.mrb[0].mxu0 %v3497
      %v3741 = vpop.f32.mrb[0].mxu0
      %v3742 = vadd.f32 0.0, %v3741
      %v3743 = vpop.f32.mrb[0].mxu0
      %v3744 = vpop.f32.mrb[0].mxu0
      %v3745 = vadd.f32 0.0, %v3744
      %v3746 = vpop.f32.mrb[0].mxu0
      %3747 = vmatprep.mubr.bf16.mxu0 0
      %3748 = vmatmul.mubr.bf16.gmra.mrb[0].mxu0 %v3500
      %v3749 = vpop.f32.mrb[0].mxu0
      %v3750 = vadd.f32 0.0, %v3749
      %v3751 = vpop.f32.mrb[0].mxu0
      %v3752 = vpop.f32.mrb[0].mxu0
      %v3753 = vadd.f32 0.0, %v3752
      %v3754 = vpop.f32.mrb[0].mxu0
      %3755 = vmatprep.mubr.bf16.mxu0 0
      %3756 = vmatmul.mubr.bf16.gmra.mrb[0].mxu0 %v3503
      %v3757 = vpop.f32.mrb[0].mxu0
      %v3758 = vadd.f32 0.0, %v3757
      %v3759 = vpop.f32.mrb[0].mxu0
      %v3760 = vpop.f32.mrb[0].mxu0
      %v3761 = vadd.f32 0.0, %v3760
      %v3762 = vpop.f32.mrb[0].mxu0
      %3763 = vmatprep.mubr.bf16.mxu0 0
      %3764 = vmatmul.mubr.bf16.gmra.mrb[0].mxu0 %v3506
      %v3765 = vpop.f32.mrb[0].mxu0
      %v3766 = vadd.f32 0.0, %v3765
      %v3767 = vpop.f32.mrb[0].mxu0
      %v3768 = vpop.f32.mrb[0].mxu0
      %v3769 = vadd.f32 0.0, %v3768
      %v3770 = vpop.f32.mrb[0].mxu0
      %3771 = vmatprep.mubr.bf16.mxu0 0
      %3772 = vmatmul.mubr.bf16.gmra.mrb[0].mxu0 %v3509
      %v3773 = vpop.f32.mrb[0].mxu0
      %v3774 = vadd.f32 0.0, %v3773
      %v3775 = vpop.f32.mrb[0].mxu0
      %v3776 = vpop.f32.mrb[0].mxu0
      %v3777 = vadd.f32 0.0, %v3776
      %v3778 = vpop.f32.mrb[0].mxu0
      %3779 = vmatprep.mubr.bf16.mxu0 0
      %3780 = vmatmul.mubr.bf16.gmra.mrb[0].mxu0 %v3512
      %v3781 = vpop.f32.mrb[0].mxu0
      %v3782 = vadd.f32 0.0, %v3781
      %v3783 = vpop.f32.mrb[0].mxu0
      %v3784 = vpop.f32.mrb[0].mxu0
      %v3785 = vadd.f32 0.0, %v3784
      %v3786 = vpop.f32.mrb[0].mxu0
      %3787 = vmatprep.mubr.bf16.mxu0 0
      %3788 = vmatmul.mubr.bf16.gmra.mrb[0].mxu0 %v3515
      %v3789 = vpop.f32.mrb[0].mxu0
      %v3790 = vadd.f32 0.0, %v3789
      %v3791 = vpop.f32.mrb[0].mxu0
      %v3792 = vpop.f32.mrb[0].mxu0
      %v3793 = vadd.f32 0.0, %v3792
      %v3794 = vpop.f32.mrb[0].mxu0
      %3795 = vmatprep.mubr.bf16.mxu0 0
      %3796 = vmatmul.mubr.bf16.gmra.mrb[0].mxu0 %v3518
      %v3797 = vpop.f32.mrb[0].mxu0
      %v3798 = vadd.f32 0.0, %v3797
      %v3799 = vpop.f32.mrb[0].mxu0
      %v3800 = vpop.f32.mrb[0].mxu0
      %v3801 = vadd.f32 0.0, %v3800
      %v3802 = vpop.f32.mrb[0].mxu0
      %3803 = vmatprep.mubr.bf16.mxu0 0
      %3804 = vmatmul.mubr.bf16.gmra.mrb[0].mxu0 %v3521
      %v3805 = vpop.f32.mrb[0].mxu0
      %v3806 = vadd.f32 0.0, %v3805
      %v3807 = vpop.f32.mrb[0].mxu0
      %v3808 = vpop.f32.mrb[0].mxu0
      %v3809 = vadd.f32 0.0, %v3808
      %v3810 = vpop.f32.mrb[0].mxu0
      %3811 = vdwg.mxu0
      %v3812 = vadd.f32 %v2745, %v3558
      %v3813 = vadd.f32 %v2748, %v3561
      %v3814 = vadd.f32 %v2753, %v3566
      %v3815 = vadd.f32 %v2756, %v3569
      %v3816 = vadd.f32 %v2761, %v3574
      %v3817 = vadd.f32 %v2764, %v3577
      %v3818 = vadd.f32 %v2769, %v3582
      %v3819 = vadd.f32 %v2772, %v3585
      %v3820 = vadd.f32 %v2777, %v3590
      %v3821 = vadd.f32 %v2780, %v3593
      %v3822 = vadd.f32 %v2785, %v3598
      %v3823 = vadd.f32 %v2788, %v3601
      %v3824 = vadd.f32 %v2793, %v3606
      %v3825 = vadd.f32 %v2796, %v3609
      %v3826 = vadd.f32 %v2801, %v3614
      %v3827 = vadd.f32 %v2804, %v3617
      %v3828 = vadd.f32 %v2809, %v3622
      %v3829 = vadd.f32 %v2812, %v3625
      %v3830 = vadd.f32 %v2817, %v3630
      %v3831 = vadd.f32 %v2820, %v3633
      %v3832 = vadd.f32 %v2825, %v3638
      %v3833 = vadd.f32 %v2828, %v3641
      %v3834 = vadd.f32 %v2833, %v3646
      %v3835 = vadd.f32 %v2836, %v3649
      %v3836 = vadd.f32 %v2841, %v3654
      %v3837 = vadd.f32 %v2844, %v3657
      %v3838 = vadd.f32 %v2849, %v3662
      %v3839 = vadd.f32 %v2852, %v3665
      %v3840 = vadd.f32 %v2857, %v3670
      %v3841 = vadd.f32 %v2860, %v3673
      %v3842 = vadd.f32 %v2865, %v3678
      %v3843 = vadd.f32 %v2868, %v3681
      %v3844 = vadd.f32 %v2873, %v3686
      %v3845 = vadd.f32 %v2876, %v3689
      %v3846 = vadd.f32 %v2881, %v3694
      %v3847 = vadd.f32 %v2884, %v3697
      %v3848 = vadd.f32 %v2889, %v3702
      %v3849 = vadd.f32 %v2892, %v3705
      %v3850 = vadd.f32 %v2897, %v3710
      %v3851 = vadd.f32 %v2900, %v3713
      %v3852 = vadd.f32 %v2905, %v3718
      %v3853 = vadd.f32 %v2908, %v3721
      %v3854 = vadd.f32 %v2913, %v3726
      %v3855 = vadd.f32 %v2916, %v3729
      %v3856 = vadd.f32 %v2921, %v3734
      %v3857 = vadd.f32 %v2924, %v3737
      %v3858 = vadd.f32 %v2929, %v3742
      %v3859 = vadd.f32 %v2932, %v3745
      %v3860 = vadd.f32 %v2937, %v3750
      %v3861 = vadd.f32 %v2940, %v3753
      %v3862 = vadd.f32 %v2945, %v3758
      %v3863 = vadd.f32 %v2948, %v3761
      %v3864 = vadd.f32 %v2953, %v3766
      %v3865 = vadd.f32 %v2956, %v3769
      %v3866 = vadd.f32 %v2961, %v3774
      %v3867 = vadd.f32 %v2964, %v3777
      %v3868 = vadd.f32 %v2969, %v3782
      %v3869 = vadd.f32 %v2972, %v3785
      %v3870 = vadd.f32 %v2977, %v3790
      %v3871 = vadd.f32 %v2980, %v3793
      %v3872 = vadd.f32 %v2985, %v3798
      %v3873 = vadd.f32 %v2988, %v3801
      %v3874 = vadd.f32 %v2993, %v3806
      %v3875 = vadd.f32 %v2996, %v3809
      %v3876 = vld [vmem:[%s3] sm:$0x1]
      %v3878 = vlaneseq
      %v3879 = vshrl.u32 %v3878, 7
      %v3880 = vsub.s32 0, %v3879
      %v3881 = vrot.slane %v3876, %v3880
      %v3883 = vadd.f32 %v3812, %v3881
      %v3884 = vadd.f32 %v3813, %v3881
      %v3885 = vadd.f32 %v3814, %v3881
      %v3886 = vadd.f32 %v3815, %v3881
      %v3887 = vadd.f32 %v3816, %v3881
      %v3888 = vadd.f32 %v3817, %v3881
      %v3889 = vadd.f32 %v3818, %v3881
      %v3890 = vadd.f32 %v3819, %v3881
      %v3891 = vadd.f32 %v3820, %v3881
      %v3892 = vadd.f32 %v3821, %v3881
      %v3893 = vadd.f32 %v3822, %v3881
      %v3894 = vadd.f32 %v3823, %v3881
      %v3895 = vadd.f32 %v3824, %v3881
      %v3896 = vadd.f32 %v3825, %v3881
      %v3897 = vadd.f32 %v3826, %v3881
      %v3898 = vadd.f32 %v3827, %v3881
      %v3899 = vadd.f32 %v3828, %v3881
      %v3900 = vadd.f32 %v3829, %v3881
      %v3901 = vadd.f32 %v3830, %v3881
      %v3902 = vadd.f32 %v3831, %v3881
      %v3903 = vadd.f32 %v3832, %v3881
      %v3904 = vadd.f32 %v3833, %v3881
      %v3905 = vadd.f32 %v3834, %v3881
      %v3906 = vadd.f32 %v3835, %v3881
      %v3907 = vadd.f32 %v3836, %v3881
      %v3908 = vadd.f32 %v3837, %v3881
      %v3909 = vadd.f32 %v3838, %v3881
      %v3910 = vadd.f32 %v3839, %v3881
      %v3911 = vadd.f32 %v3840, %v3881
      %v3912 = vadd.f32 %v3841, %v3881
      %v3913 = vadd.f32 %v3842, %v3881
      %v3914 = vadd.f32 %v3843, %v3881
      %v3915 = vadd.f32 %v3844, %v3881
      %v3916 = vadd.f32 %v3845, %v3881
      %v3917 = vadd.f32 %v3846, %v3881
      %v3918 = vadd.f32 %v3847, %v3881
      %v3919 = vadd.f32 %v3848, %v3881
      %v3920 = vadd.f32 %v3849, %v3881
      %v3921 = vadd.f32 %v3850, %v3881
      %v3922 = vadd.f32 %v3851, %v3881
      %v3923 = vadd.f32 %v3852, %v3881
      %v3924 = vadd.f32 %v3853, %v3881
      %v3925 = vadd.f32 %v3854, %v3881
      %v3926 = vadd.f32 %v3855, %v3881
      %v3927 = vadd.f32 %v3856, %v3881
      %v3928 = vadd.f32 %v3857, %v3881
      %v3929 = vadd.f32 %v3858, %v3881
      %v3930 = vadd.f32 %v3859, %v3881
      %v3931 = vadd.f32 %v3860, %v3881
      %v3932 = vadd.f32 %v3861, %v3881
      %v3933 = vadd.f32 %v3862, %v3881
      %v3934 = vadd.f32 %v3863, %v3881
      %v3935 = vadd.f32 %v3864, %v3881
      %v3936 = vadd.f32 %v3865, %v3881
      %v3937 = vadd.f32 %v3866, %v3881
      %v3938 = vadd.f32 %v3867, %v3881
      %v3939 = vadd.f32 %v3868, %v3881
      %v3940 = vadd.f32 %v3869, %v3881
      %v3941 = vadd.f32 %v3870, %v3881
      %v3942 = vadd.f32 %v3871, %v3881
      %v3943 = vadd.f32 %v3872, %v3881
      %v3944 = vadd.f32 %v3873, %v3881
      %v3945 = vadd.f32 %v3874, %v3881
      %v3946 = vadd.f32 %v3875, %v3881
      %v3947 = vmax.f32 %v3883, 0.0
      %v3948 = vmax.f32 %v3884, 0.0
      %v3949 = vmax.f32 %v3885, 0.0
      %v3950 = vmax.f32 %v3886, 0.0
      %v3951 = vmax.f32 %v3887, 0.0
      %v3952 = vmax.f32 %v3888, 0.0
      %v3953 = vmax.f32 %v3889, 0.0
      %v3954 = vmax.f32 %v3890, 0.0
      %v3955 = vmax.f32 %v3891, 0.0
      %v3956 = vmax.f32 %v3892, 0.0
      %v3957 = vmax.f32 %v3893, 0.0
      %v3958 = vmax.f32 %v3894, 0.0
      %v3959 = vmax.f32 %v3895, 0.0
      %v3960 = vmax.f32 %v3896, 0.0
      %v3961 = vmax.f32 %v3897, 0.0
      %v3962 = vmax.f32 %v3898, 0.0
      %v3963 = vmax.f32 %v3899, 0.0
      %v3964 = vmax.f32 %v3900, 0.0
      %v3965 = vmax.f32 %v3901, 0.0
      %v3966 = vmax.f32 %v3902, 0.0
      %v3967 = vmax.f32 %v3903, 0.0
      %v3968 = vmax.f32 %v3904, 0.0
      %v3969 = vmax.f32 %v3905, 0.0
      %v3970 = vmax.f32 %v3906, 0.0
      %v3971 = vmax.f32 %v3907, 0.0
      %v3972 = vmax.f32 %v3908, 0.0
      %v3973 = vmax.f32 %v3909, 0.0
      %v3974 = vmax.f32 %v3910, 0.0
      %v3975 = vmax.f32 %v3911, 0.0
      %v3976 = vmax.f32 %v3912, 0.0
      %v3977 = vmax.f32 %v3913, 0.0
      %v3978 = vmax.f32 %v3914, 0.0
      %v3979 = vmax.f32 %v3915, 0.0
      %v3980 = vmax.f32 %v3916, 0.0
      %v3981 = vmax.f32 %v3917, 0.0
      %v3982 = vmax.f32 %v3918, 0.0
      %v3983 = vmax.f32 %v3919, 0.0
      %v3984 = vmax.f32 %v3920, 0.0
      %v3985 = vmax.f32 %v3921, 0.0
      %v3986 = vmax.f32 %v3922, 0.0
      %v3987 = vmax.f32 %v3923, 0.0
      %v3988 = vmax.f32 %v3924, 0.0
      %v3989 = vmax.f32 %v3925, 0.0
      %v3990 = vmax.f32 %v3926, 0.0
      %v3991 = vmax.f32 %v3927, 0.0
      %v3992 = vmax.f32 %v3928, 0.0
      %v3993 = vmax.f32 %v3929, 0.0
      %v3994 = vmax.f32 %v3930, 0.0
      %v3995 = vmax.f32 %v3931, 0.0
      %v3996 = vmax.f32 %v3932, 0.0
      %v3997 = vmax.f32 %v3933, 0.0
      %v3998 = vmax.f32 %v3934, 0.0
      %v3999 = vmax.f32 %v3935, 0.0
      %v4000 = vmax.f32 %v3936, 0.0
      %v4001 = vmax.f32 %v3937, 0.0
      %v4002 = vmax.f32 %v3938, 0.0
      %v4003 = vmax.f32 %v3939, 0.0
      %v4004 = vmax.f32 %v3940, 0.0
      %v4005 = vmax.f32 %v3941, 0.0
      %v4006 = vmax.f32 %v3942, 0.0
      %v4007 = vmax.f32 %v3943, 0.0
      %v4008 = vmax.f32 %v3944, 0.0
      %v4009 = vmax.f32 %v3945, 0.0
      %v4010 = vmax.f32 %v3946, 0.0
      %v4011 = vpack.c.bf16 %v3947, %v3947
      %v4012 = vpack.c.bf16 %v3948, %v3948
      %v4013 = vpack.c.bf16 %v3949, %v3949
      %v4014 = vpack.c.bf16 %v3950, %v3950
      %v4015 = vpack.c.bf16 %v3951, %v3951
      %v4016 = vpack.c.bf16 %v3952, %v3952
      %v4017 = vpack.c.bf16 %v3953, %v3953
      %v4018 = vpack.c.bf16 %v3954, %v3954
      %v4019 = vpack.c.bf16 %v3955, %v3955
      %v4020 = vpack.c.bf16 %v3956, %v3956
      %v4021 = vpack.c.bf16 %v3957, %v3957
      %v4022 = vpack.c.bf16 %v3958, %v3958
      %v4023 = vpack.c.bf16 %v3959, %v3959
      %v4024 = vpack.c.bf16 %v3960, %v3960
      %v4025 = vpack.c.bf16 %v3961, %v3961
      %v4026 = vpack.c.bf16 %v3962, %v3962
      %v4027 = vpack.c.bf16 %v3963, %v3963
      %v4028 = vpack.c.bf16 %v3964, %v3964
      %v4029 = vpack.c.bf16 %v3965, %v3965
      %v4030 = vpack.c.bf16 %v3966, %v3966
      %v4031 = vpack.c.bf16 %v3967, %v3967
      %v4032 = vpack.c.bf16 %v3968, %v3968
      %v4033 = vpack.c.bf16 %v3969, %v3969
      %v4034 = vpack.c.bf16 %v3970, %v3970
      %v4035 = vpack.c.bf16 %v3971, %v3971
      %v4036 = vpack.c.bf16 %v3972, %v3972
      %v4037 = vpack.c.bf16 %v3973, %v3973
      %v4038 = vpack.c.bf16 %v3974, %v3974
      %v4039 = vpack.c.bf16 %v3975, %v3975
      %v4040 = vpack.c.bf16 %v3976, %v3976
      %v4041 = vpack.c.bf16 %v3977, %v3977
      %v4042 = vpack.c.bf16 %v3978, %v3978
      %v4043 = vpack.c.bf16 %v3979, %v3979
      %v4044 = vpack.c.bf16 %v3980, %v3980
      %v4045 = vpack.c.bf16 %v3981, %v3981
      %v4046 = vpack.c.bf16 %v3982, %v3982
      %v4047 = vpack.c.bf16 %v3983, %v3983
      %v4048 = vpack.c.bf16 %v3984, %v3984
      %v4049 = vpack.c.bf16 %v3985, %v3985
      %v4050 = vpack.c.bf16 %v3986, %v3986
      %v4051 = vpack.c.bf16 %v3987, %v3987
      %v4052 = vpack.c.bf16 %v3988, %v3988
      %v4053 = vpack.c.bf16 %v3989, %v3989
      %v4054 = vpack.c.bf16 %v3990, %v3990
      %v4055 = vpack.c.bf16 %v3991, %v3991
      %v4056 = vpack.c.bf16 %v3992, %v3992
      %v4057 = vpack.c.bf16 %v3993, %v3993
      %v4058 = vpack.c.bf16 %v3994, %v3994
      %v4059 = vpack.c.bf16 %v3995, %v3995
      %v4060 = vpack.c.bf16 %v3996, %v3996
      %v4061 = vpack.c.bf16 %v3997, %v3997
      %v4062 = vpack.c.bf16 %v3998, %v3998
      %v4063 = vpack.c.bf16 %v3999, %v3999
      %v4064 = vpack.c.bf16 %v4000, %v4000
      %v4065 = vpack.c.bf16 %v4001, %v4001
      %v4066 = vpack.c.bf16 %v4002, %v4002
      %v4067 = vpack.c.bf16 %v4003, %v4003
      %v4068 = vpack.c.bf16 %v4004, %v4004
      %v4069 = vpack.c.bf16 %v4005, %v4005
      %v4070 = vpack.c.bf16 %v4006, %v4006
      %v4071 = vpack.c.bf16 %v4007, %v4007
      %v4072 = vpack.c.bf16 %v4008, %v4008
      %v4073 = vpack.c.bf16 %v4009, %v4009
      %v4074 = vpack.c.bf16 %v4010, %v4010
      %v4076 = vshrl.u32 %v4011, 16
      %v4078 = vrot.slane %v4076, 7
      %v4079 = vshll.u32 %v4011, 16
      %v4081 = vor.u32 %v4078, %v4079
      %v4083 = vshrl.u32 %v4012, 16
      %v4085 = vrot.slane %v4083, 7
      %v4086 = vshll.u32 %v4012, 16
      %v4088 = vor.u32 %v4085, %v4086
      %v4090 = vshrl.u32 %v4013, 16
      %v4092 = vrot.slane %v4090, 7
      %v4093 = vshll.u32 %v4013, 16
      %v4095 = vor.u32 %v4092, %v4093
      %v4097 = vshrl.u32 %v4014, 16
      %v4099 = vrot.slane %v4097, 7
      %v4100 = vshll.u32 %v4014, 16
      %v4102 = vor.u32 %v4099, %v4100
      %v4104 = vshrl.u32 %v4015, 16
      %v4106 = vrot.slane %v4104, 7
      %v4107 = vshll.u32 %v4015, 16
      %v4109 = vor.u32 %v4106, %v4107
      %v4111 = vshrl.u32 %v4016, 16
      %v4113 = vrot.slane %v4111, 7
      %v4114 = vshll.u32 %v4016, 16
      %v4116 = vor.u32 %v4113, %v4114
      %v4118 = vshrl.u32 %v4017, 16
      %v4120 = vrot.slane %v4118, 7
      %v4121 = vshll.u32 %v4017, 16
      %v4123 = vor.u32 %v4120, %v4121
      %v4125 = vshrl.u32 %v4018, 16
      %v4127 = vrot.slane %v4125, 7
      %v4128 = vshll.u32 %v4018, 16
      %v4130 = vor.u32 %v4127, %v4128
      %v4132 = vshrl.u32 %v4019, 16
      %v4134 = vrot.slane %v4132, 7
      %v4135 = vshll.u32 %v4019, 16
      %v4137 = vor.u32 %v4134, %v4135
      %v4139 = vshrl.u32 %v4020, 16
      %v4141 = vrot.slane %v4139, 7
      %v4142 = vshll.u32 %v4020, 16
      %v4144 = vor.u32 %v4141, %v4142
      %v4146 = vshrl.u32 %v4021, 16
      %v4148 = vrot.slane %v4146, 7
      %v4149 = vshll.u32 %v4021, 16
      %v4151 = vor.u32 %v4148, %v4149
      %v4153 = vshrl.u32 %v4022, 16
      %v4155 = vrot.slane %v4153, 7
      %v4156 = vshll.u32 %v4022, 16
      %v4158 = vor.u32 %v4155, %v4156
      %v4160 = vshrl.u32 %v4023, 16
      %v4162 = vrot.slane %v4160, 7
      %v4163 = vshll.u32 %v4023, 16
      %v4165 = vor.u32 %v4162, %v4163
      %v4167 = vshrl.u32 %v4024, 16
      %v4169 = vrot.slane %v4167, 7
      %v4170 = vshll.u32 %v4024, 16
      %v4172 = vor.u32 %v4169, %v4170
      %v4174 = vshrl.u32 %v4025, 16
      %v4176 = vrot.slane %v4174, 7
      %v4177 = vshll.u32 %v4025, 16
      %v4179 = vor.u32 %v4176, %v4177
      %v4181 = vshrl.u32 %v4026, 16
      %v4183 = vrot.slane %v4181, 7
      %v4184 = vshll.u32 %v4026, 16
      %v4186 = vor.u32 %v4183, %v4184
      %v4188 = vshrl.u32 %v4027, 16
      %v4190 = vrot.slane %v4188, 7
      %v4191 = vshll.u32 %v4027, 16
      %v4193 = vor.u32 %v4190, %v4191
      %v4195 = vshrl.u32 %v4028, 16
      %v4197 = vrot.slane %v4195, 7
      %v4198 = vshll.u32 %v4028, 16
      %v4200 = vor.u32 %v4197, %v4198
      %v4202 = vshrl.u32 %v4029, 16
      %v4204 = vrot.slane %v4202, 7
      %v4205 = vshll.u32 %v4029, 16
      %v4207 = vor.u32 %v4204, %v4205
      %v4209 = vshrl.u32 %v4030, 16
      %v4211 = vrot.slane %v4209, 7
      %v4212 = vshll.u32 %v4030, 16
      %v4214 = vor.u32 %v4211, %v4212
      %v4216 = vshrl.u32 %v4031, 16
      %v4218 = vrot.slane %v4216, 7
      %v4219 = vshll.u32 %v4031, 16
      %v4221 = vor.u32 %v4218, %v4219
      %v4223 = vshrl.u32 %v4032, 16
      %v4225 = vrot.slane %v4223, 7
      %v4226 = vshll.u32 %v4032, 16
      %v4228 = vor.u32 %v4225, %v4226
      %v4230 = vshrl.u32 %v4033, 16
      %v4232 = vrot.slane %v4230, 7
      %v4233 = vshll.u32 %v4033, 16
      %v4235 = vor.u32 %v4232, %v4233
      %v4237 = vshrl.u32 %v4034, 16
      %v4239 = vrot.slane %v4237, 7
      %v4240 = vshll.u32 %v4034, 16
      %v4242 = vor.u32 %v4239, %v4240
      %v4244 = vshrl.u32 %v4035, 16
      %v4246 = vrot.slane %v4244, 7
      %v4247 = vshll.u32 %v4035, 16
      %v4249 = vor.u32 %v4246, %v4247
      %v4251 = vshrl.u32 %v4036, 16
      %v4253 = vrot.slane %v4251, 7
      %v4254 = vshll.u32 %v4036, 16
      %v4256 = vor.u32 %v4253, %v4254
      %v4258 = vshrl.u32 %v4037, 16
      %v4260 = vrot.slane %v4258, 7
      %v4261 = vshll.u32 %v4037, 16
      %v4263 = vor.u32 %v4260, %v4261
      %v4265 = vshrl.u32 %v4038, 16
      %v4267 = vrot.slane %v4265, 7
      %v4268 = vshll.u32 %v4038, 16
      %v4270 = vor.u32 %v4267, %v4268
      %v4272 = vshrl.u32 %v4039, 16
      %v4274 = vrot.slane %v4272, 7
      %v4275 = vshll.u32 %v4039, 16
      %v4277 = vor.u32 %v4274, %v4275
      %v4279 = vshrl.u32 %v4040, 16
      %v4281 = vrot.slane %v4279, 7
      %v4282 = vshll.u32 %v4040, 16
      %v4284 = vor.u32 %v4281, %v4282
      %v4286 = vshrl.u32 %v4041, 16
      %v4288 = vrot.slane %v4286, 7
      %v4289 = vshll.u32 %v4041, 16
      %v4291 = vor.u32 %v4288, %v4289
      %v4293 = vshrl.u32 %v4042, 16
      %v4295 = vrot.slane %v4293, 7
      %v4296 = vshll.u32 %v4042, 16
      %v4298 = vor.u32 %v4295, %v4296
      %v4300 = vshrl.u32 %v4043, 16
      %v4302 = vrot.slane %v4300, 7
      %v4303 = vshll.u32 %v4043, 16
      %v4305 = vor.u32 %v4302, %v4303
      %v4307 = vshrl.u32 %v4044, 16
      %v4309 = vrot.slane %v4307, 7
      %v4310 = vshll.u32 %v4044, 16
      %v4312 = vor.u32 %v4309, %v4310
      %v4314 = vshrl.u32 %v4045, 16
      %v4316 = vrot.slane %v4314, 7
      %v4317 = vshll.u32 %v4045, 16
      %v4319 = vor.u32 %v4316, %v4317
      %v4321 = vshrl.u32 %v4046, 16
      %v4323 = vrot.slane %v4321, 7
      %v4324 = vshll.u32 %v4046, 16
      %v4326 = vor.u32 %v4323, %v4324
      %v4328 = vshrl.u32 %v4047, 16
      %v4330 = vrot.slane %v4328, 7
      %v4331 = vshll.u32 %v4047, 16
      %v4333 = vor.u32 %v4330, %v4331
      %v4335 = vshrl.u32 %v4048, 16
      %v4337 = vrot.slane %v4335, 7
      %v4338 = vshll.u32 %v4048, 16
      %v4340 = vor.u32 %v4337, %v4338
      %v4342 = vshrl.u32 %v4049, 16
      %v4344 = vrot.slane %v4342, 7
      %v4345 = vshll.u32 %v4049, 16
      %v4347 = vor.u32 %v4344, %v4345
      %v4349 = vshrl.u32 %v4050, 16
      %v4351 = vrot.slane %v4349, 7
      %v4352 = vshll.u32 %v4050, 16
      %v4354 = vor.u32 %v4351, %v4352
      %v4356 = vshrl.u32 %v4051, 16
      %v4358 = vrot.slane %v4356, 7
      %v4359 = vshll.u32 %v4051, 16
      %v4361 = vor.u32 %v4358, %v4359
      %v4363 = vshrl.u32 %v4052, 16
      %v4365 = vrot.slane %v4363, 7
      %v4366 = vshll.u32 %v4052, 16
      %v4368 = vor.u32 %v4365, %v4366
      %v4370 = vshrl.u32 %v4053, 16
      %v4372 = vrot.slane %v4370, 7
      %v4373 = vshll.u32 %v4053, 16
      %v4375 = vor.u32 %v4372, %v4373
      %v4377 = vshrl.u32 %v4054, 16
      %v4379 = vrot.slane %v4377, 7
      %v4380 = vshll.u32 %v4054, 16
      %v4382 = vor.u32 %v4379, %v4380
      %v4384 = vshrl.u32 %v4055, 16
      %v4386 = vrot.slane %v4384, 7
      %v4387 = vshll.u32 %v4055, 16
      %v4389 = vor.u32 %v4386, %v4387
      %v4391 = vshrl.u32 %v4056, 16
      %v4393 = vrot.slane %v4391, 7
      %v4394 = vshll.u32 %v4056, 16
      %v4396 = vor.u32 %v4393, %v4394
      %v4398 = vshrl.u32 %v4057, 16
      %v4400 = vrot.slane %v4398, 7
      %v4401 = vshll.u32 %v4057, 16
      %v4403 = vor.u32 %v4400, %v4401
      %v4405 = vshrl.u32 %v4058, 16
      %v4407 = vrot.slane %v4405, 7
      %v4408 = vshll.u32 %v4058, 16
      %v4410 = vor.u32 %v4407, %v4408
      %v4412 = vshrl.u32 %v4059, 16
      %v4414 = vrot.slane %v4412, 7
      %v4415 = vshll.u32 %v4059, 16
      %v4417 = vor.u32 %v4414, %v4415
      %v4419 = vshrl.u32 %v4060, 16
      %v4421 = vrot.slane %v4419, 7
      %v4422 = vshll.u32 %v4060, 16
      %v4424 = vor.u32 %v4421, %v4422
      %v4426 = vshrl.u32 %v4061, 16
      %v4428 = vrot.slane %v4426, 7
      %v4429 = vshll.u32 %v4061, 16
      %v4431 = vor.u32 %v4428, %v4429
      %v4433 = vshrl.u32 %v4062, 16
      %v4435 = vrot.slane %v4433, 7
      %v4436 = vshll.u32 %v4062, 16
      %v4438 = vor.u32 %v4435, %v4436
      %v4440 = vshrl.u32 %v4063, 16
      %v4442 = vrot.slane %v4440, 7
      %v4443 = vshll.u32 %v4063, 16
      %v4445 = vor.u32 %v4442, %v4443
      %v4447 = vshrl.u32 %v4064, 16
      %v4449 = vrot.slane %v4447, 7
      %v4450 = vshll.u32 %v4064, 16
      %v4452 = vor.u32 %v4449, %v4450
      %v4454 = vshrl.u32 %v4065, 16
      %v4456 = vrot.slane %v4454, 7
      %v4457 = vshll.u32 %v4065, 16
      %v4459 = vor.u32 %v4456, %v4457
      %v4461 = vshrl.u32 %v4066, 16
      %v4463 = vrot.slane %v4461, 7
      %v4464 = vshll.u32 %v4066, 16
      %v4466 = vor.u32 %v4463, %v4464
      %v4468 = vshrl.u32 %v4067, 16
      %v4470 = vrot.slane %v4468, 7
      %v4471 = vshll.u32 %v4067, 16
      %v4473 = vor.u32 %v4470, %v4471
      %v4475 = vshrl.u32 %v4068, 16
      %v4477 = vrot.slane %v4475, 7
      %v4478 = vshll.u32 %v4068, 16
      %v4480 = vor.u32 %v4477, %v4478
      %v4482 = vshrl.u32 %v4069, 16
      %v4484 = vrot.slane %v4482, 7
      %v4485 = vshll.u32 %v4069, 16
      %v4487 = vor.u32 %v4484, %v4485
      %v4489 = vshrl.u32 %v4070, 16
      %v4491 = vrot.slane %v4489, 7
      %v4492 = vshll.u32 %v4070, 16
      %v4494 = vor.u32 %v4491, %v4492
      %v4496 = vshrl.u32 %v4071, 16
      %v4498 = vrot.slane %v4496, 7
      %v4499 = vshll.u32 %v4071, 16
      %v4501 = vor.u32 %v4498, %v4499
      %v4503 = vshrl.u32 %v4072, 16
      %v4505 = vrot.slane %v4503, 7
      %v4506 = vshll.u32 %v4072, 16
      %v4508 = vor.u32 %v4505, %v4506
      %v4510 = vshrl.u32 %v4073, 16
      %v4512 = vrot.slane %v4510, 7
      %v4513 = vshll.u32 %v4073, 16
      %v4515 = vor.u32 %v4512, %v4513
      %v4517 = vshrl.u32 %v4074, 16
      %v4519 = vrot.slane %v4517, 7
      %v4520 = vshll.u32 %v4074, 16
      %v4522 = vor.u32 %v4519, %v4520
      %v4587 = vsel %vm1826, 0, %v4081
      %v4588 = vsel %vm1826, 0, %v4088
      %v4589 = vsel %vm1826, 0, %v4095
      %v4590 = vsel %vm1826, 0, %v4102
      %v4591 = vsel %vm1826, 0, %v4109
      %v4592 = vsel %vm1826, 0, %v4116
      %v4593 = vsel %vm1826, 0, %v4123
      %v4594 = vsel %vm1826, 0, %v4130
      %v4595 = vsel %vm1826, 0, %v4137
      %v4596 = vsel %vm1826, 0, %v4144
      %v4597 = vsel %vm1826, 0, %v4151
      %v4598 = vsel %vm1826, 0, %v4158
      %v4599 = vsel %vm1826, 0, %v4165
      %v4600 = vsel %vm1826, 0, %v4172
      %v4601 = vsel %vm1826, 0, %v4179
      %v4602 = vsel %vm1826, 0, %v4186
      %v4603 = vsel %vm1826, 0, %v4193
      %v4604 = vsel %vm1826, 0, %v4200
      %v4605 = vsel %vm1826, 0, %v4207
      %v4606 = vsel %vm1826, 0, %v4214
      %v4607 = vsel %vm1826, 0, %v4221
      %v4608 = vsel %vm1826, 0, %v4228
      %v4609 = vsel %vm1826, 0, %v4235
      %v4610 = vsel %vm1826, 0, %v4242
      %v4611 = vsel %vm1826, 0, %v4249
      %v4612 = vsel %vm1826, 0, %v4256
      %v4613 = vsel %vm1826, 0, %v4263
      %v4614 = vsel %vm1826, 0, %v4270
      %v4615 = vsel %vm1826, 0, %v4277
      %v4616 = vsel %vm1826, 0, %v4284
      %v4617 = vsel %vm1826, 0, %v4291
      %v4618 = vsel %vm1826, 0, %v4298
      %v4619 = vsel %vm1826, 0, %v4305
      %v4620 = vsel %vm1826, 0, %v4312
      %v4621 = vsel %vm1826, 0, %v4319
      %v4622 = vsel %vm1826, 0, %v4326
      %v4623 = vsel %vm1826, 0, %v4333
      %v4624 = vsel %vm1826, 0, %v4340
      %v4625 = vsel %vm1826, 0, %v4347
      %v4626 = vsel %vm1826, 0, %v4354
      %v4627 = vsel %vm1826, 0, %v4361
      %v4628 = vsel %vm1826, 0, %v4368
      %v4629 = vsel %vm1826, 0, %v4375
      %v4630 = vsel %vm1826, 0, %v4382
      %v4631 = vsel %vm1826, 0, %v4389
      %v4632 = vsel %vm1826, 0, %v4396
      %v4633 = vsel %vm1826, 0, %v4403
      %v4634 = vsel %vm1826, 0, %v4410
      %v4635 = vsel %vm1826, 0, %v4417
      %v4636 = vsel %vm1826, 0, %v4424
      %v4637 = vsel %vm1826, 0, %v4431
      %v4638 = vsel %vm1826, 0, %v4438
      %v4639 = vsel %vm1826, 0, %v4445
      %v4640 = vsel %vm1826, 0, %v4452
      %v4641 = vsel %vm1826, 0, %v4459
      %v4642 = vsel %vm1826, 0, %v4466
      %v4643 = vsel %vm1826, 0, %v4473
      %v4644 = vsel %vm1826, 0, %v4480
      %v4645 = vsel %vm1826, 0, %v4487
      %v4646 = vsel %vm1826, 0, %v4494
      %v4647 = vsel %vm1826, 0, %v4501
      %v4648 = vsel %vm1826, 0, %v4508
      %v4649 = vsel %vm1826, 0, %v4515
      %v4650 = vsel %vm1826, 0, %v4522
      %v4651 = vld [vmem:[%s4] sm:$0xf]
      %v4652 = vld [vmem:[%s4 + $0x4] sm:$0xf]
      %v4653 = vld [vmem:[%s4 + $0x8] sm:$0xf]
      %v4654 = vld [vmem:[%s4 + $0xc] sm:$0xf]
      %s4655 = scalar_lea.vmem %s4, 16
      %v4656 = vld [vmem:[%s4655] sm:$0xf]
      %v4657 = vld [vmem:[%s4655 + $0x4] sm:$0xf]
      %v4658 = vld [vmem:[%s4655 + $0x8] sm:$0xf]
      %v4659 = vld [vmem:[%s4655 + $0xc] sm:$0xf]
      %v4724 = vunpack.c.l.b16 %v4011
      %v4725 = vunpack.c.l.b16 %v4012
      %v4726 = vunpack.c.l.b16 %v4013
      %v4727 = vunpack.c.l.b16 %v4014
      %v4728 = vunpack.c.l.b16 %v4015
      %v4729 = vunpack.c.l.b16 %v4016
      %v4730 = vunpack.c.l.b16 %v4017
      %v4731 = vunpack.c.l.b16 %v4018
      %v4732 = vunpack.c.l.b16 %v4019
      %v4733 = vunpack.c.l.b16 %v4020
      %v4734 = vunpack.c.l.b16 %v4021
      %v4735 = vunpack.c.l.b16 %v4022
      %v4736 = vunpack.c.l.b16 %v4023
      %v4737 = vunpack.c.l.b16 %v4024
      %v4738 = vunpack.c.l.b16 %v4025
      %v4739 = vunpack.c.l.b16 %v4026
      %v4740 = vunpack.c.l.b16 %v4027
      %v4741 = vunpack.c.l.b16 %v4028
      %v4742 = vunpack.c.l.b16 %v4029
      %v4743 = vunpack.c.l.b16 %v4030
      %v4744 = vunpack.c.l.b16 %v4031
      %v4745 = vunpack.c.l.b16 %v4032
      %v4746 = vunpack.c.l.b16 %v4033
      %v4747 = vunpack.c.l.b16 %v4034
      %v4748 = vunpack.c.l.b16 %v4035
      %v4749 = vunpack.c.l.b16 %v4036
      %v4750 = vunpack.c.l.b16 %v4037
      %v4751 = vunpack.c.l.b16 %v4038
      %v4752 = vunpack.c.l.b16 %v4039
      %v4753 = vunpack.c.l.b16 %v4040
      %v4754 = vunpack.c.l.b16 %v4041
      %v4755 = vunpack.c.l.b16 %v4042
      %v4756 = vunpack.c.l.b16 %v4043
      %v4757 = vunpack.c.l.b16 %v4044
      %v4758 = vunpack.c.l.b16 %v4045
      %v4759 = vunpack.c.l.b16 %v4046
      %v4760 = vunpack.c.l.b16 %v4047
      %v4761 = vunpack.c.l.b16 %v4048
      %v4762 = vunpack.c.l.b16 %v4049
      %v4763 = vunpack.c.l.b16 %v4050
      %v4764 = vunpack.c.l.b16 %v4051
      %v4765 = vunpack.c.l.b16 %v4052
      %v4766 = vunpack.c.l.b16 %v4053
      %v4767 = vunpack.c.l.b16 %v4054
      %v4768 = vunpack.c.l.b16 %v4055
      %v4769 = vunpack.c.l.b16 %v4056
      %v4770 = vunpack.c.l.b16 %v4057
      %v4771 = vunpack.c.l.b16 %v4058
      %v4772 = vunpack.c.l.b16 %v4059
      %v4773 = vunpack.c.l.b16 %v4060
      %v4774 = vunpack.c.l.b16 %v4061
      %v4775 = vunpack.c.l.b16 %v4062
      %v4776 = vunpack.c.l.b16 %v4063
      %v4777 = vunpack.c.l.b16 %v4064
      %v4778 = vunpack.c.l.b16 %v4065
      %v4779 = vunpack.c.l.b16 %v4066
      %v4780 = vunpack.c.l.b16 %v4067
      %v4781 = vunpack.c.l.b16 %v4068
      %v4782 = vunpack.c.l.b16 %v4069
      %v4783 = vunpack.c.l.b16 %v4070
      %v4784 = vunpack.c.l.b16 %v4071
      %v4785 = vunpack.c.l.b16 %v4072
      %v4786 = vunpack.c.l.b16 %v4073
      %v4787 = vunpack.c.l.b16 %v4074
      %v4788 = vpack.c.b16 %v4725, %v4724
      %v4789 = vpack.c.b16 %v4727, %v4726
      %v4790 = vpack.c.b16 %v4729, %v4728
      %v4791 = vpack.c.b16 %v4731, %v4730
      %v4792 = vpack.c.b16 %v4733, %v4732
      %v4793 = vpack.c.b16 %v4735, %v4734
      %v4794 = vpack.c.b16 %v4737, %v4736
      %v4795 = vpack.c.b16 %v4739, %v4738
      %v4796 = vpack.c.b16 %v4741, %v4740
      %v4797 = vpack.c.b16 %v4743, %v4742
      %v4798 = vpack.c.b16 %v4745, %v4744
      %v4799 = vpack.c.b16 %v4747, %v4746
      %v4800 = vpack.c.b16 %v4749, %v4748
      %v4801 = vpack.c.b16 %v4751, %v4750
      %v4802 = vpack.c.b16 %v4753, %v4752
      %v4803 = vpack.c.b16 %v4755, %v4754
      %v4804 = vpack.c.b16 %v4757, %v4756
      %v4805 = vpack.c.b16 %v4759, %v4758
      %v4806 = vpack.c.b16 %v4761, %v4760
      %v4807 = vpack.c.b16 %v4763, %v4762
      %v4808 = vpack.c.b16 %v4765, %v4764
      %v4809 = vpack.c.b16 %v4767, %v4766
      %v4810 = vpack.c.b16 %v4769, %v4768
      %v4811 = vpack.c.b16 %v4771, %v4770
      %v4812 = vpack.c.b16 %v4773, %v4772
      %v4813 = vpack.c.b16 %v4775, %v4774
      %v4814 = vpack.c.b16 %v4777, %v4776
      %v4815 = vpack.c.b16 %v4779, %v4778
      %v4816 = vpack.c.b16 %v4781, %v4780
      %v4817 = vpack.c.b16 %v4783, %v4782
      %v4818 = vpack.c.b16 %v4785, %v4784
      %v4819 = vpack.c.b16 %v4787, %v4786
      %v4824 = vunpack.c.l.b16 %v4656
      %v4825 = vunpack.c.l.b16 %v4657
      %v4826 = vunpack.c.l.b16 %v4658
      %v4827 = vunpack.c.l.b16 %v4659
      %v4828 = vpack.c.b16 %v4825, %v4824
      %v4829 = vpack.c.b16 %v4827, %v4826
      %vm4832 = vcmask 261120
      %v4834 = vsel %vm4832, %v4788, 0
      %v4837 = vsel %vm4832, %v4789, 0
      %v4840 = vsel %vm4832, %v4790, 0
      %v4843 = vsel %vm4832, %v4791, 0
      %v4846 = vsel %vm4832, %v4792, 0
      %v4849 = vsel %vm4832, %v4793, 0
      %v4852 = vsel %vm4832, %v4794, 0
      %v4855 = vsel %vm4832, %v4795, 0
      %v4858 = vsel %vm4832, %v4796, 0
      %v4861 = vsel %vm4832, %v4797, 0
      %v4864 = vsel %vm4832, %v4798, 0
      %v4867 = vsel %vm4832, %v4799, 0
      %v4870 = vsel %vm4832, %v4800, 0
      %v4873 = vsel %vm4832, %v4801, 0
      %v4876 = vsel %vm4832, %v4802, 0
      %v4879 = vsel %vm4832, %v4803, 0
      %v4882 = vsel %vm4832, %v4804, 0
      %v4885 = vsel %vm4832, %v4805, 0
      %v4888 = vsel %vm4832, %v4806, 0
      %v4891 = vsel %vm4832, %v4807, 0
      %v4894 = vsel %vm4832, %v4808, 0
      %v4897 = vsel %vm4832, %v4809, 0
      %v4900 = vsel %vm4832, %v4810, 0
      %v4903 = vsel %vm4832, %v4811, 0
      %v4906 = vsel %vm4832, %v4812, 0
      %v4909 = vsel %vm4832, %v4813, 0
      %v4912 = vsel %vm4832, %v4814, 0
      %v4915 = vsel %vm4832, %v4815, 0
      %v4918 = vsel %vm4832, %v4816, 0
      %v4921 = vsel %vm4832, %v4817, 0
      %v4924 = vsel %vm4832, %v4818, 0
      %v4927 = vsel %vm4832, %v4819, 0
      %4929 = vmatprep.subr.bf16.mxu0 0
      %4930 = vmatpush1.bf16.msra.mxu0 %v4828
      %4931 = vmatprep.subr.bf16.mxu0 0
      %4932 = vmatpush1.bf16.msra.mxu0 %v4829
      %4933 = vmatprep.subr.bf16.mxu0 0
      %4934 = vmatpush1.bf16.msra.mxu0 0
      %4935 = vmatprep.subr.bf16.mxu0 0
      %4936 = vmatpush1.bf16.msra.mxu0 0
      %4937 = vmatprep.subr.bf16.mxu0 0
      %4938 = vmatpush1.bf16.msra.mxu0 0
      %4939 = vmatprep.subr.bf16.mxu0 0
      %4940 = vmatpush1.bf16.msra.mxu0 0
      %4941 = vmatprep.subr.bf16.mxu0 0
      %4942 = vmatpush1.bf16.msra.mxu0 0
      %4943 = vmatprep.subr.bf16.mxu0 0
      %4944 = vmatpush1.bf16.msra.mxu0 0
      %4945 = vmatprep.subr.bf16.mxu0 0
      %4946 = vmatpush1.bf16.msra.mxu0 0
      %4947 = vmatprep.subr.bf16.mxu0 0
      %4948 = vmatpush1.bf16.msra.mxu0 0
      %4949 = vmatprep.subr.bf16.mxu0 0
      %4950 = vmatpush1.bf16.msra.mxu0 0
      %4951 = vmatprep.subr.bf16.mxu0 0
      %4952 = vmatpush1.bf16.msra.mxu0 0
      %4953 = vmatprep.subr.bf16.mxu0 0
      %4954 = vmatpush1.bf16.msra.mxu0 0
      %4955 = vmatprep.subr.bf16.mxu0 0
      %4956 = vmatpush1.bf16.msra.mxu0 0
      %4957 = vmatprep.subr.bf16.mxu0 0
      %4958 = vmatpush1.bf16.msra.mxu0 0
      %4959 = vmatprep.subr.bf16.mxu0 0
      %4960 = vmatpush1.bf16.msra.mxu0 0
      %4961 = vmatprep.mubr.bf16.mxu0 0
      %4962 = vmatmul.mubr.bf16.gmra.mrb[0].mxu0 %v4834
      %v4963 = vpop.f32.mrb[0].mxu0
      %v4964 = vadd.f32 0.0, %v4963
      %v4965 = vpop.f32.mrb[0].mxu0
      %v4966 = vpop.f32.mrb[0].mxu0
      %v4967 = vadd.f32 0.0, %v4966
      %v4968 = vpop.f32.mrb[0].mxu0
      %4969 = vmatprep.mubr.bf16.mxu0 0
      %4970 = vmatmul.mubr.bf16.gmra.mrb[0].mxu0 %v4837
      %v4971 = vpop.f32.mrb[0].mxu0
      %v4972 = vadd.f32 0.0, %v4971
      %v4973 = vpop.f32.mrb[0].mxu0
      %v4974 = vpop.f32.mrb[0].mxu0
      %v4975 = vadd.f32 0.0, %v4974
      %v4976 = vpop.f32.mrb[0].mxu0
      %4977 = vmatprep.mubr.bf16.mxu0 0
      %4978 = vmatmul.mubr.bf16.gmra.mrb[0].mxu0 %v4840
      %v4979 = vpop.f32.mrb[0].mxu0
      %v4980 = vadd.f32 0.0, %v4979
      %v4981 = vpop.f32.mrb[0].mxu0
      %v4982 = vpop.f32.mrb[0].mxu0
      %v4983 = vadd.f32 0.0, %v4982
      %v4984 = vpop.f32.mrb[0].mxu0
      %4985 = vmatprep.mubr.bf16.mxu0 0
      %4986 = vmatmul.mubr.bf16.gmra.mrb[0].mxu0 %v4843
      %v4987 = vpop.f32.mrb[0].mxu0
      %v4988 = vadd.f32 0.0, %v4987
      %v4989 = vpop.f32.mrb[0].mxu0
      %v4990 = vpop.f32.mrb[0].mxu0
      %v4991 = vadd.f32 0.0, %v4990
      %v4992 = vpop.f32.mrb[0].mxu0
      %4993 = vmatprep.mubr.bf16.mxu0 0
      %4994 = vmatmul.mubr.bf16.gmra.mrb[0].mxu0 %v4846
      %v4995 = vpop.f32.mrb[0].mxu0
      %v4996 = vadd.f32 0.0, %v4995
      %v4997 = vpop.f32.mrb[0].mxu0
      %v4998 = vpop.f32.mrb[0].mxu0
      %v4999 = vadd.f32 0.0, %v4998
      %v5000 = vpop.f32.mrb[0].mxu0
      %5001 = vmatprep.mubr.bf16.mxu0 0
      %5002 = vmatmul.mubr.bf16.gmra.mrb[0].mxu0 %v4849
      %v5003 = vpop.f32.mrb[0].mxu0
      %v5004 = vadd.f32 0.0, %v5003
      %v5005 = vpop.f32.mrb[0].mxu0
      %v5006 = vpop.f32.mrb[0].mxu0
      %v5007 = vadd.f32 0.0, %v5006
      %v5008 = vpop.f32.mrb[0].mxu0
      %5009 = vmatprep.mubr.bf16.mxu0 0
      %5010 = vmatmul.mubr.bf16.gmra.mrb[0].mxu0 %v4852
      %v5011 = vpop.f32.mrb[0].mxu0
      %v5012 = vadd.f32 0.0, %v5011
      %v5013 = vpop.f32.mrb[0].mxu0
      %v5014 = vpop.f32.mrb[0].mxu0
      %v5015 = vadd.f32 0.0, %v5014
      %v5016 = vpop.f32.mrb[0].mxu0
      %5017 = vmatprep.mubr.bf16.mxu0 0
      %5018 = vmatmul.mubr.bf16.gmra.mrb[0].mxu0 %v4855
      %v5019 = vpop.f32.mrb[0].mxu0
      %v5020 = vadd.f32 0.0, %v5019
      %v5021 = vpop.f32.mrb[0].mxu0
      %v5022 = vpop.f32.mrb[0].mxu0
      %v5023 = vadd.f32 0.0, %v5022
      %v5024 = vpop.f32.mrb[0].mxu0
      %5025 = vmatprep.mubr.bf16.mxu0 0
      %5026 = vmatmul.mubr.bf16.gmra.mrb[0].mxu0 %v4858
      %v5027 = vpop.f32.mrb[0].mxu0
      %v5028 = vadd.f32 0.0, %v5027
      %v5029 = vpop.f32.mrb[0].mxu0
      %v5030 = vpop.f32.mrb[0].mxu0
      %v5031 = vadd.f32 0.0, %v5030
      %v5032 = vpop.f32.mrb[0].mxu0
      %5033 = vmatprep.mubr.bf16.mxu0 0
      %5034 = vmatmul.mubr.bf16.gmra.mrb[0].mxu0 %v4861
      %v5035 = vpop.f32.mrb[0].mxu0
      %v5036 = vadd.f32 0.0, %v5035
      %v5037 = vpop.f32.mrb[0].mxu0
      %v5038 = vpop.f32.mrb[0].mxu0
      %v5039 = vadd.f32 0.0, %v5038
      %v5040 = vpop.f32.mrb[0].mxu0
      %5041 = vmatprep.mubr.bf16.mxu0 0
      %5042 = vmatmul.mubr.bf16.gmra.mrb[0].mxu0 %v4864
      %v5043 = vpop.f32.mrb[0].mxu0
      %v5044 = vadd.f32 0.0, %v5043
      %v5045 = vpop.f32.mrb[0].mxu0
      %v5046 = vpop.f32.mrb[0].mxu0
      %v5047 = vadd.f32 0.0, %v5046
      %v5048 = vpop.f32.mrb[0].mxu0
      %5049 = vmatprep.mubr.bf16.mxu0 0
      %5050 = vmatmul.mubr.bf16.gmra.mrb[0].mxu0 %v4867
      %v5051 = vpop.f32.mrb[0].mxu0
      %v5052 = vadd.f32 0.0, %v5051
      %v5053 = vpop.f32.mrb[0].mxu0
      %v5054 = vpop.f32.mrb[0].mxu0
      %v5055 = vadd.f32 0.0, %v5054
      %v5056 = vpop.f32.mrb[0].mxu0
      %5057 = vmatprep.mubr.bf16.mxu0 0
      %5058 = vmatmul.mubr.bf16.gmra.mrb[0].mxu0 %v4870
      %v5059 = vpop.f32.mrb[0].mxu0
      %v5060 = vadd.f32 0.0, %v5059
      %v5061 = vpop.f32.mrb[0].mxu0
      %v5062 = vpop.f32.mrb[0].mxu0
      %v5063 = vadd.f32 0.0, %v5062
      %v5064 = vpop.f32.mrb[0].mxu0
      %5065 = vmatprep.mubr.bf16.mxu0 0
      %5066 = vmatmul.mubr.bf16.gmra.mrb[0].mxu0 %v4873
      %v5067 = vpop.f32.mrb[0].mxu0
      %v5068 = vadd.f32 0.0, %v5067
      %v5069 = vpop.f32.mrb[0].mxu0
      %v5070 = vpop.f32.mrb[0].mxu0
      %v5071 = vadd.f32 0.0, %v5070
      %v5072 = vpop.f32.mrb[0].mxu0
      %5073 = vmatprep.mubr.bf16.mxu0 0
      %5074 = vmatmul.mubr.bf16.gmra.mrb[0].mxu0 %v4876
      %v5075 = vpop.f32.mrb[0].mxu0
      %v5076 = vadd.f32 0.0, %v5075
      %v5077 = vpop.f32.mrb[0].mxu0
      %v5078 = vpop.f32.mrb[0].mxu0
      %v5079 = vadd.f32 0.0, %v5078
      %v5080 = vpop.f32.mrb[0].mxu0
      %5081 = vmatprep.mubr.bf16.mxu0 0
      %5082 = vmatmul.mubr.bf16.gmra.mrb[0].mxu0 %v4879
      %v5083 = vpop.f32.mrb[0].mxu0
      %v5084 = vadd.f32 0.0, %v5083
      %v5085 = vpop.f32.mrb[0].mxu0
      %v5086 = vpop.f32.mrb[0].mxu0
      %v5087 = vadd.f32 0.0, %v5086
      %v5088 = vpop.f32.mrb[0].mxu0
      %5089 = vmatprep.mubr.bf16.mxu0 0
      %5090 = vmatmul.mubr.bf16.gmra.mrb[0].mxu0 %v4882
      %v5091 = vpop.f32.mrb[0].mxu0
      %v5092 = vadd.f32 0.0, %v5091
      %v5093 = vpop.f32.mrb[0].mxu0
      %v5094 = vpop.f32.mrb[0].mxu0
      %v5095 = vadd.f32 0.0, %v5094
      %v5096 = vpop.f32.mrb[0].mxu0
      %5097 = vmatprep.mubr.bf16.mxu0 0
      %5098 = vmatmul.mubr.bf16.gmra.mrb[0].mxu0 %v4885
      %v5099 = vpop.f32.mrb[0].mxu0
      %v5100 = vadd.f32 0.0, %v5099
      %v5101 = vpop.f32.mrb[0].mxu0
      %v5102 = vpop.f32.mrb[0].mxu0
      %v5103 = vadd.f32 0.0, %v5102
      %v5104 = vpop.f32.mrb[0].mxu0
      %5105 = vmatprep.mubr.bf16.mxu0 0
      %5106 = vmatmul.mubr.bf16.gmra.mrb[0].mxu0 %v4888
      %v5107 = vpop.f32.mrb[0].mxu0
      %v5108 = vadd.f32 0.0, %v5107
      %v5109 = vpop.f32.mrb[0].mxu0
      %v5110 = vpop.f32.mrb[0].mxu0
      %v5111 = vadd.f32 0.0, %v5110
      %v5112 = vpop.f32.mrb[0].mxu0
      %5113 = vmatprep.mubr.bf16.mxu0 0
      %5114 = vmatmul.mubr.bf16.gmra.mrb[0].mxu0 %v4891
      %v5115 = vpop.f32.mrb[0].mxu0
      %v5116 = vadd.f32 0.0, %v5115
      %v5117 = vpop.f32.mrb[0].mxu0
      %v5118 = vpop.f32.mrb[0].mxu0
      %v5119 = vadd.f32 0.0, %v5118
      %v5120 = vpop.f32.mrb[0].mxu0
      %5121 = vmatprep.mubr.bf16.mxu0 0
      %5122 = vmatmul.mubr.bf16.gmra.mrb[0].mxu0 %v4894
      %v5123 = vpop.f32.mrb[0].mxu0
      %v5124 = vadd.f32 0.0, %v5123
      %v5125 = vpop.f32.mrb[0].mxu0
      %v5126 = vpop.f32.mrb[0].mxu0
      %v5127 = vadd.f32 0.0, %v5126
      %v5128 = vpop.f32.mrb[0].mxu0
      %5129 = vmatprep.mubr.bf16.mxu0 0
      %5130 = vmatmul.mubr.bf16.gmra.mrb[0].mxu0 %v4897
      %v5131 = vpop.f32.mrb[0].mxu0
      %v5132 = vadd.f32 0.0, %v5131
      %v5133 = vpop.f32.mrb[0].mxu0
      %v5134 = vpop.f32.mrb[0].mxu0
      %v5135 = vadd.f32 0.0, %v5134
      %v5136 = vpop.f32.mrb[0].mxu0
      %5137 = vmatprep.mubr.bf16.mxu0 0
      %5138 = vmatmul.mubr.bf16.gmra.mrb[0].mxu0 %v4900
      %v5139 = vpop.f32.mrb[0].mxu0
      %v5140 = vadd.f32 0.0, %v5139
      %v5141 = vpop.f32.mrb[0].mxu0
      %v5142 = vpop.f32.mrb[0].mxu0
      %v5143 = vadd.f32 0.0, %v5142
      %v5144 = vpop.f32.mrb[0].mxu0
      %5145 = vmatprep.mubr.bf16.mxu0 0
      %5146 = vmatmul.mubr.bf16.gmra.mrb[0].mxu0 %v4903
      %v5147 = vpop.f32.mrb[0].mxu0
      %v5148 = vadd.f32 0.0, %v5147
      %v5149 = vpop.f32.mrb[0].mxu0
      %v5150 = vpop.f32.mrb[0].mxu0
      %v5151 = vadd.f32 0.0, %v5150
      %v5152 = vpop.f32.mrb[0].mxu0
      %5153 = vmatprep.mubr.bf16.mxu0 0
      %5154 = vmatmul.mubr.bf16.gmra.mrb[0].mxu0 %v4906
      %v5155 = vpop.f32.mrb[0].mxu0
      %v5156 = vadd.f32 0.0, %v5155
      %v5157 = vpop.f32.mrb[0].mxu0
      %v5158 = vpop.f32.mrb[0].mxu0
      %v5159 = vadd.f32 0.0, %v5158
      %v5160 = vpop.f32.mrb[0].mxu0
      %5161 = vmatprep.mubr.bf16.mxu0 0
      %5162 = vmatmul.mubr.bf16.gmra.mrb[0].mxu0 %v4909
      %v5163 = vpop.f32.mrb[0].mxu0
      %v5164 = vadd.f32 0.0, %v5163
      %v5165 = vpop.f32.mrb[0].mxu0
      %v5166 = vpop.f32.mrb[0].mxu0
      %v5167 = vadd.f32 0.0, %v5166
      %v5168 = vpop.f32.mrb[0].mxu0
      %5169 = vmatprep.mubr.bf16.mxu0 0
      %5170 = vmatmul.mubr.bf16.gmra.mrb[0].mxu0 %v4912
      %v5171 = vpop.f32.mrb[0].mxu0
      %v5172 = vadd.f32 0.0, %v5171
      %v5173 = vpop.f32.mrb[0].mxu0
      %v5174 = vpop.f32.mrb[0].mxu0
      %v5175 = vadd.f32 0.0, %v5174
      %v5176 = vpop.f32.mrb[0].mxu0
      %5177 = vmatprep.mubr.bf16.mxu0 0
      %5178 = vmatmul.mubr.bf16.gmra.mrb[0].mxu0 %v4915
      %v5179 = vpop.f32.mrb[0].mxu0
      %v5180 = vadd.f32 0.0, %v5179
      %v5181 = vpop.f32.mrb[0].mxu0
      %v5182 = vpop.f32.mrb[0].mxu0
      %v5183 = vadd.f32 0.0, %v5182
      %v5184 = vpop.f32.mrb[0].mxu0
      %5185 = vmatprep.mubr.bf16.mxu0 0
      %5186 = vmatmul.mubr.bf16.gmra.mrb[0].mxu0 %v4918
      %v5187 = vpop.f32.mrb[0].mxu0
      %v5188 = vadd.f32 0.0, %v5187
      %v5189 = vpop.f32.mrb[0].mxu0
      %v5190 = vpop.f32.mrb[0].mxu0
      %v5191 = vadd.f32 0.0, %v5190
      %v5192 = vpop.f32.mrb[0].mxu0
      %5193 = vmatprep.mubr.bf16.mxu0 0
      %5194 = vmatmul.mubr.bf16.gmra.mrb[0].mxu0 %v4921
      %v5195 = vpop.f32.mrb[0].mxu0
      %v5196 = vadd.f32 0.0, %v5195
      %v5197 = vpop.f32.mrb[0].mxu0
      %v5198 = vpop.f32.mrb[0].mxu0
      %v5199 = vadd.f32 0.0, %v5198
      %v5200 = vpop.f32.mrb[0].mxu0
      %5201 = vmatprep.mubr.bf16.mxu0 0
      %5202 = vmatmul.mubr.bf16.gmra.mrb[0].mxu0 %v4924
      %v5203 = vpop.f32.mrb[0].mxu0
      %v5204 = vadd.f32 0.0, %v5203
      %v5205 = vpop.f32.mrb[0].mxu0
      %v5206 = vpop.f32.mrb[0].mxu0
      %v5207 = vadd.f32 0.0, %v5206
      %v5208 = vpop.f32.mrb[0].mxu0
      %5209 = vmatprep.mubr.bf16.mxu0 0
      %5210 = vmatmul.mubr.bf16.gmra.mrb[0].mxu0 %v4927
      %v5211 = vpop.f32.mrb[0].mxu0
      %v5212 = vadd.f32 0.0, %v5211
      %v5213 = vpop.f32.mrb[0].mxu0
      %v5214 = vpop.f32.mrb[0].mxu0
      %v5215 = vadd.f32 0.0, %v5214
      %v5216 = vpop.f32.mrb[0].mxu0
      %5217 = vdwg.mxu0
      %v5282 = vunpack.c.l.b16 %v4587
      %v5283 = vunpack.c.l.b16 %v4588
      %v5284 = vunpack.c.l.b16 %v4589
      %v5285 = vunpack.c.l.b16 %v4590
      %v5286 = vunpack.c.l.b16 %v4591
      %v5287 = vunpack.c.l.b16 %v4592
      %v5288 = vunpack.c.l.b16 %v4593
      %v5289 = vunpack.c.l.b16 %v4594
      %v5290 = vunpack.c.l.b16 %v4595
      %v5291 = vunpack.c.l.b16 %v4596
      %v5292 = vunpack.c.l.b16 %v4597
      %v5293 = vunpack.c.l.b16 %v4598
      %v5294 = vunpack.c.l.b16 %v4599
      %v5295 = vunpack.c.l.b16 %v4600
      %v5296 = vunpack.c.l.b16 %v4601
      %v5297 = vunpack.c.l.b16 %v4602
      %v5298 = vunpack.c.l.b16 %v4603
      %v5299 = vunpack.c.l.b16 %v4604
      %v5300 = vunpack.c.l.b16 %v4605
      %v5301 = vunpack.c.l.b16 %v4606
      %v5302 = vunpack.c.l.b16 %v4607
      %v5303 = vunpack.c.l.b16 %v4608
      %v5304 = vunpack.c.l.b16 %v4609
      %v5305 = vunpack.c.l.b16 %v4610
      %v5306 = vunpack.c.l.b16 %v4611
      %v5307 = vunpack.c.l.b16 %v4612
      %v5308 = vunpack.c.l.b16 %v4613
      %v5309 = vunpack.c.l.b16 %v4614
      %v5310 = vunpack.c.l.b16 %v4615
      %v5311 = vunpack.c.l.b16 %v4616
      %v5312 = vunpack.c.l.b16 %v4617
      %v5313 = vunpack.c.l.b16 %v4618
      %v5314 = vunpack.c.l.b16 %v4619
      %v5315 = vunpack.c.l.b16 %v4620
      %v5316 = vunpack.c.l.b16 %v4621
      %v5317 = vunpack.c.l.b16 %v4622
      %v5318 = vunpack.c.l.b16 %v4623
      %v5319 = vunpack.c.l.b16 %v4624
      %v5320 = vunpack.c.l.b16 %v4625
      %v5321 = vunpack.c.l.b16 %v4626
      %v5322 = vunpack.c.l.b16 %v4627
      %v5323 = vunpack.c.l.b16 %v4628
      %v5324 = vunpack.c.l.b16 %v4629
      %v5325 = vunpack.c.l.b16 %v4630
      %v5326 = vunpack.c.l.b16 %v4631
      %v5327 = vunpack.c.l.b16 %v4632
      %v5328 = vunpack.c.l.b16 %v4633
      %v5329 = vunpack.c.l.b16 %v4634
      %v5330 = vunpack.c.l.b16 %v4635
      %v5331 = vunpack.c.l.b16 %v4636
      %v5332 = vunpack.c.l.b16 %v4637
      %v5333 = vunpack.c.l.b16 %v4638
      %v5334 = vunpack.c.l.b16 %v4639
      %v5335 = vunpack.c.l.b16 %v4640
      %v5336 = vunpack.c.l.b16 %v4641
      %v5337 = vunpack.c.l.b16 %v4642
      %v5338 = vunpack.c.l.b16 %v4643
      %v5339 = vunpack.c.l.b16 %v4644
      %v5340 = vunpack.c.l.b16 %v4645
      %v5341 = vunpack.c.l.b16 %v4646
      %v5342 = vunpack.c.l.b16 %v4647
      %v5343 = vunpack.c.l.b16 %v4648
      %v5344 = vunpack.c.l.b16 %v4649
      %v5345 = vunpack.c.l.b16 %v4650
      %v5346 = vpack.c.b16 %v5283, %v5282
      %v5347 = vpack.c.b16 %v5285, %v5284
      %v5348 = vpack.c.b16 %v5287, %v5286
      %v5349 = vpack.c.b16 %v5289, %v5288
      %v5350 = vpack.c.b16 %v5291, %v5290
      %v5351 = vpack.c.b16 %v5293, %v5292
      %v5352 = vpack.c.b16 %v5295, %v5294
      %v5353 = vpack.c.b16 %v5297, %v5296
      %v5354 = vpack.c.b16 %v5299, %v5298
      %v5355 = vpack.c.b16 %v5301, %v5300
      %v5356 = vpack.c.b16 %v5303, %v5302
      %v5357 = vpack.c.b16 %v5305, %v5304
      %v5358 = vpack.c.b16 %v5307, %v5306
      %v5359 = vpack.c.b16 %v5309, %v5308
      %v5360 = vpack.c.b16 %v5311, %v5310
      %v5361 = vpack.c.b16 %v5313, %v5312
      %v5362 = vpack.c.b16 %v5315, %v5314
      %v5363 = vpack.c.b16 %v5317, %v5316
      %v5364 = vpack.c.b16 %v5319, %v5318
      %v5365 = vpack.c.b16 %v5321, %v5320
      %v5366 = vpack.c.b16 %v5323, %v5322
      %v5367 = vpack.c.b16 %v5325, %v5324
      %v5368 = vpack.c.b16 %v5327, %v5326
      %v5369 = vpack.c.b16 %v5329, %v5328
      %v5370 = vpack.c.b16 %v5331, %v5330
      %v5371 = vpack.c.b16 %v5333, %v5332
      %v5372 = vpack.c.b16 %v5335, %v5334
      %v5373 = vpack.c.b16 %v5337, %v5336
      %v5374 = vpack.c.b16 %v5339, %v5338
      %v5375 = vpack.c.b16 %v5341, %v5340
      %v5376 = vpack.c.b16 %v5343, %v5342
      %v5377 = vpack.c.b16 %v5345, %v5344
      %v5382 = vunpack.c.l.b16 %v4651
      %v5383 = vunpack.c.l.b16 %v4652
      %v5384 = vunpack.c.l.b16 %v4653
      %v5385 = vunpack.c.l.b16 %v4654
      %v5386 = vpack.c.b16 %v5383, %v5382
      %v5387 = vpack.c.b16 %v5385, %v5384
      %v5391 = vsel %vm4832, %v5346, 0
      %v5394 = vsel %vm4832, %v5347, 0
      %v5397 = vsel %vm4832, %v5348, 0
      %v5400 = vsel %vm4832, %v5349, 0
      %v5403 = vsel %vm4832, %v5350, 0
      %v5406 = vsel %vm4832, %v5351, 0
      %v5409 = vsel %vm4832, %v5352, 0
      %v5412 = vsel %vm4832, %v5353, 0
      %v5415 = vsel %vm4832, %v5354, 0
      %v5418 = vsel %vm4832, %v5355, 0
      %v5421 = vsel %vm4832, %v5356, 0
      %v5424 = vsel %vm4832, %v5357, 0
      %v5427 = vsel %vm4832, %v5358, 0
      %v5430 = vsel %vm4832, %v5359, 0
      %v5433 = vsel %vm4832, %v5360, 0
      %v5436 = vsel %vm4832, %v5361, 0
      %v5439 = vsel %vm4832, %v5362, 0
      %v5442 = vsel %vm4832, %v5363, 0
      %v5445 = vsel %vm4832, %v5364, 0
      %v5448 = vsel %vm4832, %v5365, 0
      %v5451 = vsel %vm4832, %v5366, 0
      %v5454 = vsel %vm4832, %v5367, 0
      %v5457 = vsel %vm4832, %v5368, 0
      %v5460 = vsel %vm4832, %v5369, 0
      %v5463 = vsel %vm4832, %v5370, 0
      %v5466 = vsel %vm4832, %v5371, 0
      %v5469 = vsel %vm4832, %v5372, 0
      %v5472 = vsel %vm4832, %v5373, 0
      %v5475 = vsel %vm4832, %v5374, 0
      %v5478 = vsel %vm4832, %v5375, 0
      %v5481 = vsel %vm4832, %v5376, 0
      %v5484 = vsel %vm4832, %v5377, 0
      %5486 = vmatprep.subr.bf16.mxu0 0
      %5487 = vmatpush1.bf16.msra.mxu0 %v5386
      %5488 = vmatprep.subr.bf16.mxu0 0
      %5489 = vmatpush1.bf16.msra.mxu0 %v5387
      %5490 = vmatprep.subr.bf16.mxu0 0
      %5491 = vmatpush1.bf16.msra.mxu0 0
      %5492 = vmatprep.subr.bf16.mxu0 0
      %5493 = vmatpush1.bf16.msra.mxu0 0
      %5494 = vmatprep.subr.bf16.mxu0 0
      %5495 = vmatpush1.bf16.msra.mxu0 0
      %5496 = vmatprep.subr.bf16.mxu0 0
      %5497 = vmatpush1.bf16.msra.mxu0 0
      %5498 = vmatprep.subr.bf16.mxu0 0
      %5499 = vmatpush1.bf16.msra.mxu0 0
      %5500 = vmatprep.subr.bf16.mxu0 0
      %5501 = vmatpush1.bf16.msra.mxu0 0
      %5502 = vmatprep.subr.bf16.mxu0 0
      %5503 = vmatpush1.bf16.msra.mxu0 0
      %5504 = vmatprep.subr.bf16.mxu0 0
      %5505 = vmatpush1.bf16.msra.mxu0 0
      %5506 = vmatprep.subr.bf16.mxu0 0
      %5507 = vmatpush1.bf16.msra.mxu0 0
      %5508 = vmatprep.subr.bf16.mxu0 0
      %5509 = vmatpush1.bf16.msra.mxu0 0
      %5510 = vmatprep.subr.bf16.mxu0 0
      %5511 = vmatpush1.bf16.msra.mxu0 0
      %5512 = vmatprep.subr.bf16.mxu0 0
      %5513 = vmatpush1.bf16.msra.mxu0 0
      %5514 = vmatprep.subr.bf16.mxu0 0
      %5515 = vmatpush1.bf16.msra.mxu0 0
      %5516 = vmatprep.subr.bf16.mxu0 0
      %5517 = vmatpush1.bf16.msra.mxu0 0
      %5518 = vmatprep.mubr.bf16.mxu0 0
      %5519 = vmatmul.mubr.bf16.gmra.mrb[0].mxu0 %v5391
      %v5520 = vpop.f32.mrb[0].mxu0
      %v5521 = vadd.f32 %v4964, %v5520
      %v5522 = vpop.f32.mrb[0].mxu0
      %v5523 = vpop.f32.mrb[0].mxu0
      %v5524 = vadd.f32 %v4967, %v5523
      %v5525 = vpop.f32.mrb[0].mxu0
      %5526 = vmatprep.mubr.bf16.mxu0 0
      %5527 = vmatmul.mubr.bf16.gmra.mrb[0].mxu0 %v5394
      %v5528 = vpop.f32.mrb[0].mxu0
      %v5529 = vadd.f32 %v4972, %v5528
      %v5530 = vpop.f32.mrb[0].mxu0
      %v5531 = vpop.f32.mrb[0].mxu0
      %v5532 = vadd.f32 %v4975, %v5531
      %v5533 = vpop.f32.mrb[0].mxu0
      %5534 = vmatprep.mubr.bf16.mxu0 0
      %5535 = vmatmul.mubr.bf16.gmra.mrb[0].mxu0 %v5397
      %v5536 = vpop.f32.mrb[0].mxu0
      %v5537 = vadd.f32 %v4980, %v5536
      %v5538 = vpop.f32.mrb[0].mxu0
      %v5539 = vpop.f32.mrb[0].mxu0
      %v5540 = vadd.f32 %v4983, %v5539
      %v5541 = vpop.f32.mrb[0].mxu0
      %5542 = vmatprep.mubr.bf16.mxu0 0
      %5543 = vmatmul.mubr.bf16.gmra.mrb[0].mxu0 %v5400
      %v5544 = vpop.f32.mrb[0].mxu0
      %v5545 = vadd.f32 %v4988, %v5544
      %v5546 = vpop.f32.mrb[0].mxu0
      %v5547 = vpop.f32.mrb[0].mxu0
      %v5548 = vadd.f32 %v4991, %v5547
      %v5549 = vpop.f32.mrb[0].mxu0
      %5550 = vmatprep.mubr.bf16.mxu0 0
      %5551 = vmatmul.mubr.bf16.gmra.mrb[0].mxu0 %v5403
      %v5552 = vpop.f32.mrb[0].mxu0
      %v5553 = vadd.f32 %v4996, %v5552
      %v5554 = vpop.f32.mrb[0].mxu0
      %v5555 = vpop.f32.mrb[0].mxu0
      %v5556 = vadd.f32 %v4999, %v5555
      %v5557 = vpop.f32.mrb[0].mxu0
      %5558 = vmatprep.mubr.bf16.mxu0 0
      %5559 = vmatmul.mubr.bf16.gmra.mrb[0].mxu0 %v5406
      %v5560 = vpop.f32.mrb[0].mxu0
      %v5561 = vadd.f32 %v5004, %v5560
      %v5562 = vpop.f32.mrb[0].mxu0
      %v5563 = vpop.f32.mrb[0].mxu0
      %v5564 = vadd.f32 %v5007, %v5563
      %v5565 = vpop.f32.mrb[0].mxu0
      %5566 = vmatprep.mubr.bf16.mxu0 0
      %5567 = vmatmul.mubr.bf16.gmra.mrb[0].mxu0 %v5409
      %v5568 = vpop.f32.mrb[0].mxu0
      %v5569 = vadd.f32 %v5012, %v5568
      %v5570 = vpop.f32.mrb[0].mxu0
      %v5571 = vpop.f32.mrb[0].mxu0
      %v5572 = vadd.f32 %v5015, %v5571
      %v5573 = vpop.f32.mrb[0].mxu0
      %5574 = vmatprep.mubr.bf16.mxu0 0
      %5575 = vmatmul.mubr.bf16.gmra.mrb[0].mxu0 %v5412
      %v5576 = vpop.f32.mrb[0].mxu0
      %v5577 = vadd.f32 %v5020, %v5576
      %v5578 = vpop.f32.mrb[0].mxu0
      %v5579 = vpop.f32.mrb[0].mxu0
      %v5580 = vadd.f32 %v5023, %v5579
      %v5581 = vpop.f32.mrb[0].mxu0
      %5582 = vmatprep.mubr.bf16.mxu0 0
      %5583 = vmatmul.mubr.bf16.gmra.mrb[0].mxu0 %v5415
      %v5584 = vpop.f32.mrb[0].mxu0
      %v5585 = vadd.f32 %v5028, %v5584
      %v5586 = vpop.f32.mrb[0].mxu0
      %v5587 = vpop.f32.mrb[0].mxu0
      %v5588 = vadd.f32 %v5031, %v5587
      %v5589 = vpop.f32.mrb[0].mxu0
      %5590 = vmatprep.mubr.bf16.mxu0 0
      %5591 = vmatmul.mubr.bf16.gmra.mrb[0].mxu0 %v5418
      %v5592 = vpop.f32.mrb[0].mxu0
      %v5593 = vadd.f32 %v5036, %v5592
      %v5594 = vpop.f32.mrb[0].mxu0
      %v5595 = vpop.f32.mrb[0].mxu0
      %v5596 = vadd.f32 %v5039, %v5595
      %v5597 = vpop.f32.mrb[0].mxu0
      %5598 = vmatprep.mubr.bf16.mxu0 0
      %5599 = vmatmul.mubr.bf16.gmra.mrb[0].mxu0 %v5421
      %v5600 = vpop.f32.mrb[0].mxu0
      %v5601 = vadd.f32 %v5044, %v5600
      %v5602 = vpop.f32.mrb[0].mxu0
      %v5603 = vpop.f32.mrb[0].mxu0
      %v5604 = vadd.f32 %v5047, %v5603
      %v5605 = vpop.f32.mrb[0].mxu0
      %5606 = vmatprep.mubr.bf16.mxu0 0
      %5607 = vmatmul.mubr.bf16.gmra.mrb[0].mxu0 %v5424
      %v5608 = vpop.f32.mrb[0].mxu0
      %v5609 = vadd.f32 %v5052, %v5608
      %v5610 = vpop.f32.mrb[0].mxu0
      %v5611 = vpop.f32.mrb[0].mxu0
      %v5612 = vadd.f32 %v5055, %v5611
      %v5613 = vpop.f32.mrb[0].mxu0
      %5614 = vmatprep.mubr.bf16.mxu0 0
      %5615 = vmatmul.mubr.bf16.gmra.mrb[0].mxu0 %v5427
      %v5616 = vpop.f32.mrb[0].mxu0
      %v5617 = vadd.f32 %v5060, %v5616
      %v5618 = vpop.f32.mrb[0].mxu0
      %v5619 = vpop.f32.mrb[0].mxu0
      %v5620 = vadd.f32 %v5063, %v5619
      %v5621 = vpop.f32.mrb[0].mxu0
      %5622 = vmatprep.mubr.bf16.mxu0 0
      %5623 = vmatmul.mubr.bf16.gmra.mrb[0].mxu0 %v5430
      %v5624 = vpop.f32.mrb[0].mxu0
      %v5625 = vadd.f32 %v5068, %v5624
      %v5626 = vpop.f32.mrb[0].mxu0
      %v5627 = vpop.f32.mrb[0].mxu0
      %v5628 = vadd.f32 %v5071, %v5627
      %v5629 = vpop.f32.mrb[0].mxu0
      %5630 = vmatprep.mubr.bf16.mxu0 0
      %5631 = vmatmul.mubr.bf16.gmra.mrb[0].mxu0 %v5433
      %v5632 = vpop.f32.mrb[0].mxu0
      %v5633 = vadd.f32 %v5076, %v5632
      %v5634 = vpop.f32.mrb[0].mxu0
      %v5635 = vpop.f32.mrb[0].mxu0
      %v5636 = vadd.f32 %v5079, %v5635
      %v5637 = vpop.f32.mrb[0].mxu0
      %5638 = vmatprep.mubr.bf16.mxu0 0
      %5639 = vmatmul.mubr.bf16.gmra.mrb[0].mxu0 %v5436
      %v5640 = vpop.f32.mrb[0].mxu0
      %v5641 = vadd.f32 %v5084, %v5640
      %v5642 = vpop.f32.mrb[0].mxu0
      %v5643 = vpop.f32.mrb[0].mxu0
      %v5644 = vadd.f32 %v5087, %v5643
      %v5645 = vpop.f32.mrb[0].mxu0
      %5646 = vmatprep.mubr.bf16.mxu0 0
      %5647 = vmatmul.mubr.bf16.gmra.mrb[0].mxu0 %v5439
      %v5648 = vpop.f32.mrb[0].mxu0
      %v5649 = vadd.f32 %v5092, %v5648
      %v5650 = vpop.f32.mrb[0].mxu0
      %v5651 = vpop.f32.mrb[0].mxu0
      %v5652 = vadd.f32 %v5095, %v5651
      %v5653 = vpop.f32.mrb[0].mxu0
      %5654 = vmatprep.mubr.bf16.mxu0 0
      %5655 = vmatmul.mubr.bf16.gmra.mrb[0].mxu0 %v5442
      %v5656 = vpop.f32.mrb[0].mxu0
      %v5657 = vadd.f32 %v5100, %v5656
      %v5658 = vpop.f32.mrb[0].mxu0
      %v5659 = vpop.f32.mrb[0].mxu0
      %v5660 = vadd.f32 %v5103, %v5659
      %v5661 = vpop.f32.mrb[0].mxu0
      %5662 = vmatprep.mubr.bf16.mxu0 0
      %5663 = vmatmul.mubr.bf16.gmra.mrb[0].mxu0 %v5445
      %v5664 = vpop.f32.mrb[0].mxu0
      %v5665 = vadd.f32 %v5108, %v5664
      %v5666 = vpop.f32.mrb[0].mxu0
      %v5667 = vpop.f32.mrb[0].mxu0
      %v5668 = vadd.f32 %v5111, %v5667
      %v5669 = vpop.f32.mrb[0].mxu0
      %5670 = vmatprep.mubr.bf16.mxu0 0
      %5671 = vmatmul.mubr.bf16.gmra.mrb[0].mxu0 %v5448
      %v5672 = vpop.f32.mrb[0].mxu0
      %v5673 = vadd.f32 %v5116, %v5672
      %v5674 = vpop.f32.mrb[0].mxu0
      %v5675 = vpop.f32.mrb[0].mxu0
      %v5676 = vadd.f32 %v5119, %v5675
      %v5677 = vpop.f32.mrb[0].mxu0
      %5678 = vmatprep.mubr.bf16.mxu0 0
      %5679 = vmatmul.mubr.bf16.gmra.mrb[0].mxu0 %v5451
      %v5680 = vpop.f32.mrb[0].mxu0
      %v5681 = vadd.f32 %v5124, %v5680
      %v5682 = vpop.f32.mrb[0].mxu0
      %v5683 = vpop.f32.mrb[0].mxu0
      %v5684 = vadd.f32 %v5127, %v5683
      %v5685 = vpop.f32.mrb[0].mxu0
      %5686 = vmatprep.mubr.bf16.mxu0 0
      %5687 = vmatmul.mubr.bf16.gmra.mrb[0].mxu0 %v5454
      %v5688 = vpop.f32.mrb[0].mxu0
      %v5689 = vadd.f32 %v5132, %v5688
      %v5690 = vpop.f32.mrb[0].mxu0
      %v5691 = vpop.f32.mrb[0].mxu0
      %v5692 = vadd.f32 %v5135, %v5691
      %v5693 = vpop.f32.mrb[0].mxu0
      %5694 = vmatprep.mubr.bf16.mxu0 0
      %5695 = vmatmul.mubr.bf16.gmra.mrb[0].mxu0 %v5457
      %v5696 = vpop.f32.mrb[0].mxu0
      %v5697 = vadd.f32 %v5140, %v5696
      %v5698 = vpop.f32.mrb[0].mxu0
      %v5699 = vpop.f32.mrb[0].mxu0
      %v5700 = vadd.f32 %v5143, %v5699
      %v5701 = vpop.f32.mrb[0].mxu0
      %5702 = vmatprep.mubr.bf16.mxu0 0
      %5703 = vmatmul.mubr.bf16.gmra.mrb[0].mxu0 %v5460
      %v5704 = vpop.f32.mrb[0].mxu0
      %v5705 = vadd.f32 %v5148, %v5704
      %v5706 = vpop.f32.mrb[0].mxu0
      %v5707 = vpop.f32.mrb[0].mxu0
      %v5708 = vadd.f32 %v5151, %v5707
      %v5709 = vpop.f32.mrb[0].mxu0
      %5710 = vmatprep.mubr.bf16.mxu0 0
      %5711 = vmatmul.mubr.bf16.gmra.mrb[0].mxu0 %v5463
      %v5712 = vpop.f32.mrb[0].mxu0
      %v5713 = vadd.f32 %v5156, %v5712
      %v5714 = vpop.f32.mrb[0].mxu0
      %v5715 = vpop.f32.mrb[0].mxu0
      %v5716 = vadd.f32 %v5159, %v5715
      %v5717 = vpop.f32.mrb[0].mxu0
      %5718 = vmatprep.mubr.bf16.mxu0 0
      %5719 = vmatmul.mubr.bf16.gmra.mrb[0].mxu0 %v5466
      %v5720 = vpop.f32.mrb[0].mxu0
      %v5721 = vadd.f32 %v5164, %v5720
      %v5722 = vpop.f32.mrb[0].mxu0
      %v5723 = vpop.f32.mrb[0].mxu0
      %v5724 = vadd.f32 %v5167, %v5723
      %v5725 = vpop.f32.mrb[0].mxu0
      %5726 = vmatprep.mubr.bf16.mxu0 0
      %5727 = vmatmul.mubr.bf16.gmra.mrb[0].mxu0 %v5469
      %v5728 = vpop.f32.mrb[0].mxu0
      %v5729 = vadd.f32 %v5172, %v5728
      %v5730 = vpop.f32.mrb[0].mxu0
      %v5731 = vpop.f32.mrb[0].mxu0
      %v5732 = vadd.f32 %v5175, %v5731
      %v5733 = vpop.f32.mrb[0].mxu0
      %5734 = vmatprep.mubr.bf16.mxu0 0
      %5735 = vmatmul.mubr.bf16.gmra.mrb[0].mxu0 %v5472
      %v5736 = vpop.f32.mrb[0].mxu0
      %v5737 = vadd.f32 %v5180, %v5736
      %v5738 = vpop.f32.mrb[0].mxu0
      %v5739 = vpop.f32.mrb[0].mxu0
      %v5740 = vadd.f32 %v5183, %v5739
      %v5741 = vpop.f32.mrb[0].mxu0
      %5742 = vmatprep.mubr.bf16.mxu0 0
      %5743 = vmatmul.mubr.bf16.gmra.mrb[0].mxu0 %v5475
      %v5744 = vpop.f32.mrb[0].mxu0
      %v5745 = vadd.f32 %v5188, %v5744
      %v5746 = vpop.f32.mrb[0].mxu0
      %v5747 = vpop.f32.mrb[0].mxu0
      %v5748 = vadd.f32 %v5191, %v5747
      %v5749 = vpop.f32.mrb[0].mxu0
      %5750 = vmatprep.mubr.bf16.mxu0 0
      %5751 = vmatmul.mubr.bf16.gmra.mrb[0].mxu0 %v5478
      %v5752 = vpop.f32.mrb[0].mxu0
      %v5753 = vadd.f32 %v5196, %v5752
      %v5754 = vpop.f32.mrb[0].mxu0
      %v5755 = vpop.f32.mrb[0].mxu0
      %v5756 = vadd.f32 %v5199, %v5755
      %v5757 = vpop.f32.mrb[0].mxu0
      %5758 = vmatprep.mubr.bf16.mxu0 0
      %5759 = vmatmul.mubr.bf16.gmra.mrb[0].mxu0 %v5481
      %v5760 = vpop.f32.mrb[0].mxu0
      %v5761 = vadd.f32 %v5204, %v5760
      %v5762 = vpop.f32.mrb[0].mxu0
      %v5763 = vpop.f32.mrb[0].mxu0
      %v5764 = vadd.f32 %v5207, %v5763
      %v5765 = vpop.f32.mrb[0].mxu0
      %5766 = vmatprep.mubr.bf16.mxu0 0
      %5767 = vmatmul.mubr.bf16.gmra.mrb[0].mxu0 %v5484
      %v5768 = vpop.f32.mrb[0].mxu0
      %v5769 = vadd.f32 %v5212, %v5768
      %v5770 = vpop.f32.mrb[0].mxu0
      %v5771 = vpop.f32.mrb[0].mxu0
      %v5772 = vadd.f32 %v5215, %v5771
      %v5773 = vpop.f32.mrb[0].mxu0
      %5774 = vdwg.mxu0
      %v5775 = vrot.slane %v4079, 1
      %v5776 = vor.u32 %v4076, %v5775
      %v5777 = vrot.slane %v4086, 1
      %v5778 = vor.u32 %v4083, %v5777
      %v5779 = vrot.slane %v4093, 1
      %v5780 = vor.u32 %v4090, %v5779
      %v5781 = vrot.slane %v4100, 1
      %v5782 = vor.u32 %v4097, %v5781
      %v5783 = vrot.slane %v4107, 1
      %v5784 = vor.u32 %v4104, %v5783
      %v5785 = vrot.slane %v4114, 1
      %v5786 = vor.u32 %v4111, %v5785
      %v5787 = vrot.slane %v4121, 1
      %v5788 = vor.u32 %v4118, %v5787
      %v5789 = vrot.slane %v4128, 1
      %v5790 = vor.u32 %v4125, %v5789
      %v5791 = vrot.slane %v4135, 1
      %v5792 = vor.u32 %v4132, %v5791
      %v5793 = vrot.slane %v4142, 1
      %v5794 = vor.u32 %v4139, %v5793
      %v5795 = vrot.slane %v4149, 1
      %v5796 = vor.u32 %v4146, %v5795
      %v5797 = vrot.slane %v4156, 1
      %v5798 = vor.u32 %v4153, %v5797
      %v5799 = vrot.slane %v4163, 1
      %v5800 = vor.u32 %v4160, %v5799
      %v5801 = vrot.slane %v4170, 1
      %v5802 = vor.u32 %v4167, %v5801
      %v5803 = vrot.slane %v4177, 1
      %v5804 = vor.u32 %v4174, %v5803
      %v5805 = vrot.slane %v4184, 1
      %v5806 = vor.u32 %v4181, %v5805
      %v5807 = vrot.slane %v4191, 1
      %v5808 = vor.u32 %v4188, %v5807
      %v5809 = vrot.slane %v4198, 1
      %v5810 = vor.u32 %v4195, %v5809
      %v5811 = vrot.slane %v4205, 1
      %v5812 = vor.u32 %v4202, %v5811
      %v5813 = vrot.slane %v4212, 1
      %v5814 = vor.u32 %v4209, %v5813
      %v5815 = vrot.slane %v4219, 1
      %v5816 = vor.u32 %v4216, %v5815
      %v5817 = vrot.slane %v4226, 1
      %v5818 = vor.u32 %v4223, %v5817
      %v5819 = vrot.slane %v4233, 1
      %v5820 = vor.u32 %v4230, %v5819
      %v5821 = vrot.slane %v4240, 1
      %v5822 = vor.u32 %v4237, %v5821
      %v5823 = vrot.slane %v4247, 1
      %v5824 = vor.u32 %v4244, %v5823
      %v5825 = vrot.slane %v4254, 1
      %v5826 = vor.u32 %v4251, %v5825
      %v5827 = vrot.slane %v4261, 1
      %v5828 = vor.u32 %v4258, %v5827
      %v5829 = vrot.slane %v4268, 1
      %v5830 = vor.u32 %v4265, %v5829
      %v5831 = vrot.slane %v4275, 1
      %v5832 = vor.u32 %v4272, %v5831
      %v5833 = vrot.slane %v4282, 1
      %v5834 = vor.u32 %v4279, %v5833
      %v5835 = vrot.slane %v4289, 1
      %v5836 = vor.u32 %v4286, %v5835
      %v5837 = vrot.slane %v4296, 1
      %v5838 = vor.u32 %v4293, %v5837
      %v5839 = vrot.slane %v4303, 1
      %v5840 = vor.u32 %v4300, %v5839
      %v5841 = vrot.slane %v4310, 1
      %v5842 = vor.u32 %v4307, %v5841
      %v5843 = vrot.slane %v4317, 1
      %v5844 = vor.u32 %v4314, %v5843
      %v5845 = vrot.slane %v4324, 1
      %v5846 = vor.u32 %v4321, %v5845
      %v5847 = vrot.slane %v4331, 1
      %v5848 = vor.u32 %v4328, %v5847
      %v5849 = vrot.slane %v4338, 1
      %v5850 = vor.u32 %v4335, %v5849
      %v5851 = vrot.slane %v4345, 1
      %v5852 = vor.u32 %v4342, %v5851
      %v5853 = vrot.slane %v4352, 1
      %v5854 = vor.u32 %v4349, %v5853
      %v5855 = vrot.slane %v4359, 1
      %v5856 = vor.u32 %v4356, %v5855
      %v5857 = vrot.slane %v4366, 1
      %v5858 = vor.u32 %v4363, %v5857
      %v5859 = vrot.slane %v4373, 1
      %v5860 = vor.u32 %v4370, %v5859
      %v5861 = vrot.slane %v4380, 1
      %v5862 = vor.u32 %v4377, %v5861
      %v5863 = vrot.slane %v4387, 1
      %v5864 = vor.u32 %v4384, %v5863
      %v5865 = vrot.slane %v4394, 1
      %v5866 = vor.u32 %v4391, %v5865
      %v5867 = vrot.slane %v4401, 1
      %v5868 = vor.u32 %v4398, %v5867
      %v5869 = vrot.slane %v4408, 1
      %v5870 = vor.u32 %v4405, %v5869
      %v5871 = vrot.slane %v4415, 1
      %v5872 = vor.u32 %v4412, %v5871
      %v5873 = vrot.slane %v4422, 1
      %v5874 = vor.u32 %v4419, %v5873
      %v5875 = vrot.slane %v4429, 1
      %v5876 = vor.u32 %v4426, %v5875
      %v5877 = vrot.slane %v4436, 1
      %v5878 = vor.u32 %v4433, %v5877
      %v5879 = vrot.slane %v4443, 1
      %v5880 = vor.u32 %v4440, %v5879
      %v5881 = vrot.slane %v4450, 1
      %v5882 = vor.u32 %v4447, %v5881
      %v5883 = vrot.slane %v4457, 1
      %v5884 = vor.u32 %v4454, %v5883
      %v5885 = vrot.slane %v4464, 1
      %v5886 = vor.u32 %v4461, %v5885
      %v5887 = vrot.slane %v4471, 1
      %v5888 = vor.u32 %v4468, %v5887
      %v5889 = vrot.slane %v4478, 1
      %v5890 = vor.u32 %v4475, %v5889
      %v5891 = vrot.slane %v4485, 1
      %v5892 = vor.u32 %v4482, %v5891
      %v5893 = vrot.slane %v4492, 1
      %v5894 = vor.u32 %v4489, %v5893
      %v5895 = vrot.slane %v4499, 1
      %v5896 = vor.u32 %v4496, %v5895
      %v5897 = vrot.slane %v4506, 1
      %v5898 = vor.u32 %v4503, %v5897
      %v5899 = vrot.slane %v4513, 1
      %v5900 = vor.u32 %v4510, %v5899
      %v5901 = vrot.slane %v4520, 1
      %v5902 = vor.u32 %v4517, %v5901
      %v5967 = vsel %vm3193, %v5776, 0
      %v5968 = vsel %vm3193, %v5778, 0
      %v5969 = vsel %vm3193, %v5780, 0
      %v5970 = vsel %vm3193, %v5782, 0
      %v5971 = vsel %vm3193, %v5784, 0
      %v5972 = vsel %vm3193, %v5786, 0
      %v5973 = vsel %vm3193, %v5788, 0
      %v5974 = vsel %vm3193, %v5790, 0
      %v5975 = vsel %vm3193, %v5792, 0
      %v5976 = vsel %vm3193, %v5794, 0
      %v5977 = vsel %vm3193, %v5796, 0
      %v5978 = vsel %vm3193, %v5798, 0
      %v5979 = vsel %vm3193, %v5800, 0
      %v5980 = vsel %vm3193, %v5802, 0
      %v5981 = vsel %vm3193, %v5804, 0
      %v5982 = vsel %vm3193, %v5806, 0
      %v5983 = vsel %vm3193, %v5808, 0
      %v5984 = vsel %vm3193, %v5810, 0
      %v5985 = vsel %vm3193, %v5812, 0
      %v5986 = vsel %vm3193, %v5814, 0
      %v5987 = vsel %vm3193, %v5816, 0
      %v5988 = vsel %vm3193, %v5818, 0
      %v5989 = vsel %vm3193, %v5820, 0
      %v5990 = vsel %vm3193, %v5822, 0
      %v5991 = vsel %vm3193, %v5824, 0
      %v5992 = vsel %vm3193, %v5826, 0
      %v5993 = vsel %vm3193, %v5828, 0
      %v5994 = vsel %vm3193, %v5830, 0
      %v5995 = vsel %vm3193, %v5832, 0
      %v5996 = vsel %vm3193, %v5834, 0
      %v5997 = vsel %vm3193, %v5836, 0
      %v5998 = vsel %vm3193, %v5838, 0
      %v5999 = vsel %vm3193, %v5840, 0
      %v6000 = vsel %vm3193, %v5842, 0
      %v6001 = vsel %vm3193, %v5844, 0
      %v6002 = vsel %vm3193, %v5846, 0
      %v6003 = vsel %vm3193, %v5848, 0
      %v6004 = vsel %vm3193, %v5850, 0
      %v6005 = vsel %vm3193, %v5852, 0
      %v6006 = vsel %vm3193, %v5854, 0
      %v6007 = vsel %vm3193, %v5856, 0
      %v6008 = vsel %vm3193, %v5858, 0
      %v6009 = vsel %vm3193, %v5860, 0
      %v6010 = vsel %vm3193, %v5862, 0
      %v6011 = vsel %vm3193, %v5864, 0
      %v6012 = vsel %vm3193, %v5866, 0
      %v6013 = vsel %vm3193, %v5868, 0
      %v6014 = vsel %vm3193, %v5870, 0
      %v6015 = vsel %vm3193, %v5872, 0
      %v6016 = vsel %vm3193, %v5874, 0
      %v6017 = vsel %vm3193, %v5876, 0
      %v6018 = vsel %vm3193, %v5878, 0
      %v6019 = vsel %vm3193, %v5880, 0
      %v6020 = vsel %vm3193, %v5882, 0
      %v6021 = vsel %vm3193, %v5884, 0
      %v6022 = vsel %vm3193, %v5886, 0
      %v6023 = vsel %vm3193, %v5888, 0
      %v6024 = vsel %vm3193, %v5890, 0
      %v6025 = vsel %vm3193, %v5892, 0
      %v6026 = vsel %vm3193, %v5894, 0
      %v6027 = vsel %vm3193, %v5896, 0
      %v6028 = vsel %vm3193, %v5898, 0
      %v6029 = vsel %vm3193, %v5900, 0
      %v6030 = vsel %vm3193, %v5902, 0
      %s6031 = scalar_lea.vmem %s4, 32
      %v6032 = vld [vmem:[%s6031] sm:$0xf]
      %v6033 = vld [vmem:[%s6031 + $0x4] sm:$0xf]
      %v6034 = vld [vmem:[%s6031 + $0x8] sm:$0xf]
      %v6035 = vld [vmem:[%s6031 + $0xc] sm:$0xf]
      %v6100 = vunpack.c.l.b16 %v5967
      %v6101 = vunpack.c.l.b16 %v5968
      %v6102 = vunpack.c.l.b16 %v5969
      %v6103 = vunpack.c.l.b16 %v5970
      %v6104 = vunpack.c.l.b16 %v5971
      %v6105 = vunpack.c.l.b16 %v5972
      %v6106 = vunpack.c.l.b16 %v5973
      %v6107 = vunpack.c.l.b16 %v5974
      %v6108 = vunpack.c.l.b16 %v5975
      %v6109 = vunpack.c.l.b16 %v5976
      %v6110 = vunpack.c.l.b16 %v5977
      %v6111 = vunpack.c.l.b16 %v5978
      %v6112 = vunpack.c.l.b16 %v5979
      %v6113 = vunpack.c.l.b16 %v5980
      %v6114 = vunpack.c.l.b16 %v5981
      %v6115 = vunpack.c.l.b16 %v5982
      %v6116 = vunpack.c.l.b16 %v5983
      %v6117 = vunpack.c.l.b16 %v5984
      %v6118 = vunpack.c.l.b16 %v5985
      %v6119 = vunpack.c.l.b16 %v5986
      %v6120 = vunpack.c.l.b16 %v5987
      %v6121 = vunpack.c.l.b16 %v5988
      %v6122 = vunpack.c.l.b16 %v5989
      %v6123 = vunpack.c.l.b16 %v5990
      %v6124 = vunpack.c.l.b16 %v5991
      %v6125 = vunpack.c.l.b16 %v5992
      %v6126 = vunpack.c.l.b16 %v5993
      %v6127 = vunpack.c.l.b16 %v5994
      %v6128 = vunpack.c.l.b16 %v5995
      %v6129 = vunpack.c.l.b16 %v5996
      %v6130 = vunpack.c.l.b16 %v5997
      %v6131 = vunpack.c.l.b16 %v5998
      %v6132 = vunpack.c.l.b16 %v5999
      %v6133 = vunpack.c.l.b16 %v6000
      %v6134 = vunpack.c.l.b16 %v6001
      %v6135 = vunpack.c.l.b16 %v6002
      %v6136 = vunpack.c.l.b16 %v6003
      %v6137 = vunpack.c.l.b16 %v6004
      %v6138 = vunpack.c.l.b16 %v6005
      %v6139 = vunpack.c.l.b16 %v6006
      %v6140 = vunpack.c.l.b16 %v6007
      %v6141 = vunpack.c.l.b16 %v6008
      %v6142 = vunpack.c.l.b16 %v6009
      %v6143 = vunpack.c.l.b16 %v6010
      %v6144 = vunpack.c.l.b16 %v6011
      %v6145 = vunpack.c.l.b16 %v6012
      %v6146 = vunpack.c.l.b16 %v6013
      %v6147 = vunpack.c.l.b16 %v6014
      %v6148 = vunpack.c.l.b16 %v6015
      %v6149 = vunpack.c.l.b16 %v6016
      %v6150 = vunpack.c.l.b16 %v6017
      %v6151 = vunpack.c.l.b16 %v6018
      %v6152 = vunpack.c.l.b16 %v6019
      %v6153 = vunpack.c.l.b16 %v6020
      %v6154 = vunpack.c.l.b16 %v6021
      %v6155 = vunpack.c.l.b16 %v6022
      %v6156 = vunpack.c.l.b16 %v6023
      %v6157 = vunpack.c.l.b16 %v6024
      %v6158 = vunpack.c.l.b16 %v6025
      %v6159 = vunpack.c.l.b16 %v6026
      %v6160 = vunpack.c.l.b16 %v6027
      %v6161 = vunpack.c.l.b16 %v6028
      %v6162 = vunpack.c.l.b16 %v6029
      %v6163 = vunpack.c.l.b16 %v6030
      %v6164 = vpack.c.b16 %v6101, %v6100
      %v6165 = vpack.c.b16 %v6103, %v6102
      %v6166 = vpack.c.b16 %v6105, %v6104
      %v6167 = vpack.c.b16 %v6107, %v6106
      %v6168 = vpack.c.b16 %v6109, %v6108
      %v6169 = vpack.c.b16 %v6111, %v6110
      %v6170 = vpack.c.b16 %v6113, %v6112
      %v6171 = vpack.c.b16 %v6115, %v6114
      %v6172 = vpack.c.b16 %v6117, %v6116
      %v6173 = vpack.c.b16 %v6119, %v6118
      %v6174 = vpack.c.b16 %v6121, %v6120
      %v6175 = vpack.c.b16 %v6123, %v6122
      %v6176 = vpack.c.b16 %v6125, %v6124
      %v6177 = vpack.c.b16 %v6127, %v6126
      %v6178 = vpack.c.b16 %v6129, %v6128
      %v6179 = vpack.c.b16 %v6131, %v6130
      %v6180 = vpack.c.b16 %v6133, %v6132
      %v6181 = vpack.c.b16 %v6135, %v6134
      %v6182 = vpack.c.b16 %v6137, %v6136
      %v6183 = vpack.c.b16 %v6139, %v6138
      %v6184 = vpack.c.b16 %v6141, %v6140
      %v6185 = vpack.c.b16 %v6143, %v6142
      %v6186 = vpack.c.b16 %v6145, %v6144
      %v6187 = vpack.c.b16 %v6147, %v6146
      %v6188 = vpack.c.b16 %v6149, %v6148
      %v6189 = vpack.c.b16 %v6151, %v6150
      %v6190 = vpack.c.b16 %v6153, %v6152
      %v6191 = vpack.c.b16 %v6155, %v6154
      %v6192 = vpack.c.b16 %v6157, %v6156
      %v6193 = vpack.c.b16 %v6159, %v6158
      %v6194 = vpack.c.b16 %v6161, %v6160
      %v6195 = vpack.c.b16 %v6163, %v6162
      %v6200 = vunpack.c.l.b16 %v6032
      %v6201 = vunpack.c.l.b16 %v6033
      %v6202 = vunpack.c.l.b16 %v6034
      %v6203 = vunpack.c.l.b16 %v6035
      %v6204 = vpack.c.b16 %v6201, %v6200
      %v6205 = vpack.c.b16 %v6203, %v6202
      %v6209 = vsel %vm4832, %v6164, 0
      %v6212 = vsel %vm4832, %v6165, 0
      %v6215 = vsel %vm4832, %v6166, 0
      %v6218 = vsel %vm4832, %v6167, 0
      %v6221 = vsel %vm4832, %v6168, 0
      %v6224 = vsel %vm4832, %v6169, 0
      %v6227 = vsel %vm4832, %v6170, 0
      %v6230 = vsel %vm4832, %v6171, 0
      %v6233 = vsel %vm4832, %v6172, 0
      %v6236 = vsel %vm4832, %v6173, 0
      %v6239 = vsel %vm4832, %v6174, 0
      %v6242 = vsel %vm4832, %v6175, 0
      %v6245 = vsel %vm4832, %v6176, 0
      %v6248 = vsel %vm4832, %v6177, 0
      %v6251 = vsel %vm4832, %v6178, 0
      %v6254 = vsel %vm4832, %v6179, 0
      %v6257 = vsel %vm4832, %v6180, 0
      %v6260 = vsel %vm4832, %v6181, 0
      %v6263 = vsel %vm4832, %v6182, 0
      %v6266 = vsel %vm4832, %v6183, 0
      %v6269 = vsel %vm4832, %v6184, 0
      %v6272 = vsel %vm4832, %v6185, 0
      %v6275 = vsel %vm4832, %v6186, 0
      %v6278 = vsel %vm4832, %v6187, 0
      %v6281 = vsel %vm4832, %v6188, 0
      %v6284 = vsel %vm4832, %v6189, 0
      %v6287 = vsel %vm4832, %v6190, 0
      %v6290 = vsel %vm4832, %v6191, 0
      %v6293 = vsel %vm4832, %v6192, 0
      %v6296 = vsel %vm4832, %v6193, 0
      %v6299 = vsel %vm4832, %v6194, 0
      %v6302 = vsel %vm4832, %v6195, 0
      %6304 = vmatprep.subr.bf16.mxu0 0
      %6305 = vmatpush1.bf16.msra.mxu0 %v6204
      %6306 = vmatprep.subr.bf16.mxu0 0
      %6307 = vmatpush1.bf16.msra.mxu0 %v6205
      %6308 = vmatprep.subr.bf16.mxu0 0
      %6309 = vmatpush1.bf16.msra.mxu0 0
      %6310 = vmatprep.subr.bf16.mxu0 0
      %6311 = vmatpush1.bf16.msra.mxu0 0
      %6312 = vmatprep.subr.bf16.mxu0 0
      %6313 = vmatpush1.bf16.msra.mxu0 0
      %6314 = vmatprep.subr.bf16.mxu0 0
      %6315 = vmatpush1.bf16.msra.mxu0 0
      %6316 = vmatprep.subr.bf16.mxu0 0
      %6317 = vmatpush1.bf16.msra.mxu0 0
      %6318 = vmatprep.subr.bf16.mxu0 0
      %6319 = vmatpush1.bf16.msra.mxu0 0
      %6320 = vmatprep.subr.bf16.mxu0 0
      %6321 = vmatpush1.bf16.msra.mxu0 0
      %6322 = vmatprep.subr.bf16.mxu0 0
      %6323 = vmatpush1.bf16.msra.mxu0 0
      %6324 = vmatprep.subr.bf16.mxu0 0
      %6325 = vmatpush1.bf16.msra.mxu0 0
      %6326 = vmatprep.subr.bf16.mxu0 0
      %6327 = vmatpush1.bf16.msra.mxu0 0
      %6328 = vmatprep.subr.bf16.mxu0 0
      %6329 = vmatpush1.bf16.msra.mxu0 0
      %6330 = vmatprep.subr.bf16.mxu0 0
      %6331 = vmatpush1.bf16.msra.mxu0 0
      %6332 = vmatprep.subr.bf16.mxu0 0
      %6333 = vmatpush1.bf16.msra.mxu0 0
      %6334 = vmatprep.subr.bf16.mxu0 0
      %6335 = vmatpush1.bf16.msra.mxu0 0
      %6336 = vmatprep.mubr.bf16.mxu0 0
      %6337 = vmatmul.mubr.bf16.gmra.mrb[0].mxu0 %v6209
      %v6338 = vpop.f32.mrb[0].mxu0
      %v6339 = vadd.f32 0.0, %v6338
      %v6340 = vpop.f32.mrb[0].mxu0
      %v6341 = vpop.f32.mrb[0].mxu0
      %v6342 = vadd.f32 0.0, %v6341
      %v6343 = vpop.f32.mrb[0].mxu0
      %6344 = vmatprep.mubr.bf16.mxu0 0
      %6345 = vmatmul.mubr.bf16.gmra.mrb[0].mxu0 %v6212
      %v6346 = vpop.f32.mrb[0].mxu0
      %v6347 = vadd.f32 0.0, %v6346
      %v6348 = vpop.f32.mrb[0].mxu0
      %v6349 = vpop.f32.mrb[0].mxu0
      %v6350 = vadd.f32 0.0, %v6349
      %v6351 = vpop.f32.mrb[0].mxu0
      %6352 = vmatprep.mubr.bf16.mxu0 0
      %6353 = vmatmul.mubr.bf16.gmra.mrb[0].mxu0 %v6215
      %v6354 = vpop.f32.mrb[0].mxu0
      %v6355 = vadd.f32 0.0, %v6354
      %v6356 = vpop.f32.mrb[0].mxu0
      %v6357 = vpop.f32.mrb[0].mxu0
      %v6358 = vadd.f32 0.0, %v6357
      %v6359 = vpop.f32.mrb[0].mxu0
      %6360 = vmatprep.mubr.bf16.mxu0 0
      %6361 = vmatmul.mubr.bf16.gmra.mrb[0].mxu0 %v6218
      %v6362 = vpop.f32.mrb[0].mxu0
      %v6363 = vadd.f32 0.0, %v6362
      %v6364 = vpop.f32.mrb[0].mxu0
      %v6365 = vpop.f32.mrb[0].mxu0
      %v6366 = vadd.f32 0.0, %v6365
      %v6367 = vpop.f32.mrb[0].mxu0
      %6368 = vmatprep.mubr.bf16.mxu0 0
      %6369 = vmatmul.mubr.bf16.gmra.mrb[0].mxu0 %v6221
      %v6370 = vpop.f32.mrb[0].mxu0
      %v6371 = vadd.f32 0.0, %v6370
      %v6372 = vpop.f32.mrb[0].mxu0
      %v6373 = vpop.f32.mrb[0].mxu0
      %v6374 = vadd.f32 0.0, %v6373
      %v6375 = vpop.f32.mrb[0].mxu0
      %6376 = vmatprep.mubr.bf16.mxu0 0
      %6377 = vmatmul.mubr.bf16.gmra.mrb[0].mxu0 %v6224
      %v6378 = vpop.f32.mrb[0].mxu0
      %v6379 = vadd.f32 0.0, %v6378
      %v6380 = vpop.f32.mrb[0].mxu0
      %v6381 = vpop.f32.mrb[0].mxu0
      %v6382 = vadd.f32 0.0, %v6381
      %v6383 = vpop.f32.mrb[0].mxu0
      %6384 = vmatprep.mubr.bf16.mxu0 0
      %6385 = vmatmul.mubr.bf16.gmra.mrb[0].mxu0 %v6227
      %v6386 = vpop.f32.mrb[0].mxu0
      %v6387 = vadd.f32 0.0, %v6386
      %v6388 = vpop.f32.mrb[0].mxu0
      %v6389 = vpop.f32.mrb[0].mxu0
      %v6390 = vadd.f32 0.0, %v6389
      %v6391 = vpop.f32.mrb[0].mxu0
      %6392 = vmatprep.mubr.bf16.mxu0 0
      %6393 = vmatmul.mubr.bf16.gmra.mrb[0].mxu0 %v6230
      %v6394 = vpop.f32.mrb[0].mxu0
      %v6395 = vadd.f32 0.0, %v6394
      %v6396 = vpop.f32.mrb[0].mxu0
      %v6397 = vpop.f32.mrb[0].mxu0
      %v6398 = vadd.f32 0.0, %v6397
      %v6399 = vpop.f32.mrb[0].mxu0
      %6400 = vmatprep.mubr.bf16.mxu0 0
      %6401 = vmatmul.mubr.bf16.gmra.mrb[0].mxu0 %v6233
      %v6402 = vpop.f32.mrb[0].mxu0
      %v6403 = vadd.f32 0.0, %v6402
      %v6404 = vpop.f32.mrb[0].mxu0
      %v6405 = vpop.f32.mrb[0].mxu0
      %v6406 = vadd.f32 0.0, %v6405
      %v6407 = vpop.f32.mrb[0].mxu0
      %6408 = vmatprep.mubr.bf16.mxu0 0
      %6409 = vmatmul.mubr.bf16.gmra.mrb[0].mxu0 %v6236
      %v6410 = vpop.f32.mrb[0].mxu0
      %v6411 = vadd.f32 0.0, %v6410
      %v6412 = vpop.f32.mrb[0].mxu0
      %v6413 = vpop.f32.mrb[0].mxu0
      %v6414 = vadd.f32 0.0, %v6413
      %v6415 = vpop.f32.mrb[0].mxu0
      %6416 = vmatprep.mubr.bf16.mxu0 0
      %6417 = vmatmul.mubr.bf16.gmra.mrb[0].mxu0 %v6239
      %v6418 = vpop.f32.mrb[0].mxu0
      %v6419 = vadd.f32 0.0, %v6418
      %v6420 = vpop.f32.mrb[0].mxu0
      %v6421 = vpop.f32.mrb[0].mxu0
      %v6422 = vadd.f32 0.0, %v6421
      %v6423 = vpop.f32.mrb[0].mxu0
      %6424 = vmatprep.mubr.bf16.mxu0 0
      %6425 = vmatmul.mubr.bf16.gmra.mrb[0].mxu0 %v6242
      %v6426 = vpop.f32.mrb[0].mxu0
      %v6427 = vadd.f32 0.0, %v6426
      %v6428 = vpop.f32.mrb[0].mxu0
      %v6429 = vpop.f32.mrb[0].mxu0
      %v6430 = vadd.f32 0.0, %v6429
      %v6431 = vpop.f32.mrb[0].mxu0
      %6432 = vmatprep.mubr.bf16.mxu0 0
      %6433 = vmatmul.mubr.bf16.gmra.mrb[0].mxu0 %v6245
      %v6434 = vpop.f32.mrb[0].mxu0
      %v6435 = vadd.f32 0.0, %v6434
      %v6436 = vpop.f32.mrb[0].mxu0
      %v6437 = vpop.f32.mrb[0].mxu0
      %v6438 = vadd.f32 0.0, %v6437
      %v6439 = vpop.f32.mrb[0].mxu0
      %6440 = vmatprep.mubr.bf16.mxu0 0
      %6441 = vmatmul.mubr.bf16.gmra.mrb[0].mxu0 %v6248
      %v6442 = vpop.f32.mrb[0].mxu0
      %v6443 = vadd.f32 0.0, %v6442
      %v6444 = vpop.f32.mrb[0].mxu0
      %v6445 = vpop.f32.mrb[0].mxu0
      %v6446 = vadd.f32 0.0, %v6445
      %v6447 = vpop.f32.mrb[0].mxu0
      %6448 = vmatprep.mubr.bf16.mxu0 0
      %6449 = vmatmul.mubr.bf16.gmra.mrb[0].mxu0 %v6251
      %v6450 = vpop.f32.mrb[0].mxu0
      %v6451 = vadd.f32 0.0, %v6450
      %v6452 = vpop.f32.mrb[0].mxu0
      %v6453 = vpop.f32.mrb[0].mxu0
      %v6454 = vadd.f32 0.0, %v6453
      %v6455 = vpop.f32.mrb[0].mxu0
      %6456 = vmatprep.mubr.bf16.mxu0 0
      %6457 = vmatmul.mubr.bf16.gmra.mrb[0].mxu0 %v6254
      %v6458 = vpop.f32.mrb[0].mxu0
      %v6459 = vadd.f32 0.0, %v6458
      %v6460 = vpop.f32.mrb[0].mxu0
      %v6461 = vpop.f32.mrb[0].mxu0
      %v6462 = vadd.f32 0.0, %v6461
      %v6463 = vpop.f32.mrb[0].mxu0
      %6464 = vmatprep.mubr.bf16.mxu0 0
      %6465 = vmatmul.mubr.bf16.gmra.mrb[0].mxu0 %v6257
      %v6466 = vpop.f32.mrb[0].mxu0
      %v6467 = vadd.f32 0.0, %v6466
      %v6468 = vpop.f32.mrb[0].mxu0
      %v6469 = vpop.f32.mrb[0].mxu0
      %v6470 = vadd.f32 0.0, %v6469
      %v6471 = vpop.f32.mrb[0].mxu0
      %6472 = vmatprep.mubr.bf16.mxu0 0
      %6473 = vmatmul.mubr.bf16.gmra.mrb[0].mxu0 %v6260
      %v6474 = vpop.f32.mrb[0].mxu0
      %v6475 = vadd.f32 0.0, %v6474
      %v6476 = vpop.f32.mrb[0].mxu0
      %v6477 = vpop.f32.mrb[0].mxu0
      %v6478 = vadd.f32 0.0, %v6477
      %v6479 = vpop.f32.mrb[0].mxu0
      %6480 = vmatprep.mubr.bf16.mxu0 0
      %6481 = vmatmul.mubr.bf16.gmra.mrb[0].mxu0 %v6263
      %v6482 = vpop.f32.mrb[0].mxu0
      %v6483 = vadd.f32 0.0, %v6482
      %v6484 = vpop.f32.mrb[0].mxu0
      %v6485 = vpop.f32.mrb[0].mxu0
      %v6486 = vadd.f32 0.0, %v6485
      %v6487 = vpop.f32.mrb[0].mxu0
      %6488 = vmatprep.mubr.bf16.mxu0 0
      %6489 = vmatmul.mubr.bf16.gmra.mrb[0].mxu0 %v6266
      %v6490 = vpop.f32.mrb[0].mxu0
      %v6491 = vadd.f32 0.0, %v6490
      %v6492 = vpop.f32.mrb[0].mxu0
      %v6493 = vpop.f32.mrb[0].mxu0
      %v6494 = vadd.f32 0.0, %v6493
      %v6495 = vpop.f32.mrb[0].mxu0
      %6496 = vmatprep.mubr.bf16.mxu0 0
      %6497 = vmatmul.mubr.bf16.gmra.mrb[0].mxu0 %v6269
      %v6498 = vpop.f32.mrb[0].mxu0
      %v6499 = vadd.f32 0.0, %v6498
      %v6500 = vpop.f32.mrb[0].mxu0
      %v6501 = vpop.f32.mrb[0].mxu0
      %v6502 = vadd.f32 0.0, %v6501
      %v6503 = vpop.f32.mrb[0].mxu0
      %6504 = vmatprep.mubr.bf16.mxu0 0
      %6505 = vmatmul.mubr.bf16.gmra.mrb[0].mxu0 %v6272
      %v6506 = vpop.f32.mrb[0].mxu0
      %v6507 = vadd.f32 0.0, %v6506
      %v6508 = vpop.f32.mrb[0].mxu0
      %v6509 = vpop.f32.mrb[0].mxu0
      %v6510 = vadd.f32 0.0, %v6509
      %v6511 = vpop.f32.mrb[0].mxu0
      %6512 = vmatprep.mubr.bf16.mxu0 0
      %6513 = vmatmul.mubr.bf16.gmra.mrb[0].mxu0 %v6275
      %v6514 = vpop.f32.mrb[0].mxu0
      %v6515 = vadd.f32 0.0, %v6514
      %v6516 = vpop.f32.mrb[0].mxu0
      %v6517 = vpop.f32.mrb[0].mxu0
      %v6518 = vadd.f32 0.0, %v6517
      %v6519 = vpop.f32.mrb[0].mxu0
      %6520 = vmatprep.mubr.bf16.mxu0 0
      %6521 = vmatmul.mubr.bf16.gmra.mrb[0].mxu0 %v6278
      %v6522 = vpop.f32.mrb[0].mxu0
      %v6523 = vadd.f32 0.0, %v6522
      %v6524 = vpop.f32.mrb[0].mxu0
      %v6525 = vpop.f32.mrb[0].mxu0
      %v6526 = vadd.f32 0.0, %v6525
      %v6527 = vpop.f32.mrb[0].mxu0
      %6528 = vmatprep.mubr.bf16.mxu0 0
      %6529 = vmatmul.mubr.bf16.gmra.mrb[0].mxu0 %v6281
      %v6530 = vpop.f32.mrb[0].mxu0
      %v6531 = vadd.f32 0.0, %v6530
      %v6532 = vpop.f32.mrb[0].mxu0
      %v6533 = vpop.f32.mrb[0].mxu0
      %v6534 = vadd.f32 0.0, %v6533
      %v6535 = vpop.f32.mrb[0].mxu0
      %6536 = vmatprep.mubr.bf16.mxu0 0
      %6537 = vmatmul.mubr.bf16.gmra.mrb[0].mxu0 %v6284
      %v6538 = vpop.f32.mrb[0].mxu0
      %v6539 = vadd.f32 0.0, %v6538
      %v6540 = vpop.f32.mrb[0].mxu0
      %v6541 = vpop.f32.mrb[0].mxu0
      %v6542 = vadd.f32 0.0, %v6541
      %v6543 = vpop.f32.mrb[0].mxu0
      %6544 = vmatprep.mubr.bf16.mxu0 0
      %6545 = vmatmul.mubr.bf16.gmra.mrb[0].mxu0 %v6287
      %v6546 = vpop.f32.mrb[0].mxu0
      %v6547 = vadd.f32 0.0, %v6546
      %v6548 = vpop.f32.mrb[0].mxu0
      %v6549 = vpop.f32.mrb[0].mxu0
      %v6550 = vadd.f32 0.0, %v6549
      %v6551 = vpop.f32.mrb[0].mxu0
      %6552 = vmatprep.mubr.bf16.mxu0 0
      %6553 = vmatmul.mubr.bf16.gmra.mrb[0].mxu0 %v6290
      %v6554 = vpop.f32.mrb[0].mxu0
      %v6555 = vadd.f32 0.0, %v6554
      %v6556 = vpop.f32.mrb[0].mxu0
      %v6557 = vpop.f32.mrb[0].mxu0
      %v6558 = vadd.f32 0.0, %v6557
      %v6559 = vpop.f32.mrb[0].mxu0
      %6560 = vmatprep.mubr.bf16.mxu0 0
      %6561 = vmatmul.mubr.bf16.gmra.mrb[0].mxu0 %v6293
      %v6562 = vpop.f32.mrb[0].mxu0
      %v6563 = vadd.f32 0.0, %v6562
      %v6564 = vpop.f32.mrb[0].mxu0
      %v6565 = vpop.f32.mrb[0].mxu0
      %v6566 = vadd.f32 0.0, %v6565
      %v6567 = vpop.f32.mrb[0].mxu0
      %6568 = vmatprep.mubr.bf16.mxu0 0
      %6569 = vmatmul.mubr.bf16.gmra.mrb[0].mxu0 %v6296
      %v6570 = vpop.f32.mrb[0].mxu0
      %v6571 = vadd.f32 0.0, %v6570
      %v6572 = vpop.f32.mrb[0].mxu0
      %v6573 = vpop.f32.mrb[0].mxu0
      %v6574 = vadd.f32 0.0, %v6573
      %v6575 = vpop.f32.mrb[0].mxu0
      %6576 = vmatprep.mubr.bf16.mxu0 0
      %6577 = vmatmul.mubr.bf16.gmra.mrb[0].mxu0 %v6299
      %v6578 = vpop.f32.mrb[0].mxu0
      %v6579 = vadd.f32 0.0, %v6578
      %v6580 = vpop.f32.mrb[0].mxu0
      %v6581 = vpop.f32.mrb[0].mxu0
      %v6582 = vadd.f32 0.0, %v6581
      %v6583 = vpop.f32.mrb[0].mxu0
      %6584 = vmatprep.mubr.bf16.mxu0 0
      %6585 = vmatmul.mubr.bf16.gmra.mrb[0].mxu0 %v6302
      %v6586 = vpop.f32.mrb[0].mxu0
      %v6587 = vadd.f32 0.0, %v6586
      %v6588 = vpop.f32.mrb[0].mxu0
      %v6589 = vpop.f32.mrb[0].mxu0
      %v6590 = vadd.f32 0.0, %v6589
      %v6591 = vpop.f32.mrb[0].mxu0
      %6592 = vdwg.mxu0
      %v6593 = vadd.f32 %v5521, %v6339
      %v6594 = vadd.f32 %v5524, %v6342
      %v6595 = vadd.f32 %v5529, %v6347
      %v6596 = vadd.f32 %v5532, %v6350
      %v6597 = vadd.f32 %v5537, %v6355
      %v6598 = vadd.f32 %v5540, %v6358
      %v6599 = vadd.f32 %v5545, %v6363
      %v6600 = vadd.f32 %v5548, %v6366
      %v6601 = vadd.f32 %v5553, %v6371
      %v6602 = vadd.f32 %v5556, %v6374
      %v6603 = vadd.f32 %v5561, %v6379
      %v6604 = vadd.f32 %v5564, %v6382
      %v6605 = vadd.f32 %v5569, %v6387
      %v6606 = vadd.f32 %v5572, %v6390
      %v6607 = vadd.f32 %v5577, %v6395
      %v6608 = vadd.f32 %v5580, %v6398
      %v6609 = vadd.f32 %v5585, %v6403
      %v6610 = vadd.f32 %v5588, %v6406
      %v6611 = vadd.f32 %v5593, %v6411
      %v6612 = vadd.f32 %v5596, %v6414
      %v6613 = vadd.f32 %v5601, %v6419
      %v6614 = vadd.f32 %v5604, %v6422
      %v6615 = vadd.f32 %v5609, %v6427
      %v6616 = vadd.f32 %v5612, %v6430
      %v6617 = vadd.f32 %v5617, %v6435
      %v6618 = vadd.f32 %v5620, %v6438
      %v6619 = vadd.f32 %v5625, %v6443
      %v6620 = vadd.f32 %v5628, %v6446
      %v6621 = vadd.f32 %v5633, %v6451
      %v6622 = vadd.f32 %v5636, %v6454
      %v6623 = vadd.f32 %v5641, %v6459
      %v6624 = vadd.f32 %v5644, %v6462
      %v6625 = vadd.f32 %v5649, %v6467
      %v6626 = vadd.f32 %v5652, %v6470
      %v6627 = vadd.f32 %v5657, %v6475
      %v6628 = vadd.f32 %v5660, %v6478
      %v6629 = vadd.f32 %v5665, %v6483
      %v6630 = vadd.f32 %v5668, %v6486
      %v6631 = vadd.f32 %v5673, %v6491
      %v6632 = vadd.f32 %v5676, %v6494
      %v6633 = vadd.f32 %v5681, %v6499
      %v6634 = vadd.f32 %v5684, %v6502
      %v6635 = vadd.f32 %v5689, %v6507
      %v6636 = vadd.f32 %v5692, %v6510
      %v6637 = vadd.f32 %v5697, %v6515
      %v6638 = vadd.f32 %v5700, %v6518
      %v6639 = vadd.f32 %v5705, %v6523
      %v6640 = vadd.f32 %v5708, %v6526
      %v6641 = vadd.f32 %v5713, %v6531
      %v6642 = vadd.f32 %v5716, %v6534
      %v6643 = vadd.f32 %v5721, %v6539
      %v6644 = vadd.f32 %v5724, %v6542
      %v6645 = vadd.f32 %v5729, %v6547
      %v6646 = vadd.f32 %v5732, %v6550
      %v6647 = vadd.f32 %v5737, %v6555
      %v6648 = vadd.f32 %v5740, %v6558
      %v6649 = vadd.f32 %v5745, %v6563
      %v6650 = vadd.f32 %v5748, %v6566
      %v6651 = vadd.f32 %v5753, %v6571
      %v6652 = vadd.f32 %v5756, %v6574
      %v6653 = vadd.f32 %v5761, %v6579
      %v6654 = vadd.f32 %v5764, %v6582
      %v6655 = vadd.f32 %v5769, %v6587
      %v6656 = vadd.f32 %v5772, %v6590
      %v6657 = vld [vmem:[%s5] sm:$0x1]
      %v6659 = vlaneseq
      %v6660 = vshrl.u32 %v6659, 7
      %v6661 = vsub.s32 0, %v6660
      %v6662 = vrot.slane %v6657, %v6661
      %v6664 = vadd.f32 %v6593, %v6662
      %v6665 = vadd.f32 %v6594, %v6662
      %v6666 = vadd.f32 %v6595, %v6662
      %v6667 = vadd.f32 %v6596, %v6662
      %v6668 = vadd.f32 %v6597, %v6662
      %v6669 = vadd.f32 %v6598, %v6662
      %v6670 = vadd.f32 %v6599, %v6662
      %v6671 = vadd.f32 %v6600, %v6662
      %v6672 = vadd.f32 %v6601, %v6662
      %v6673 = vadd.f32 %v6602, %v6662
      %v6674 = vadd.f32 %v6603, %v6662
      %v6675 = vadd.f32 %v6604, %v6662
      %v6676 = vadd.f32 %v6605, %v6662
      %v6677 = vadd.f32 %v6606, %v6662
      %v6678 = vadd.f32 %v6607, %v6662
      %v6679 = vadd.f32 %v6608, %v6662
      %v6680 = vadd.f32 %v6609, %v6662
      %v6681 = vadd.f32 %v6610, %v6662
      %v6682 = vadd.f32 %v6611, %v6662
      %v6683 = vadd.f32 %v6612, %v6662
      %v6684 = vadd.f32 %v6613, %v6662
      %v6685 = vadd.f32 %v6614, %v6662
      %v6686 = vadd.f32 %v6615, %v6662
      %v6687 = vadd.f32 %v6616, %v6662
      %v6688 = vadd.f32 %v6617, %v6662
      %v6689 = vadd.f32 %v6618, %v6662
      %v6690 = vadd.f32 %v6619, %v6662
      %v6691 = vadd.f32 %v6620, %v6662
      %v6692 = vadd.f32 %v6621, %v6662
      %v6693 = vadd.f32 %v6622, %v6662
      %v6694 = vadd.f32 %v6623, %v6662
      %v6695 = vadd.f32 %v6624, %v6662
      %v6696 = vadd.f32 %v6625, %v6662
      %v6697 = vadd.f32 %v6626, %v6662
      %v6698 = vadd.f32 %v6627, %v6662
      %v6699 = vadd.f32 %v6628, %v6662
      %v6700 = vadd.f32 %v6629, %v6662
      %v6701 = vadd.f32 %v6630, %v6662
      %v6702 = vadd.f32 %v6631, %v6662
      %v6703 = vadd.f32 %v6632, %v6662
      %v6704 = vadd.f32 %v6633, %v6662
      %v6705 = vadd.f32 %v6634, %v6662
      %v6706 = vadd.f32 %v6635, %v6662
      %v6707 = vadd.f32 %v6636, %v6662
      %v6708 = vadd.f32 %v6637, %v6662
      %v6709 = vadd.f32 %v6638, %v6662
      %v6710 = vadd.f32 %v6639, %v6662
      %v6711 = vadd.f32 %v6640, %v6662
      %v6712 = vadd.f32 %v6641, %v6662
      %v6713 = vadd.f32 %v6642, %v6662
      %v6714 = vadd.f32 %v6643, %v6662
      %v6715 = vadd.f32 %v6644, %v6662
      %v6716 = vadd.f32 %v6645, %v6662
      %v6717 = vadd.f32 %v6646, %v6662
      %v6718 = vadd.f32 %v6647, %v6662
      %v6719 = vadd.f32 %v6648, %v6662
      %v6720 = vadd.f32 %v6649, %v6662
      %v6721 = vadd.f32 %v6650, %v6662
      %v6722 = vadd.f32 %v6651, %v6662
      %v6723 = vadd.f32 %v6652, %v6662
      %v6724 = vadd.f32 %v6653, %v6662
      %v6725 = vadd.f32 %v6654, %v6662
      %v6726 = vadd.f32 %v6655, %v6662
      %v6727 = vadd.f32 %v6656, %v6662
      %v6728 = vmax.f32 %v6664, 0.0
      %v6729 = vmax.f32 %v6665, 0.0
      %v6730 = vmax.f32 %v6666, 0.0
      %v6731 = vmax.f32 %v6667, 0.0
      %v6732 = vmax.f32 %v6668, 0.0
      %v6733 = vmax.f32 %v6669, 0.0
      %v6734 = vmax.f32 %v6670, 0.0
      %v6735 = vmax.f32 %v6671, 0.0
      %v6736 = vmax.f32 %v6672, 0.0
      %v6737 = vmax.f32 %v6673, 0.0
      %v6738 = vmax.f32 %v6674, 0.0
      %v6739 = vmax.f32 %v6675, 0.0
      %v6740 = vmax.f32 %v6676, 0.0
      %v6741 = vmax.f32 %v6677, 0.0
      %v6742 = vmax.f32 %v6678, 0.0
      %v6743 = vmax.f32 %v6679, 0.0
      %v6744 = vmax.f32 %v6680, 0.0
      %v6745 = vmax.f32 %v6681, 0.0
      %v6746 = vmax.f32 %v6682, 0.0
      %v6747 = vmax.f32 %v6683, 0.0
      %v6748 = vmax.f32 %v6684, 0.0
      %v6749 = vmax.f32 %v6685, 0.0
      %v6750 = vmax.f32 %v6686, 0.0
      %v6751 = vmax.f32 %v6687, 0.0
      %v6752 = vmax.f32 %v6688, 0.0
      %v6753 = vmax.f32 %v6689, 0.0
      %v6754 = vmax.f32 %v6690, 0.0
      %v6755 = vmax.f32 %v6691, 0.0
      %v6756 = vmax.f32 %v6692, 0.0
      %v6757 = vmax.f32 %v6693, 0.0
      %v6758 = vmax.f32 %v6694, 0.0
      %v6759 = vmax.f32 %v6695, 0.0
      %v6760 = vmax.f32 %v6696, 0.0
      %v6761 = vmax.f32 %v6697, 0.0
      %v6762 = vmax.f32 %v6698, 0.0
      %v6763 = vmax.f32 %v6699, 0.0
      %v6764 = vmax.f32 %v6700, 0.0
      %v6765 = vmax.f32 %v6701, 0.0
      %v6766 = vmax.f32 %v6702, 0.0
      %v6767 = vmax.f32 %v6703, 0.0
      %v6768 = vmax.f32 %v6704, 0.0
      %v6769 = vmax.f32 %v6705, 0.0
      %v6770 = vmax.f32 %v6706, 0.0
      %v6771 = vmax.f32 %v6707, 0.0
      %v6772 = vmax.f32 %v6708, 0.0
      %v6773 = vmax.f32 %v6709, 0.0
      %v6774 = vmax.f32 %v6710, 0.0
      %v6775 = vmax.f32 %v6711, 0.0
      %v6776 = vmax.f32 %v6712, 0.0
      %v6777 = vmax.f32 %v6713, 0.0
      %v6778 = vmax.f32 %v6714, 0.0
      %v6779 = vmax.f32 %v6715, 0.0
      %v6780 = vmax.f32 %v6716, 0.0
      %v6781 = vmax.f32 %v6717, 0.0
      %v6782 = vmax.f32 %v6718, 0.0
      %v6783 = vmax.f32 %v6719, 0.0
      %v6784 = vmax.f32 %v6720, 0.0
      %v6785 = vmax.f32 %v6721, 0.0
      %v6786 = vmax.f32 %v6722, 0.0
      %v6787 = vmax.f32 %v6723, 0.0
      %v6788 = vmax.f32 %v6724, 0.0
      %v6789 = vmax.f32 %v6725, 0.0
      %v6790 = vmax.f32 %v6726, 0.0
      %v6791 = vmax.f32 %v6727, 0.0
      %v6792 = vsel %vm4832, %v6728, -inf
      %v6793 = vrot.slane %v6792, 4
      %v6794 = vmax.f32 %v6792, %v6793
      %v6795 = vrot.slane %v6794, 2
      %v6796 = vmax.f32 %v6794, %v6795
      %v6797 = vrot.slane %v6796, 1
      %v6798 = vmax.f32 %v6796, %v6797
      %v6799 = vsel %vm4832, %v6729, -inf
      %v6800 = vrot.slane %v6799, 4
      %v6801 = vmax.f32 %v6799, %v6800
      %v6802 = vrot.slane %v6801, 2
      %v6803 = vmax.f32 %v6801, %v6802
      %v6804 = vrot.slane %v6803, 1
      %v6805 = vmax.f32 %v6803, %v6804
      %v6806 = vsel %vm4832, %v6730, -inf
      %v6807 = vrot.slane %v6806, 4
      %v6808 = vmax.f32 %v6806, %v6807
      %v6809 = vrot.slane %v6808, 2
      %v6810 = vmax.f32 %v6808, %v6809
      %v6811 = vrot.slane %v6810, 1
      %v6812 = vmax.f32 %v6810, %v6811
      %v6813 = vsel %vm4832, %v6731, -inf
      %v6814 = vrot.slane %v6813, 4
      %v6815 = vmax.f32 %v6813, %v6814
      %v6816 = vrot.slane %v6815, 2
      %v6817 = vmax.f32 %v6815, %v6816
      %v6818 = vrot.slane %v6817, 1
      %v6819 = vmax.f32 %v6817, %v6818
      %v6820 = vsel %vm4832, %v6732, -inf
      %v6821 = vrot.slane %v6820, 4
      %v6822 = vmax.f32 %v6820, %v6821
      %v6823 = vrot.slane %v6822, 2
      %v6824 = vmax.f32 %v6822, %v6823
      %v6825 = vrot.slane %v6824, 1
      %v6826 = vmax.f32 %v6824, %v6825
      %v6827 = vsel %vm4832, %v6733, -inf
      %v6828 = vrot.slane %v6827, 4
      %v6829 = vmax.f32 %v6827, %v6828
      %v6830 = vrot.slane %v6829, 2
      %v6831 = vmax.f32 %v6829, %v6830
      %v6832 = vrot.slane %v6831, 1
      %v6833 = vmax.f32 %v6831, %v6832
      %v6834 = vsel %vm4832, %v6734, -inf
      %v6835 = vrot.slane %v6834, 4
      %v6836 = vmax.f32 %v6834, %v6835
      %v6837 = vrot.slane %v6836, 2
      %v6838 = vmax.f32 %v6836, %v6837
      %v6839 = vrot.slane %v6838, 1
      %v6840 = vmax.f32 %v6838, %v6839
      %v6841 = vsel %vm4832, %v6735, -inf
      %v6842 = vrot.slane %v6841, 4
      %v6843 = vmax.f32 %v6841, %v6842
      %v6844 = vrot.slane %v6843, 2
      %v6845 = vmax.f32 %v6843, %v6844
      %v6846 = vrot.slane %v6845, 1
      %v6847 = vmax.f32 %v6845, %v6846
      %v6848 = vsel %vm4832, %v6736, -inf
      %v6849 = vrot.slane %v6848, 4
      %v6850 = vmax.f32 %v6848, %v6849
      %v6851 = vrot.slane %v6850, 2
      %v6852 = vmax.f32 %v6850, %v6851
      %v6853 = vrot.slane %v6852, 1
      %v6854 = vmax.f32 %v6852, %v6853
      %v6855 = vsel %vm4832, %v6737, -inf
      %v6856 = vrot.slane %v6855, 4
      %v6857 = vmax.f32 %v6855, %v6856
      %v6858 = vrot.slane %v6857, 2
      %v6859 = vmax.f32 %v6857, %v6858
      %v6860 = vrot.slane %v6859, 1
      %v6861 = vmax.f32 %v6859, %v6860
      %v6862 = vsel %vm4832, %v6738, -inf
      %v6863 = vrot.slane %v6862, 4
      %v6864 = vmax.f32 %v6862, %v6863
      %v6865 = vrot.slane %v6864, 2
      %v6866 = vmax.f32 %v6864, %v6865
      %v6867 = vrot.slane %v6866, 1
      %v6868 = vmax.f32 %v6866, %v6867
      %v6869 = vsel %vm4832, %v6739, -inf
      %v6870 = vrot.slane %v6869, 4
      %v6871 = vmax.f32 %v6869, %v6870
      %v6872 = vrot.slane %v6871, 2
      %v6873 = vmax.f32 %v6871, %v6872
      %v6874 = vrot.slane %v6873, 1
      %v6875 = vmax.f32 %v6873, %v6874
      %v6876 = vsel %vm4832, %v6740, -inf
      %v6877 = vrot.slane %v6876, 4
      %v6878 = vmax.f32 %v6876, %v6877
      %v6879 = vrot.slane %v6878, 2
      %v6880 = vmax.f32 %v6878, %v6879
      %v6881 = vrot.slane %v6880, 1
      %v6882 = vmax.f32 %v6880, %v6881
      %v6883 = vsel %vm4832, %v6741, -inf
      %v6884 = vrot.slane %v6883, 4
      %v6885 = vmax.f32 %v6883, %v6884
      %v6886 = vrot.slane %v6885, 2
      %v6887 = vmax.f32 %v6885, %v6886
      %v6888 = vrot.slane %v6887, 1
      %v6889 = vmax.f32 %v6887, %v6888
      %v6890 = vsel %vm4832, %v6742, -inf
      %v6891 = vrot.slane %v6890, 4
      %v6892 = vmax.f32 %v6890, %v6891
      %v6893 = vrot.slane %v6892, 2
      %v6894 = vmax.f32 %v6892, %v6893
      %v6895 = vrot.slane %v6894, 1
      %v6896 = vmax.f32 %v6894, %v6895
      %v6897 = vsel %vm4832, %v6743, -inf
      %v6898 = vrot.slane %v6897, 4
      %v6899 = vmax.f32 %v6897, %v6898
      %v6900 = vrot.slane %v6899, 2
      %v6901 = vmax.f32 %v6899, %v6900
      %v6902 = vrot.slane %v6901, 1
      %v6903 = vmax.f32 %v6901, %v6902
      %v6904 = vsel %vm4832, %v6744, -inf
      %v6905 = vrot.slane %v6904, 4
      %v6906 = vmax.f32 %v6904, %v6905
      %v6907 = vrot.slane %v6906, 2
      %v6908 = vmax.f32 %v6906, %v6907
      %v6909 = vrot.slane %v6908, 1
      %v6910 = vmax.f32 %v6908, %v6909
      %v6911 = vsel %vm4832, %v6745, -inf
      %v6912 = vrot.slane %v6911, 4
      %v6913 = vmax.f32 %v6911, %v6912
      %v6914 = vrot.slane %v6913, 2
      %v6915 = vmax.f32 %v6913, %v6914
      %v6916 = vrot.slane %v6915, 1
      %v6917 = vmax.f32 %v6915, %v6916
      %v6918 = vsel %vm4832, %v6746, -inf
      %v6919 = vrot.slane %v6918, 4
      %v6920 = vmax.f32 %v6918, %v6919
      %v6921 = vrot.slane %v6920, 2
      %v6922 = vmax.f32 %v6920, %v6921
      %v6923 = vrot.slane %v6922, 1
      %v6924 = vmax.f32 %v6922, %v6923
      %v6925 = vsel %vm4832, %v6747, -inf
      %v6926 = vrot.slane %v6925, 4
      %v6927 = vmax.f32 %v6925, %v6926
      %v6928 = vrot.slane %v6927, 2
      %v6929 = vmax.f32 %v6927, %v6928
      %v6930 = vrot.slane %v6929, 1
      %v6931 = vmax.f32 %v6929, %v6930
      %v6932 = vsel %vm4832, %v6748, -inf
      %v6933 = vrot.slane %v6932, 4
      %v6934 = vmax.f32 %v6932, %v6933
      %v6935 = vrot.slane %v6934, 2
      %v6936 = vmax.f32 %v6934, %v6935
      %v6937 = vrot.slane %v6936, 1
      %v6938 = vmax.f32 %v6936, %v6937
      %v6939 = vsel %vm4832, %v6749, -inf
      %v6940 = vrot.slane %v6939, 4
      %v6941 = vmax.f32 %v6939, %v6940
      %v6942 = vrot.slane %v6941, 2
      %v6943 = vmax.f32 %v6941, %v6942
      %v6944 = vrot.slane %v6943, 1
      %v6945 = vmax.f32 %v6943, %v6944
      %v6946 = vsel %vm4832, %v6750, -inf
      %v6947 = vrot.slane %v6946, 4
      %v6948 = vmax.f32 %v6946, %v6947
      %v6949 = vrot.slane %v6948, 2
      %v6950 = vmax.f32 %v6948, %v6949
      %v6951 = vrot.slane %v6950, 1
      %v6952 = vmax.f32 %v6950, %v6951
      %v6953 = vsel %vm4832, %v6751, -inf
      %v6954 = vrot.slane %v6953, 4
      %v6955 = vmax.f32 %v6953, %v6954
      %v6956 = vrot.slane %v6955, 2
      %v6957 = vmax.f32 %v6955, %v6956
      %v6958 = vrot.slane %v6957, 1
      %v6959 = vmax.f32 %v6957, %v6958
      %v6960 = vsel %vm4832, %v6752, -inf
      %v6961 = vrot.slane %v6960, 4
      %v6962 = vmax.f32 %v6960, %v6961
      %v6963 = vrot.slane %v6962, 2
      %v6964 = vmax.f32 %v6962, %v6963
      %v6965 = vrot.slane %v6964, 1
      %v6966 = vmax.f32 %v6964, %v6965
      %v6967 = vsel %vm4832, %v6753, -inf
      %v6968 = vrot.slane %v6967, 4
      %v6969 = vmax.f32 %v6967, %v6968
      %v6970 = vrot.slane %v6969, 2
      %v6971 = vmax.f32 %v6969, %v6970
      %v6972 = vrot.slane %v6971, 1
      %v6973 = vmax.f32 %v6971, %v6972
      %v6974 = vsel %vm4832, %v6754, -inf
      %v6975 = vrot.slane %v6974, 4
      %v6976 = vmax.f32 %v6974, %v6975
      %v6977 = vrot.slane %v6976, 2
      %v6978 = vmax.f32 %v6976, %v6977
      %v6979 = vrot.slane %v6978, 1
      %v6980 = vmax.f32 %v6978, %v6979
      %v6981 = vsel %vm4832, %v6755, -inf
      %v6982 = vrot.slane %v6981, 4
      %v6983 = vmax.f32 %v6981, %v6982
      %v6984 = vrot.slane %v6983, 2
      %v6985 = vmax.f32 %v6983, %v6984
      %v6986 = vrot.slane %v6985, 1
      %v6987 = vmax.f32 %v6985, %v6986
      %v6988 = vsel %vm4832, %v6756, -inf
      %v6989 = vrot.slane %v6988, 4
      %v6990 = vmax.f32 %v6988, %v6989
      %v6991 = vrot.slane %v6990, 2
      %v6992 = vmax.f32 %v6990, %v6991
      %v6993 = vrot.slane %v6992, 1
      %v6994 = vmax.f32 %v6992, %v6993
      %v6995 = vsel %vm4832, %v6757, -inf
      %v6996 = vrot.slane %v6995, 4
      %v6997 = vmax.f32 %v6995, %v6996
      %v6998 = vrot.slane %v6997, 2
      %v6999 = vmax.f32 %v6997, %v6998
      %v7000 = vrot.slane %v6999, 1
      %v7001 = vmax.f32 %v6999, %v7000
      %v7002 = vsel %vm4832, %v6758, -inf
      %v7003 = vrot.slane %v7002, 4
      %v7004 = vmax.f32 %v7002, %v7003
      %v7005 = vrot.slane %v7004, 2
      %v7006 = vmax.f32 %v7004, %v7005
      %v7007 = vrot.slane %v7006, 1
      %v7008 = vmax.f32 %v7006, %v7007
      %v7009 = vsel %vm4832, %v6759, -inf
      %v7010 = vrot.slane %v7009, 4
      %v7011 = vmax.f32 %v7009, %v7010
      %v7012 = vrot.slane %v7011, 2
      %v7013 = vmax.f32 %v7011, %v7012
      %v7014 = vrot.slane %v7013, 1
      %v7015 = vmax.f32 %v7013, %v7014
      %v7016 = vsel %vm4832, %v6760, -inf
      %v7017 = vrot.slane %v7016, 4
      %v7018 = vmax.f32 %v7016, %v7017
      %v7019 = vrot.slane %v7018, 2
      %v7020 = vmax.f32 %v7018, %v7019
      %v7021 = vrot.slane %v7020, 1
      %v7022 = vmax.f32 %v7020, %v7021
      %v7023 = vsel %vm4832, %v6761, -inf
      %v7024 = vrot.slane %v7023, 4
      %v7025 = vmax.f32 %v7023, %v7024
      %v7026 = vrot.slane %v7025, 2
      %v7027 = vmax.f32 %v7025, %v7026
      %v7028 = vrot.slane %v7027, 1
      %v7029 = vmax.f32 %v7027, %v7028
      %v7030 = vsel %vm4832, %v6762, -inf
      %v7031 = vrot.slane %v7030, 4
      %v7032 = vmax.f32 %v7030, %v7031
      %v7033 = vrot.slane %v7032, 2
      %v7034 = vmax.f32 %v7032, %v7033
      %v7035 = vrot.slane %v7034, 1
      %v7036 = vmax.f32 %v7034, %v7035
      %v7037 = vsel %vm4832, %v6763, -inf
      %v7038 = vrot.slane %v7037, 4
      %v7039 = vmax.f32 %v7037, %v7038
      %v7040 = vrot.slane %v7039, 2
      %v7041 = vmax.f32 %v7039, %v7040
      %v7042 = vrot.slane %v7041, 1
      %v7043 = vmax.f32 %v7041, %v7042
      %v7044 = vsel %vm4832, %v6764, -inf
      %v7045 = vrot.slane %v7044, 4
      %v7046 = vmax.f32 %v7044, %v7045
      %v7047 = vrot.slane %v7046, 2
      %v7048 = vmax.f32 %v7046, %v7047
      %v7049 = vrot.slane %v7048, 1
      %v7050 = vmax.f32 %v7048, %v7049
      %v7051 = vsel %vm4832, %v6765, -inf
      %v7052 = vrot.slane %v7051, 4
      %v7053 = vmax.f32 %v7051, %v7052
      %v7054 = vrot.slane %v7053, 2
      %v7055 = vmax.f32 %v7053, %v7054
      %v7056 = vrot.slane %v7055, 1
      %v7057 = vmax.f32 %v7055, %v7056
      %v7058 = vsel %vm4832, %v6766, -inf
      %v7059 = vrot.slane %v7058, 4
      %v7060 = vmax.f32 %v7058, %v7059
      %v7061 = vrot.slane %v7060, 2
      %v7062 = vmax.f32 %v7060, %v7061
      %v7063 = vrot.slane %v7062, 1
      %v7064 = vmax.f32 %v7062, %v7063
      %v7065 = vsel %vm4832, %v6767, -inf
      %v7066 = vrot.slane %v7065, 4
      %v7067 = vmax.f32 %v7065, %v7066
      %v7068 = vrot.slane %v7067, 2
      %v7069 = vmax.f32 %v7067, %v7068
      %v7070 = vrot.slane %v7069, 1
      %v7071 = vmax.f32 %v7069, %v7070
      %v7072 = vsel %vm4832, %v6768, -inf
      %v7073 = vrot.slane %v7072, 4
      %v7074 = vmax.f32 %v7072, %v7073
      %v7075 = vrot.slane %v7074, 2
      %v7076 = vmax.f32 %v7074, %v7075
      %v7077 = vrot.slane %v7076, 1
      %v7078 = vmax.f32 %v7076, %v7077
      %v7079 = vsel %vm4832, %v6769, -inf
      %v7080 = vrot.slane %v7079, 4
      %v7081 = vmax.f32 %v7079, %v7080
      %v7082 = vrot.slane %v7081, 2
      %v7083 = vmax.f32 %v7081, %v7082
      %v7084 = vrot.slane %v7083, 1
      %v7085 = vmax.f32 %v7083, %v7084
      %v7086 = vsel %vm4832, %v6770, -inf
      %v7087 = vrot.slane %v7086, 4
      %v7088 = vmax.f32 %v7086, %v7087
      %v7089 = vrot.slane %v7088, 2
      %v7090 = vmax.f32 %v7088, %v7089
      %v7091 = vrot.slane %v7090, 1
      %v7092 = vmax.f32 %v7090, %v7091
      %v7093 = vsel %vm4832, %v6771, -inf
      %v7094 = vrot.slane %v7093, 4
      %v7095 = vmax.f32 %v7093, %v7094
      %v7096 = vrot.slane %v7095, 2
      %v7097 = vmax.f32 %v7095, %v7096
      %v7098 = vrot.slane %v7097, 1
      %v7099 = vmax.f32 %v7097, %v7098
      %v7100 = vsel %vm4832, %v6772, -inf
      %v7101 = vrot.slane %v7100, 4
      %v7102 = vmax.f32 %v7100, %v7101
      %v7103 = vrot.slane %v7102, 2
      %v7104 = vmax.f32 %v7102, %v7103
      %v7105 = vrot.slane %v7104, 1
      %v7106 = vmax.f32 %v7104, %v7105
      %v7107 = vsel %vm4832, %v6773, -inf
      %v7108 = vrot.slane %v7107, 4
      %v7109 = vmax.f32 %v7107, %v7108
      %v7110 = vrot.slane %v7109, 2
      %v7111 = vmax.f32 %v7109, %v7110
      %v7112 = vrot.slane %v7111, 1
      %v7113 = vmax.f32 %v7111, %v7112
      %v7114 = vsel %vm4832, %v6774, -inf
      %v7115 = vrot.slane %v7114, 4
      %v7116 = vmax.f32 %v7114, %v7115
      %v7117 = vrot.slane %v7116, 2
      %v7118 = vmax.f32 %v7116, %v7117
      %v7119 = vrot.slane %v7118, 1
      %v7120 = vmax.f32 %v7118, %v7119
      %v7121 = vsel %vm4832, %v6775, -inf
      %v7122 = vrot.slane %v7121, 4
      %v7123 = vmax.f32 %v7121, %v7122
      %v7124 = vrot.slane %v7123, 2
      %v7125 = vmax.f32 %v7123, %v7124
      %v7126 = vrot.slane %v7125, 1
      %v7127 = vmax.f32 %v7125, %v7126
      %v7128 = vsel %vm4832, %v6776, -inf
      %v7129 = vrot.slane %v7128, 4
      %v7130 = vmax.f32 %v7128, %v7129
      %v7131 = vrot.slane %v7130, 2
      %v7132 = vmax.f32 %v7130, %v7131
      %v7133 = vrot.slane %v7132, 1
      %v7134 = vmax.f32 %v7132, %v7133
      %v7135 = vsel %vm4832, %v6777, -inf
      %v7136 = vrot.slane %v7135, 4
      %v7137 = vmax.f32 %v7135, %v7136
      %v7138 = vrot.slane %v7137, 2
      %v7139 = vmax.f32 %v7137, %v7138
      %v7140 = vrot.slane %v7139, 1
      %v7141 = vmax.f32 %v7139, %v7140
      %v7142 = vsel %vm4832, %v6778, -inf
      %v7143 = vrot.slane %v7142, 4
      %v7144 = vmax.f32 %v7142, %v7143
      %v7145 = vrot.slane %v7144, 2
      %v7146 = vmax.f32 %v7144, %v7145
      %v7147 = vrot.slane %v7146, 1
      %v7148 = vmax.f32 %v7146, %v7147
      %v7149 = vsel %vm4832, %v6779, -inf
      %v7150 = vrot.slane %v7149, 4
      %v7151 = vmax.f32 %v7149, %v7150
      %v7152 = vrot.slane %v7151, 2
      %v7153 = vmax.f32 %v7151, %v7152
      %v7154 = vrot.slane %v7153, 1
      %v7155 = vmax.f32 %v7153, %v7154
      %v7156 = vsel %vm4832, %v6780, -inf
      %v7157 = vrot.slane %v7156, 4
      %v7158 = vmax.f32 %v7156, %v7157
      %v7159 = vrot.slane %v7158, 2
      %v7160 = vmax.f32 %v7158, %v7159
      %v7161 = vrot.slane %v7160, 1
      %v7162 = vmax.f32 %v7160, %v7161
      %v7163 = vsel %vm4832, %v6781, -inf
      %v7164 = vrot.slane %v7163, 4
      %v7165 = vmax.f32 %v7163, %v7164
      %v7166 = vrot.slane %v7165, 2
      %v7167 = vmax.f32 %v7165, %v7166
      %v7168 = vrot.slane %v7167, 1
      %v7169 = vmax.f32 %v7167, %v7168
      %v7170 = vsel %vm4832, %v6782, -inf
      %v7171 = vrot.slane %v7170, 4
      %v7172 = vmax.f32 %v7170, %v7171
      %v7173 = vrot.slane %v7172, 2
      %v7174 = vmax.f32 %v7172, %v7173
      %v7175 = vrot.slane %v7174, 1
      %v7176 = vmax.f32 %v7174, %v7175
      %v7177 = vsel %vm4832, %v6783, -inf
      %v7178 = vrot.slane %v7177, 4
      %v7179 = vmax.f32 %v7177, %v7178
      %v7180 = vrot.slane %v7179, 2
      %v7181 = vmax.f32 %v7179, %v7180
      %v7182 = vrot.slane %v7181, 1
      %v7183 = vmax.f32 %v7181, %v7182
      %v7184 = vsel %vm4832, %v6784, -inf
      %v7185 = vrot.slane %v7184, 4
      %v7186 = vmax.f32 %v7184, %v7185
      %v7187 = vrot.slane %v7186, 2
      %v7188 = vmax.f32 %v7186, %v7187
      %v7189 = vrot.slane %v7188, 1
      %v7190 = vmax.f32 %v7188, %v7189
      %v7191 = vsel %vm4832, %v6785, -inf
      %v7192 = vrot.slane %v7191, 4
      %v7193 = vmax.f32 %v7191, %v7192
      %v7194 = vrot.slane %v7193, 2
      %v7195 = vmax.f32 %v7193, %v7194
      %v7196 = vrot.slane %v7195, 1
      %v7197 = vmax.f32 %v7195, %v7196
      %v7198 = vsel %vm4832, %v6786, -inf
      %v7199 = vrot.slane %v7198, 4
      %v7200 = vmax.f32 %v7198, %v7199
      %v7201 = vrot.slane %v7200, 2
      %v7202 = vmax.f32 %v7200, %v7201
      %v7203 = vrot.slane %v7202, 1
      %v7204 = vmax.f32 %v7202, %v7203
      %v7205 = vsel %vm4832, %v6787, -inf
      %v7206 = vrot.slane %v7205, 4
      %v7207 = vmax.f32 %v7205, %v7206
      %v7208 = vrot.slane %v7207, 2
      %v7209 = vmax.f32 %v7207, %v7208
      %v7210 = vrot.slane %v7209, 1
      %v7211 = vmax.f32 %v7209, %v7210
      %v7212 = vsel %vm4832, %v6788, -inf
      %v7213 = vrot.slane %v7212, 4
      %v7214 = vmax.f32 %v7212, %v7213
      %v7215 = vrot.slane %v7214, 2
      %v7216 = vmax.f32 %v7214, %v7215
      %v7217 = vrot.slane %v7216, 1
      %v7218 = vmax.f32 %v7216, %v7217
      %v7219 = vsel %vm4832, %v6789, -inf
      %v7220 = vrot.slane %v7219, 4
      %v7221 = vmax.f32 %v7219, %v7220
      %v7222 = vrot.slane %v7221, 2
      %v7223 = vmax.f32 %v7221, %v7222
      %v7224 = vrot.slane %v7223, 1
      %v7225 = vmax.f32 %v7223, %v7224
      %v7226 = vsel %vm4832, %v6790, -inf
      %v7227 = vrot.slane %v7226, 4
      %v7228 = vmax.f32 %v7226, %v7227
      %v7229 = vrot.slane %v7228, 2
      %v7230 = vmax.f32 %v7228, %v7229
      %v7231 = vrot.slane %v7230, 1
      %v7232 = vmax.f32 %v7230, %v7231
      %v7233 = vsel %vm4832, %v6791, -inf
      %v7234 = vrot.slane %v7233, 4
      %v7235 = vmax.f32 %v7233, %v7234
      %v7236 = vrot.slane %v7235, 2
      %v7237 = vmax.f32 %v7235, %v7236
      %v7238 = vrot.slane %v7237, 1
      %v7239 = vmax.f32 %v7237, %v7238
      %vm7272 = vcmask 1041409
      %v7273 = vsel %vm7272, %v6805, %v6798
      %vm7274 = vcmask 1042434
      %v7275 = vsel %vm7274, %v6812, %v7273
      %vm7276 = vcmask 1043459
      %v7277 = vsel %vm7276, %v6819, %v7275
      %vm7278 = vcmask 1044484
      %v7279 = vsel %vm7278, %v6826, %v7277
      %vm7280 = vcmask 1045509
      %v7281 = vsel %vm7280, %v6833, %v7279
      %vm7282 = vcmask 1046534
      %v7283 = vsel %vm7282, %v6840, %v7281
      %vm7284 = vcmask 1047559
      %v7285 = vsel %vm7284, %v6847, %v7283
      %v7286 = vsel %vm7272, %v6861, %v6854
      %v7287 = vsel %vm7274, %v6868, %v7286
      %v7288 = vsel %vm7276, %v6875, %v7287
      %v7289 = vsel %vm7278, %v6882, %v7288
      %v7290 = vsel %vm7280, %v6889, %v7289
      %v7291 = vsel %vm7282, %v6896, %v7290
      %v7292 = vsel %vm7284, %v6903, %v7291
      %v7293 = vsel %vm7272, %v6917, %v6910
      %v7294 = vsel %vm7274, %v6924, %v7293
      %v7295 = vsel %vm7276, %v6931, %v7294
      %v7296 = vsel %vm7278, %v6938, %v7295
      %v7297 = vsel %vm7280, %v6945, %v7296
      %v7298 = vsel %vm7282, %v6952, %v7297
      %v7299 = vsel %vm7284, %v6959, %v7298
      %v7300 = vsel %vm7272, %v6973, %v6966
      %v7301 = vsel %vm7274, %v6980, %v7300
      %v7302 = vsel %vm7276, %v6987, %v7301
      %v7303 = vsel %vm7278, %v6994, %v7302
      %v7304 = vsel %vm7280, %v7001, %v7303
      %v7305 = vsel %vm7282, %v7008, %v7304
      %v7306 = vsel %vm7284, %v7015, %v7305
      %v7343 = vsel %vm7272, %v7029, %v7022
      %v7344 = vsel %vm7274, %v7036, %v7343
      %v7345 = vsel %vm7276, %v7043, %v7344
      %v7346 = vsel %vm7278, %v7050, %v7345
      %v7347 = vsel %vm7280, %v7057, %v7346
      %v7348 = vsel %vm7282, %v7064, %v7347
      %v7349 = vsel %vm7284, %v7071, %v7348
      %v7350 = vsel %vm7272, %v7085, %v7078
      %v7351 = vsel %vm7274, %v7092, %v7350
      %v7352 = vsel %vm7276, %v7099, %v7351
      %v7353 = vsel %vm7278, %v7106, %v7352
      %v7354 = vsel %vm7280, %v7113, %v7353
      %v7355 = vsel %vm7282, %v7120, %v7354
      %v7356 = vsel %vm7284, %v7127, %v7355
      %v7357 = vsel %vm7272, %v7141, %v7134
      %v7358 = vsel %vm7274, %v7148, %v7357
      %v7359 = vsel %vm7276, %v7155, %v7358
      %v7360 = vsel %vm7278, %v7162, %v7359
      %v7361 = vsel %vm7280, %v7169, %v7360
      %v7362 = vsel %vm7282, %v7176, %v7361
      %v7363 = vsel %vm7284, %v7183, %v7362
      %v7364 = vsel %vm7272, %v7197, %v7190
      %v7365 = vsel %vm7274, %v7204, %v7364
      %v7366 = vsel %vm7276, %v7211, %v7365
      %v7367 = vsel %vm7278, %v7218, %v7366
      %v7368 = vsel %vm7280, %v7225, %v7367
      %v7369 = vsel %vm7282, %v7232, %v7368
      %v7370 = vsel %vm7284, %v7239, %v7369
      %7371 = vrot.lane.b32.xlu0 %v7349, 32
      %v7372 = vpop.permute.xlu0 %7371
      %7373 = vrot.lane.b32.xlu0 %v7356, 32
      %v7374 = vpop.permute.xlu0 %7373
      %7375 = vrot.lane.b32.xlu0 %v7363, 32
      %v7376 = vpop.permute.xlu0 %7375
      %7377 = vrot.lane.b32.xlu0 %v7370, 32
      %v7378 = vpop.permute.xlu0 %7377
      %v7383 = vsel %vm4832, %v7285, %v7372
      %v7384 = vsel %vm4832, %v7292, %v7374
      %v7385 = vsel %vm4832, %v7299, %v7376
      %v7386 = vsel %vm4832, %v7306, %v7378
      %v7387 = vpack.c.bf16 %v7384, %v7383
      %v7388 = vpack.c.bf16 %v7386, %v7385
      %v7389 = vld [vmem:[%s6] sm:$0xf]
      %v7390 = vld [vmem:[%s6 + $0x4] sm:$0xf]
      %v7391 = vld [vmem:[%s6 + $0x8] sm:$0xf]
      %v7392 = vld [vmem:[%s6 + $0xc] sm:$0xf]
      %v7393 = vld [vmem:[%s6 + $0x10] sm:$0xf]
      %v7394 = vld [vmem:[%s6 + $0x14] sm:$0xf]
      %v7395 = vld [vmem:[%s6 + $0x18] sm:$0xf]
      %v7396 = vld [vmem:[%s6 + $0x1c] sm:$0xf]
      %v7397 = vld [vmem:[%s7] sm:$0x1]
      %v7399 = vlaneseq
      %v7400 = vshrl.u32 %v7399, 7
      %v7401 = vsub.s32 0, %v7400
      %v7402 = vrot.slane %v7397, %v7401
      %v7412 = vunpack.c.l.b16 %v7389
      %v7413 = vunpack.c.l.b16 %v7390
      %v7414 = vunpack.c.l.b16 %v7391
      %v7415 = vunpack.c.l.b16 %v7392
      %v7416 = vunpack.c.l.b16 %v7393
      %v7417 = vunpack.c.l.b16 %v7394
      %v7418 = vunpack.c.l.b16 %v7395
      %v7419 = vunpack.c.l.b16 %v7396
      %v7420 = vpack.c.b16 %v7413, %v7412
      %v7421 = vpack.c.b16 %v7415, %v7414
      %v7422 = vpack.c.b16 %v7417, %v7416
      %v7423 = vpack.c.b16 %v7419, %v7418
      %vm7428 = vcmask 523264
      %v7430 = vsel %vm7428, %v7387, 0
      %v7433 = vsel %vm7428, %v7388, 0
      %7435 = vmatprep.subr.bf16.mxu0 0
      %7436 = vmatpush1.bf16.msra.mxu0 %v7420
      %7437 = vmatprep.subr.bf16.mxu0 0
      %7438 = vmatpush1.bf16.msra.mxu0 %v7421
      %7439 = vmatprep.subr.bf16.mxu0 0
      %7440 = vmatpush1.bf16.msra.mxu0 %v7422
      %7441 = vmatprep.subr.bf16.mxu0 0
      %7442 = vmatpush1.bf16.msra.mxu0 %v7423
      %7443 = vmatprep.subr.bf16.mxu0 0
      %7444 = vmatpush1.bf16.msra.mxu0 0
      %7445 = vmatprep.subr.bf16.mxu0 0
      %7446 = vmatpush1.bf16.msra.mxu0 0
      %7447 = vmatprep.subr.bf16.mxu0 0
      %7448 = vmatpush1.bf16.msra.mxu0 0
      %7449 = vmatprep.subr.bf16.mxu0 0
      %7450 = vmatpush1.bf16.msra.mxu0 0
      %7451 = vmatprep.subr.bf16.mxu0 0
      %7452 = vmatpush1.bf16.msra.mxu0 0
      %7453 = vmatprep.subr.bf16.mxu0 0
      %7454 = vmatpush1.bf16.msra.mxu0 0
      %7455 = vmatprep.subr.bf16.mxu0 0
      %7456 = vmatpush1.bf16.msra.mxu0 0
      %7457 = vmatprep.subr.bf16.mxu0 0
      %7458 = vmatpush1.bf16.msra.mxu0 0
      %7459 = vmatprep.subr.bf16.mxu0 0
      %7460 = vmatpush1.bf16.msra.mxu0 0
      %7461 = vmatprep.subr.bf16.mxu0 0
      %7462 = vmatpush1.bf16.msra.mxu0 0
      %7463 = vmatprep.subr.bf16.mxu0 0
      %7464 = vmatpush1.bf16.msra.mxu0 0
      %7465 = vmatprep.subr.bf16.mxu0 0
      %7466 = vmatpush1.bf16.msra.mxu0 0
      %7467 = vmatprep.mubr.bf16.mxu0 0
      %7468 = vmatmul.mubr.bf16.gmra.mrb[0].mxu0 %v7430
      %v7469 = vpop.f32.mrb[0].mxu0
      %v7470 = vadd.f32 %v7402, %v7469
      %v7471 = vpop.f32.mrb[0].mxu0
      %v7472 = vpop.f32.mrb[0].mxu0
      %v7473 = vadd.f32 %v7402, %v7472
      %v7474 = vpop.f32.mrb[0].mxu0
      %7475 = vmatprep.mubr.bf16.mxu0 0
      %7476 = vmatmul.mubr.bf16.gmra.mrb[0].mxu0 %v7433
      %v7477 = vpop.f32.mrb[0].mxu0
      %v7478 = vadd.f32 %v7402, %v7477
      %v7479 = vpop.f32.mrb[0].mxu0
      %v7480 = vpop.f32.mrb[0].mxu0
      %v7481 = vadd.f32 %v7402, %v7480
      %v7482 = vpop.f32.mrb[0].mxu0
      %7483 = vdwg.mxu0
      %v7484 = vmax.f32 %v7470, 0.0
      %v7485 = vmax.f32 %v7473, 0.0
      %v7486 = vmax.f32 %v7478, 0.0
      %v7487 = vmax.f32 %v7481, 0.0
      %v7488 = vpack.c.bf16 %v7485, %v7484
      %v7489 = vpack.c.bf16 %v7487, %v7486
      %v7490 = vld [vmem:[%s8] sm:$0xf]
      %v7491 = vld [vmem:[%s8 + $0x4] sm:$0xf]
      %v7492 = vld [vmem:[%s8 + $0x8] sm:$0xf]
      %v7493 = vld [vmem:[%s8 + $0xc] sm:$0xf]
      %v7494 = vld [vmem:[%s8 + $0x10] sm:$0xf]
      %v7495 = vld [vmem:[%s8 + $0x14] sm:$0xf]
      %v7496 = vld [vmem:[%s8 + $0x18] sm:$0xf]
      %v7497 = vld [vmem:[%s8 + $0x1c] sm:$0xf]
      %v7498 = vld [vmem:[%s9] sm:$0x1]
      %v7500 = vlaneseq
      %v7501 = vshrl.u32 %v7500, 7
      %v7502 = vsub.s32 0, %v7501
      %v7503 = vrot.slane %v7498, %v7502
      %v7513 = vunpack.c.l.b16 %v7490
      %v7514 = vunpack.c.l.b16 %v7491
      %v7515 = vunpack.c.l.b16 %v7492
      %v7516 = vunpack.c.l.b16 %v7493
      %v7517 = vunpack.c.l.b16 %v7494
      %v7518 = vunpack.c.l.b16 %v7495
      %v7519 = vunpack.c.l.b16 %v7496
      %v7520 = vunpack.c.l.b16 %v7497
      %v7521 = vpack.c.b16 %v7514, %v7513
      %v7522 = vpack.c.b16 %v7516, %v7515
      %v7523 = vpack.c.b16 %v7518, %v7517
      %v7524 = vpack.c.b16 %v7520, %v7519
      %v7530 = vsel %vm7428, %v7488, 0
      %v7533 = vsel %vm7428, %v7489, 0
      %7535 = vmatprep.subr.bf16.mxu0 0
      %7536 = vmatpush1.bf16.msra.mxu0 %v7521
      %7537 = vmatprep.subr.bf16.mxu0 0
      %7538 = vmatpush1.bf16.msra.mxu0 %v7522
      %7539 = vmatprep.subr.bf16.mxu0 0
      %7540 = vmatpush1.bf16.msra.mxu0 %v7523
      %7541 = vmatprep.subr.bf16.mxu0 0
      %7542 = vmatpush1.bf16.msra.mxu0 %v7524
      %7543 = vmatprep.subr.bf16.mxu0 0
      %7544 = vmatpush1.bf16.msra.mxu0 0
      %7545 = vmatprep.subr.bf16.mxu0 0
      %7546 = vmatpush1.bf16.msra.mxu0 0
      %7547 = vmatprep.subr.bf16.mxu0 0
      %7548 = vmatpush1.bf16.msra.mxu0 0
      %7549 = vmatprep.subr.bf16.mxu0 0
      %7550 = vmatpush1.bf16.msra.mxu0 0
      %7551 = vmatprep.subr.bf16.mxu0 0
      %7552 = vmatpush1.bf16.msra.mxu0 0
      %7553 = vmatprep.subr.bf16.mxu0 0
      %7554 = vmatpush1.bf16.msra.mxu0 0
      %7555 = vmatprep.subr.bf16.mxu0 0
      %7556 = vmatpush1.bf16.msra.mxu0 0
      %7557 = vmatprep.subr.bf16.mxu0 0
      %7558 = vmatpush1.bf16.msra.mxu0 0
      %7559 = vmatprep.subr.bf16.mxu0 0
      %7560 = vmatpush1.bf16.msra.mxu0 0
      %7561 = vmatprep.subr.bf16.mxu0 0
      %7562 = vmatpush1.bf16.msra.mxu0 0
      %7563 = vmatprep.subr.bf16.mxu0 0
      %7564 = vmatpush1.bf16.msra.mxu0 0
      %7565 = vmatprep.subr.bf16.mxu0 0
      %7566 = vmatpush1.bf16.msra.mxu0 0
      %7567 = vmatprep.mubr.bf16.mxu0 0
      %7568 = vmatmul.mubr.bf16.gmra.mrb[0].mxu0 %v7530
      %v7569 = vpop.f32.mrb[0].mxu0
      %v7570 = vadd.f32 %v7503, %v7569
      %v7571 = vpop.f32.mrb[0].mxu0
      %v7572 = vpop.f32.mrb[0].mxu0
      %v7573 = vadd.f32 %v7503, %v7572
      %v7574 = vpop.f32.mrb[0].mxu0
      %7575 = vmatprep.mubr.bf16.mxu0 0
      %7576 = vmatmul.mubr.bf16.gmra.mrb[0].mxu0 %v7533
      %v7577 = vpop.f32.mrb[0].mxu0
      %v7578 = vadd.f32 %v7503, %v7577
      %v7579 = vpop.f32.mrb[0].mxu0
      %v7580 = vpop.f32.mrb[0].mxu0
      %v7581 = vadd.f32 %v7503, %v7580
      %v7582 = vpop.f32.mrb[0].mxu0
      %7583 = vdwg.mxu0
      %vm7584 = vcmask 23552
      %7585 = vst.msk [vmem:[%s361] sm:$0xff] %vm7584, %v7570
      %7586 = vst.msk [vmem:[%s361 + $0x8] sm:$0xff] %vm7584, %v7573
      %7587 = vst.msk [vmem:[%s361 + $0x10] sm:$0xff] %vm7584, %v7578
      %7588 = vst.msk [vmem:[%s361 + $0x18] sm:$0xff] %vm7584, %v7581
      %s7589 = smul.u32 4, %s21
      %p7590 = scmp.lt.s32.totalorder %s7589, 7
      %s7591 = scalar_select %p7590, %s7589, 7
      %s7592 = smul.addr %s7591, 8
      %s7593 = scalar_lea.vmem %s10, %s7592
      // Predicated region
      $region61: #{tpu_custom_call.1} parent=59 // pred_check
        %p7594 = pneg %p254
      $region62: #{tpu_custom_call.1} parent=59 // pred_check_branch
        %7596 = sbr.rel (%p7594) target = $region64
      $region63: #{tpu_custom_call.1} parent=59 // pred_region
        %s7597 = smul.u32 4, %s21
      $region64: #{tpu_custom_call.1} parent=59 // pred_fallthru
        _
    $region60: #{tpu_custom_call.1} parent=5 // pred_fallthru
      _
    %p7598 = scmp.le.s32.totalorder 2, %s16
    // Predicated region
    $region65: #{tpu_custom_call.1} parent=5 // pred_check
      %p7599 = pneg %p7598
    $region66: #{tpu_custom_call.1} parent=5 // pred_check_branch
      %7601 = sbr.rel (%p7599) target = $region68
    $region67: #{tpu_custom_call.1} parent=5 // pred_region
      %s7602 = ssub.s32 %s16, 2
      // Predicated region
      $region69: #{tpu_custom_call.1} parent=67 // pred_check
        %p7603 = pneg %p260
      $region70: #{tpu_custom_call.1} parent=67 // pred_check_branch
        %7605 = sbr.rel (%p7603) target = $region72
      $region71: #{tpu_custom_call.1} parent=67 // pred_region
        %s7606 = smul.u32 4, %s22
        %p7607 = scmp.lt.s32.totalorder %s7606, 7
        %s7608 = scalar_select %p7607, %s7606, 7
        %s7609 = smul.addr %s7608, 8
        %s7610 = scalar_lea.vmem %s10, %s7609
      $region72: #{tpu_custom_call.1} parent=67 // pred_fallthru
        _
    $region68: #{tpu_custom_call.1} parent=5 // pred_fallthru
      _
  $region6: #{tpu_custom_call.1} parent=0 // loop_footer
    %s20 = sadd.s32 1, %s16
  $region7: #{tpu_custom_call.1} parent=0 // loop_footer_branch
    %15 = sbr.rel target = $region3
  $region8: #{tpu_custom_call.1} parent=0 // loop_exit
    _

</llo_original>
